<compile_context>
chip_gen: v6e
topology: v6e:2x2x1
jax: 0.10.0
libtpu: 0.0.40
codegen_flags: <defaults>
</compile_context>

<pallas_src>
import math

import jax
import jax.numpy as jnp
from jax.experimental import pallas as pl
from jax.experimental.pallas import tpu as pltpu

B, S, D, H, L = 2, 8, 32, 4, 2          # batch, seq, d_model, heads, layers
DH = D // H                             # per-head dim
FF = 4 * D                              # feed-forward hidden
VOCAB = 64
N_SEG = 3
HEAD_PAD = 128                          # lane-dense head output width
LN_EPS = 1e-5
NEG_INF = -1e9


# ----------------------------- in-kernel helpers -----------------------------

def _layernorm(x, g, b):
    mu = jnp.mean(x, axis=-1, keepdims=True)
    var = jnp.mean((x - mu) ** 2, axis=-1, keepdims=True)
    return (x - mu) * jax.lax.rsqrt(var + LN_EPS) * g + b


def _log_softmax(z):
    m = jnp.max(z, axis=-1, keepdims=True)
    s = z - m
    return s - jnp.log(jnp.sum(jnp.exp(s), axis=-1, keepdims=True))


# ----------------------------- fused BERTLM kernel -----------------------------

def _bertlm_kernel(x_ref, bias_ref,
                   wqkv_ref, bqkv_ref, wo_ref, bo_ref, ln1g_ref, ln1b_ref,
                   w1_ref, b1_ref, w2_ref, b2_ref, ln2g_ref, ln2b_ref,
                   nspw_ref, nspb_ref, mlmw_ref, mlmb_ref,
                   nsp_ref, mlm_ref):
    """Grid = (batch,). Entire layer stack runs inside one grid step."""
    bias = bias_ref[0]                                  # (1, S) additive key-mask bias
    scale = 1.0 / math.sqrt(DH)

    def layer_body(l, x):                               # x: (S, D) f32
        xb = x.astype(jnp.bfloat16)

        # ---- fused QKV projection: one (S,D)x(D,3D) matmul ----
        qkv = jnp.dot(xb, wqkv_ref[l],
                      preferred_element_type=jnp.float32) + bqkv_ref[l]   # (S, 3D)
        qkvb = qkv.astype(jnp.bfloat16)

        # ---- multi-head attention; static head loop (H=4, DH=8) ----
        # TODO(synk): a batched-head einsum needs a (H,S,DH) layout shuffle that
        # is riskier to lower at these tiny dims; per-head loop kept instead.
        ctx_parts = []
        for h in range(H):
            qh = qkvb[:, h * DH:(h + 1) * DH]
            kh = qkvb[:, D + h * DH:D + (h + 1) * DH]
            vh = qkvb[:, 2 * D + h * DH:2 * D + (h + 1) * DH]
            scores = jax.lax.dot_general(                # q @ k^T without .T
                qh, kh, (((1,), (1,)), ((), ())),
                preferred_element_type=jnp.float32) * scale
            scores = scores + bias                       # masked keys -> -1e9
            m = jnp.max(scores, axis=-1, keepdims=True)
            e = jnp.exp(scores - m)
            p = e / jnp.sum(e, axis=-1, keepdims=True)   # exact softmax divide
            ctx_parts.append(jnp.dot(p.astype(jnp.bfloat16), vh,
                                     preferred_element_type=jnp.float32))
        ctx = jnp.concatenate(ctx_parts, axis=-1)        # (S, D)

        # single output projection over concatenated heads
        attn = jnp.dot(ctx.astype(jnp.bfloat16), wo_ref[l],
                       preferred_element_type=jnp.float32) + bo_ref[l]

        # residual + LayerNorm 1 (post-norm, distinct LN per sublayer)
        x1 = _layernorm(x + attn, ln1g_ref[l], ln1b_ref[l])

        # ---- position-wise feed-forward ----
        hid = jnp.dot(x1.astype(jnp.bfloat16), w1_ref[l],
                      preferred_element_type=jnp.float32) + b1_ref[l]
        # TODO(synk): nn.GELU default is erf-based; tanh approximation used for TPU lowering.
        hid = jax.nn.gelu(hid, approximate=True)
        y = jnp.dot(hid.astype(jnp.bfloat16), w2_ref[l],
                    preferred_element_type=jnp.float32) + b2_ref[l]

        # residual + LayerNorm 2 -> next layer's input
        return _layernorm(x1 + y, ln2g_ref[l], ln2b_ref[l])

    x_enc = jax.lax.fori_loop(0, L, layer_body, x_ref[0], unroll=True)

    # ---- fused heads (encoder output never leaves VMEM) ----
    xe = x_enc.astype(jnp.bfloat16)
    # Masked-LM head: linear + log-softmax; weights lane-padded to 128 columns
    # (padded columns carry bias -1e9 so log-softmax over real vocab is exact).
    mlm_logits = jnp.dot(xe, mlmw_ref[...],
                         preferred_element_type=jnp.float32) + mlmb_ref[...]
    mlm_ref[0] = _log_softmax(mlm_logits)
    # Next-sentence head on the [CLS] (position 0) token
    cls = xe[0:1, :]                                     # (1, D)
    nsp_logits = jnp.dot(cls, nspw_ref[...],
                         preferred_element_type=jnp.float32) + nspb_ref[...]
    nsp_ref[0] = _log_softmax(nsp_logits)


# ----------------------------- pallas_call wrapper -----------------------------

def _const_spec(shape):
    """Whole array resident in VMEM; same block for every grid step (fetched once)."""
    nd = len(shape)
    return pl.BlockSpec(tuple(shape), lambda b: (0,) * nd)


def bert_lm_forward(params, tokens, segments):
    # additive key mask: 0 for valid keys, -1e9 for padding (tokens == 0)
    key_valid = (tokens > 0).astype(jnp.float32)                # (B, S)
    mask_bias = ((1.0 - key_valid) * NEG_INF)[:, None, :]       # (B, 1, S)

    # embedding lookup (gather) stays in plain JAX glue; dropout: eval mode
    x = (params["tok_emb"][tokens]
         + params["pos_emb"][None, :, :]
         + params["seg_emb"][segments]).astype(jnp.float32)     # (B, S, D)

    # advisory cost hint for XLA's scheduler
    flops_layer = (2 * S * D * (3 * D)            # fused QKV
                   + 2 * H * S * S * DH * 2       # scores + context
                   + 2 * S * D * D                # output projection
                   + 2 * 2 * S * D * FF)          # FFN
    flops_heads = 2 * S * D * HEAD_PAD + 2 * D * HEAD_PAD
    weight_bytes = sum(int(v.size) * v.dtype.itemsize for k, v in params.items()
                       if k not in ("tok_emb", "pos_emb", "seg_emb"))
    cost = pl.CostEstimate(
        flops=B * (L * flops_layer + flops_heads),
        transcendentals=B * (L * (H * S * S + S * FF) + (S + 1) * HEAD_PAD),
        bytes_accessed=int(x.size) * 4 + int(mask_bias.size) * 4 + weight_bytes
                       + B * (S + 1) * HEAD_PAD * 4)

    nsp_pad, mlm_pad = pl.pallas_call(
        _bertlm_kernel,
        out_shape=(jax.ShapeDtypeStruct((B, 1, HEAD_PAD), jnp.float32),
                   jax.ShapeDtypeStruct((B, S, HEAD_PAD), jnp.float32)),
        grid=(B,),
        in_specs=[
            pl.BlockSpec((1, S, D), lambda b: (b, 0, 0)),       # embedded x
            pl.BlockSpec((1, 1, S), lambda b: (b, 0, 0)),       # additive mask bias
            _const_spec((L, D, 3 * D)),   # wqkv (fused, pre-transposed)
            _const_spec((L, 1, 3 * D)),   # bqkv
            _const_spec((L, D, D)),       # wo
            _const_spec((L, 1, D)),       # bo
            _const_spec((L, 1, D)),       # ln1_g
            _const_spec((L, 1, D)),       # ln1_b
            _const_spec((L, D, FF)),      # w1
            _const_spec((L, 1, FF)),      # b1
            _const_spec((L, FF, D)),      # w2
            _const_spec((L, 1, D)),       # b2
            _const_spec((L, 1, D)),       # ln2_g
            _const_spec((L, 1, D)),       # ln2_b
            _const_spec((D, HEAD_PAD)),   # nsp_w (pre-transposed, lane-padded)
            _const_spec((1, HEAD_PAD)),   # nsp_b
            _const_spec((D, HEAD_PAD)),   # mlm_w (pre-transposed, lane-padded)
            _const_spec((1, HEAD_PAD)),   # mlm_b
        ],
        out_specs=(pl.BlockSpec((1, 1, HEAD_PAD), lambda b: (b, 0, 0)),
                   pl.BlockSpec((1, S, HEAD_PAD), lambda b: (b, 0, 0))),
        compiler_params=pltpu.CompilerParams(
            dimension_semantics=("parallel",)),
        cost_estimate=cost,
    )(x, mask_bias,
      params["wqkv"], params["bqkv"], params["wo"], params["bo"],
      params["ln1_g"], params["ln1_b"],
      params["w1"], params["b1"], params["w2"], params["b2"],
      params["ln2_g"], params["ln2_b"],
      params["nsp_w"], params["nsp_b"], params["mlm_w"], params["mlm_b"])

    # slice lane padding back off
    return nsp_pad[:, 0, :2], mlm_pad[:, :, :VOCAB]             # (B, 2), (B, S, VOCAB)


# ----------------------------- parameters / embeddings -----------------------------

def sinusoidal_positions(seq_len, d_model):
    pos = jnp.arange(seq_len, dtype=jnp.float32)[:, None]
    i = jnp.arange(0, d_model, 2, dtype=jnp.float32)[None, :]
    angle = pos / jnp.power(10000.0, i / d_model)
    pe = jnp.zeros((seq_len, d_model), jnp.float32)
    pe = pe.at[:, 0::2].set(jnp.sin(angle))
    pe = pe.at[:, 1::2].set(jnp.cos(angle))
    return pe


def init_params(key):
    def dense(k, in_f, out_f):
        # nn.Linear init, weight stored pre-transposed (in, out)
        kw, kb = jax.random.split(k)
        lim = 1.0 / math.sqrt(in_f)
        w = jax.random.uniform(kw, (in_f, out_f), jnp.float32, -lim, lim)
        b = jax.random.uniform(kb, (1, out_f), jnp.float32, -lim, lim)
        return w, b

    keys = jax.random.split(key, 4 + L)
    p = {}
    tok = jax.random.normal(keys[0], (VOCAB, D), jnp.float32) * 0.02
    p["tok_emb"] = tok.at[0].set(0.0)               # padding_idx=0
    seg = jax.random.normal(keys[1], (N_SEG, D), jnp.float32) * 0.02
    p["seg_emb"] = seg.at[0].set(0.0)               # padding_idx=0
    # TODO(synk): EmbeddingLayer source not provided; sinusoidal positions assumed.
    p["pos_emb"] = sinusoidal_positions(S, D)

    stacks = {n: [] for n in ["wqkv", "bqkv", "wo", "bo", "w1", "b1", "w2", "b2",
                              "ln1_g", "ln1_b", "ln2_g", "ln2_b"]}
    for li in range(L):
        ks = jax.random.split(keys[2 + li], 6)
        wq, bq = dense(ks[0], D, D)
        wk, bk = dense(ks[1], D, D)
        wv, bv = dense(ks[2], D, D)
        wo, bo = dense(ks[3], D, D)
        w1, b1 = dense(ks[4], D, FF)
        w2, b2 = dense(ks[5], FF, D)
        stacks["wqkv"].append(jnp.concatenate([wq, wk, wv], axis=1).astype(jnp.bfloat16))
        stacks["bqkv"].append(jnp.concatenate([bq, bk, bv], axis=1))
        stacks["wo"].append(wo.astype(jnp.bfloat16)); stacks["bo"].append(bo)
        stacks["w1"].append(w1.astype(jnp.bfloat16)); stacks["b1"].append(b1)
        stacks["w2"].append(w2.astype(jnp.bfloat16)); stacks["b2"].append(b2)
        stacks["ln1_g"].append(jnp.ones((1, D), jnp.float32))
        stacks["ln1_b"].append(jnp.zeros((1, D), jnp.float32))
        stacks["ln2_g"].append(jnp.ones((1, D), jnp.float32))
        stacks["ln2_b"].append(jnp.zeros((1, D), jnp.float32))
    for name, lst in stacks.items():
        p[name] = jnp.stack(lst)                    # (L, ...)

    # heads: lane-pad output columns to 128 (pad weight cols = 0, pad bias = -1e9
    # so log-softmax over the real classes is unaffected; wrapper slices them off)
    nsp_w, nsp_b = dense(keys[2 + L], D, 2)
    mlm_w, mlm_b = dense(keys[3 + L], D, VOCAB)
    p["nsp_w"] = jnp.pad(nsp_w, ((0, 0), (0, HEAD_PAD - 2))).astype(jnp.bfloat16)
    p["nsp_b"] = jnp.pad(nsp_b, ((0, 0), (0, HEAD_PAD - 2)), constant_values=NEG_INF)
    p["mlm_w"] = jnp.pad(mlm_w, ((0, 0), (0, HEAD_PAD - VOCAB))).astype(jnp.bfloat16)
    p["mlm_b"] = jnp.pad(mlm_b, ((0, 0), (0, HEAD_PAD - VOCAB)), constant_values=NEG_INF)
    return p


# ----------------------------- main -----------------------------

if __name__ == "__main__":
    key = jax.random.PRNGKey(0)
    pkey, tkey, skey = jax.random.split(key, 3)
    params = init_params(pkey)

    tokens = jax.random.randint(tkey, (B, S), 0, VOCAB, dtype=jnp.int32)
    tokens = tokens.at[:, 0].set(1)                 # keep a non-pad [CLS]-like token
    segments = jax.random.randint(skey, (B, S), 1, N_SEG, dtype=jnp.int32)

    nsp_out, mlm_out = jax.jit(bert_lm_forward)(params, tokens, segments)
    jax.block_until_ready((nsp_out, mlm_out))
    assert nsp_out.shape == (B, 2) and mlm_out.shape == (B, S, VOCAB)
    assert bool(jnp.all(jnp.isfinite(nsp_out))) and bool(jnp.all(jnp.isfinite(mlm_out)))
    print("KERNEL_OK")
</pallas_src>

<mosaic_0001>
module attributes {stable_mosaic.version = 11 : i64} {
  func.func @_bertlm_kernel(%arg0: i32, %arg1: memref<1x8x32xf32, #tpu.memory_space<vmem>>, %arg2: memref<1x1x8xf32, #tpu.memory_space<vmem>>, %arg3: memref<2x32x96xbf16, #tpu.memory_space<vmem>>, %arg4: memref<2x1x96xf32, #tpu.memory_space<vmem>>, %arg5: memref<2x32x32xbf16, #tpu.memory_space<vmem>>, %arg6: memref<2x1x32xf32, #tpu.memory_space<vmem>>, %arg7: memref<2x1x32xf32, #tpu.memory_space<vmem>>, %arg8: memref<2x1x32xf32, #tpu.memory_space<vmem>>, %arg9: memref<2x32x128xbf16, #tpu.memory_space<vmem>>, %arg10: memref<2x1x128xf32, #tpu.memory_space<vmem>>, %arg11: memref<2x128x32xbf16, #tpu.memory_space<vmem>>, %arg12: memref<2x1x32xf32, #tpu.memory_space<vmem>>, %arg13: memref<2x1x32xf32, #tpu.memory_space<vmem>>, %arg14: memref<2x1x32xf32, #tpu.memory_space<vmem>>, %arg15: memref<32x128xbf16, #tpu.memory_space<vmem>>, %arg16: memref<1x128xf32, #tpu.memory_space<vmem>>, %arg17: memref<32x128xbf16, #tpu.memory_space<vmem>>, %arg18: memref<1x128xf32, #tpu.memory_space<vmem>>, %arg19: memref<1x1x128xf32, #tpu.memory_space<vmem>>, %arg20: memref<1x8x128xf32, #tpu.memory_space<vmem>>) attributes {dimension_semantics = [#tpu.dimension_semantics<parallel>], iteration_bounds = array<i64: 2>, scalar_prefetch = 0 : i64, scratch_operands = 0 : i64, tpu.core_type = #tpu.core_type<tc>, window_params = [{transform_indices = @transform_0, window_bounds = array<i64: 1, 8, 32>}, {transform_indices = @transform_1, window_bounds = array<i64: 1, 1, 8>}, {pipeline_mode = #tpu.pipeline_mode<synchronous>, transform_indices = @transform_2, window_bounds = array<i64: 2, 32, 96>}, {pipeline_mode = #tpu.pipeline_mode<synchronous>, transform_indices = @transform_3, window_bounds = array<i64: 2, 1, 96>}, {pipeline_mode = #tpu.pipeline_mode<synchronous>, transform_indices = @transform_4, window_bounds = array<i64: 2, 32, 32>}, {pipeline_mode = #tpu.pipeline_mode<synchronous>, transform_indices = @transform_5, window_bounds = array<i64: 2, 1, 32>}, {pipeline_mode = #tpu.pipeline_mode<synchronous>, transform_indices = @transform_6, window_bounds = array<i64: 2, 1, 32>}, {pipeline_mode = #tpu.pipeline_mode<synchronous>, transform_indices = @transform_7, window_bounds = array<i64: 2, 1, 32>}, {pipeline_mode = #tpu.pipeline_mode<synchronous>, transform_indices = @transform_8, window_bounds = array<i64: 2, 32, 128>}, {pipeline_mode = #tpu.pipeline_mode<synchronous>, transform_indices = @transform_9, window_bounds = array<i64: 2, 1, 128>}, {pipeline_mode = #tpu.pipeline_mode<synchronous>, transform_indices = @transform_10, window_bounds = array<i64: 2, 128, 32>}, {pipeline_mode = #tpu.pipeline_mode<synchronous>, transform_indices = @transform_11, window_bounds = array<i64: 2, 1, 32>}, {pipeline_mode = #tpu.pipeline_mode<synchronous>, transform_indices = @transform_12, window_bounds = array<i64: 2, 1, 32>}, {pipeline_mode = #tpu.pipeline_mode<synchronous>, transform_indices = @transform_13, window_bounds = array<i64: 2, 1, 32>}, {pipeline_mode = #tpu.pipeline_mode<synchronous>, transform_indices = @transform_14, window_bounds = array<i64: 32, 128>}, {pipeline_mode = #tpu.pipeline_mode<synchronous>, transform_indices = @transform_15, window_bounds = array<i64: 1, 128>}, {pipeline_mode = #tpu.pipeline_mode<synchronous>, transform_indices = @transform_16, window_bounds = array<i64: 32, 128>}, {pipeline_mode = #tpu.pipeline_mode<synchronous>, transform_indices = @transform_17, window_bounds = array<i64: 1, 128>}, {transform_indices = @transform_18, window_bounds = array<i64: 1, 1, 128>}, {transform_indices = @transform_19, window_bounds = array<i64: 1, 8, 128>}]} {
    %c0 = arith.constant 0 : index
    %c0_0 = arith.constant 0 : index
    %c0_1 = arith.constant 0 : index
    %0 = vector.load %arg2[%c0, %c0_0, %c0_1] : memref<1x1x8xf32, #tpu.memory_space<vmem>>, vector<1x1x8xf32>
    %1 = vector.shape_cast %0 : vector<1x1x8xf32> to vector<1x8xf32>
    %c0_2 = arith.constant 0 : index
    %c0_3 = arith.constant 0 : index
    %c0_4 = arith.constant 0 : index
    %2 = vector.load %arg1[%c0_2, %c0_3, %c0_4] : memref<1x8x32xf32, #tpu.memory_space<vmem>>, vector<1x8x32xf32>
    %3 = vector.shape_cast %2 : vector<1x8x32xf32> to vector<8x32xf32>
    %c0_i32 = arith.constant 0 : i32
    %4 = arith.truncf %3 : vector<8x32xf32> to vector<8x32xbf16>
    %5 = arith.index_cast %c0_i32 : i32 to index
    %c0_5 = arith.constant 0 : index
    %c0_6 = arith.constant 0 : index
    %6 = vector.load %arg3[%5, %c0_5, %c0_6] : memref<2x32x96xbf16, #tpu.memory_space<vmem>>, vector<1x32x96xbf16>
    %7 = vector.shape_cast %6 : vector<1x32x96xbf16> to vector<32x96xbf16>
    %cst = arith.constant dense<0.000000e+00> : vector<8x96xf32>
    %8 = tpu.matmul %4, %7, %cst {dimension_numbers = #tpu.dot_dimension_numbers<[1], [0], [0], [1], [0, 0, 1, 1], [], []>} : vector<8x32xbf16>, vector<32x96xbf16>, vector<8x96xf32> -> vector<8x96xf32>
    %9 = arith.index_cast %c0_i32 : i32 to index
    %c0_7 = arith.constant 0 : index
    %c0_8 = arith.constant 0 : index
    %10 = vector.load %arg4[%9, %c0_7, %c0_8] : memref<2x1x96xf32, #tpu.memory_space<vmem>>, vector<1x1x96xf32>
    %11 = vector.shape_cast %10 : vector<1x1x96xf32> to vector<1x96xf32>
    %12 = vector.broadcast %11 : vector<1x96xf32> to vector<8x96xf32>
    %13 = arith.addf %8, %12 : vector<8x96xf32>
    %14 = arith.truncf %13 : vector<8x96xf32> to vector<8x96xbf16>
    %15 = vector.extract_strided_slice %14 {offsets = [0, 0], sizes = [8, 8], strides = [1, 1]} : vector<8x96xbf16> to vector<8x8xbf16>
    %16 = vector.extract_strided_slice %14 {offsets = [0, 32], sizes = [8, 8], strides = [1, 1]} : vector<8x96xbf16> to vector<8x8xbf16>
    %17 = vector.extract_strided_slice %14 {offsets = [0, 64], sizes = [8, 8], strides = [1, 1]} : vector<8x96xbf16> to vector<8x8xbf16>
    %cst_9 = arith.constant dense<0.000000e+00> : vector<8x8xf32>
    %18 = tpu.matmul %15, %16, %cst_9 {dimension_numbers = #tpu.dot_dimension_numbers<[1], [1], [0], [0], [0, 0, 1, 0], [], []>} : vector<8x8xbf16>, vector<8x8xbf16>, vector<8x8xf32> -> vector<8x8xf32>
    %cst_10 = arith.constant 0.353553385 : f32
    %19 = vector.broadcast %cst_10 : f32 to vector<8x8xf32>
    %20 = arith.mulf %18, %19 : vector<8x8xf32>
    %21 = vector.broadcast %1 : vector<1x8xf32> to vector<8x8xf32>
    %22 = arith.addf %20, %21 : vector<8x8xf32>
    %cst_11 = arith.constant dense<0xFF800000> : vector<8xf32>
    %23 = vector.multi_reduction <maximumf>, %22, %cst_11 [1] : vector<8x8xf32> to vector<8xf32>
    %24 = vector.shape_cast %23 : vector<8xf32> to vector<8x1xf32>
    %25 = vector.broadcast %24 : vector<8x1xf32> to vector<8x8xf32>
    %26 = arith.subf %22, %25 : vector<8x8xf32>
    %27 = math.exp %26 : vector<8x8xf32>
    %cst_12 = arith.constant dense<0.000000e+00> : vector<8xf32>
    %28 = vector.multi_reduction <add>, %27, %cst_12 [1] : vector<8x8xf32> to vector<8xf32>
    %29 = vector.shape_cast %28 : vector<8xf32> to vector<8x1xf32>
    %30 = vector.broadcast %29 : vector<8x1xf32> to vector<8x8xf32>
    %31 = arith.divf %27, %30 : vector<8x8xf32>
    %32 = arith.truncf %31 : vector<8x8xf32> to vector<8x8xbf16>
    %cst_13 = arith.constant dense<0.000000e+00> : vector<8x8xf32>
    %33 = tpu.matmul %32, %17, %cst_13 {dimension_numbers = #tpu.dot_dimension_numbers<[1], [0], [0], [1], [0, 0, 1, 1], [], []>} : vector<8x8xbf16>, vector<8x8xbf16>, vector<8x8xf32> -> vector<8x8xf32>
    %34 = vector.extract_strided_slice %14 {offsets = [0, 8], sizes = [8, 8], strides = [1, 1]} : vector<8x96xbf16> to vector<8x8xbf16>
    %35 = vector.extract_strided_slice %14 {offsets = [0, 40], sizes = [8, 8], strides = [1, 1]} : vector<8x96xbf16> to vector<8x8xbf16>
    %36 = vector.extract_strided_slice %14 {offsets = [0, 72], sizes = [8, 8], strides = [1, 1]} : vector<8x96xbf16> to vector<8x8xbf16>
    %cst_14 = arith.constant dense<0.000000e+00> : vector<8x8xf32>
    %37 = tpu.matmul %34, %35, %cst_14 {dimension_numbers = #tpu.dot_dimension_numbers<[1], [1], [0], [0], [0, 0, 1, 0], [], []>} : vector<8x8xbf16>, vector<8x8xbf16>, vector<8x8xf32> -> vector<8x8xf32>
    %cst_15 = arith.constant 0.353553385 : f32
    %38 = vector.broadcast %cst_15 : f32 to vector<8x8xf32>
    %39 = arith.mulf %37, %38 : vector<8x8xf32>
    %40 = vector.broadcast %1 : vector<1x8xf32> to vector<8x8xf32>
    %41 = arith.addf %39, %40 : vector<8x8xf32>
    %cst_16 = arith.constant dense<0xFF800000> : vector<8xf32>
    %42 = vector.multi_reduction <maximumf>, %41, %cst_16 [1] : vector<8x8xf32> to vector<8xf32>
    %43 = vector.shape_cast %42 : vector<8xf32> to vector<8x1xf32>
    %44 = vector.broadcast %43 : vector<8x1xf32> to vector<8x8xf32>
    %45 = arith.subf %41, %44 : vector<8x8xf32>
    %46 = math.exp %45 : vector<8x8xf32>
    %cst_17 = arith.constant dense<0.000000e+00> : vector<8xf32>
    %47 = vector.multi_reduction <add>, %46, %cst_17 [1] : vector<8x8xf32> to vector<8xf32>
    %48 = vector.shape_cast %47 : vector<8xf32> to vector<8x1xf32>
    %49 = vector.broadcast %48 : vector<8x1xf32> to vector<8x8xf32>
    %50 = arith.divf %46, %49 : vector<8x8xf32>
    %51 = arith.truncf %50 : vector<8x8xf32> to vector<8x8xbf16>
    %cst_18 = arith.constant dense<0.000000e+00> : vector<8x8xf32>
    %52 = tpu.matmul %51, %36, %cst_18 {dimension_numbers = #tpu.dot_dimension_numbers<[1], [0], [0], [1], [0, 0, 1, 1], [], []>} : vector<8x8xbf16>, vector<8x8xbf16>, vector<8x8xf32> -> vector<8x8xf32>
    %53 = vector.extract_strided_slice %14 {offsets = [0, 16], sizes = [8, 8], strides = [1, 1]} : vector<8x96xbf16> to vector<8x8xbf16>
    %54 = vector.extract_strided_slice %14 {offsets = [0, 48], sizes = [8, 8], strides = [1, 1]} : vector<8x96xbf16> to vector<8x8xbf16>
    %55 = vector.extract_strided_slice %14 {offsets = [0, 80], sizes = [8, 8], strides = [1, 1]} : vector<8x96xbf16> to vector<8x8xbf16>
    %cst_19 = arith.constant dense<0.000000e+00> : vector<8x8xf32>
    %56 = tpu.matmul %53, %54, %cst_19 {dimension_numbers = #tpu.dot_dimension_numbers<[1], [1], [0], [0], [0, 0, 1, 0], [], []>} : vector<8x8xbf16>, vector<8x8xbf16>, vector<8x8xf32> -> vector<8x8xf32>
    %cst_20 = arith.constant 0.353553385 : f32
    %57 = vector.broadcast %cst_20 : f32 to vector<8x8xf32>
    %58 = arith.mulf %56, %57 : vector<8x8xf32>
    %59 = vector.broadcast %1 : vector<1x8xf32> to vector<8x8xf32>
    %60 = arith.addf %58, %59 : vector<8x8xf32>
    %cst_21 = arith.constant dense<0xFF800000> : vector<8xf32>
    %61 = vector.multi_reduction <maximumf>, %60, %cst_21 [1] : vector<8x8xf32> to vector<8xf32>
    %62 = vector.shape_cast %61 : vector<8xf32> to vector<8x1xf32>
    %63 = vector.broadcast %62 : vector<8x1xf32> to vector<8x8xf32>
    %64 = arith.subf %60, %63 : vector<8x8xf32>
    %65 = math.exp %64 : vector<8x8xf32>
    %cst_22 = arith.constant dense<0.000000e+00> : vector<8xf32>
    %66 = vector.multi_reduction <add>, %65, %cst_22 [1] : vector<8x8xf32> to vector<8xf32>
    %67 = vector.shape_cast %66 : vector<8xf32> to vector<8x1xf32>
    %68 = vector.broadcast %67 : vector<8x1xf32> to vector<8x8xf32>
    %69 = arith.divf %65, %68 : vector<8x8xf32>
    %70 = arith.truncf %69 : vector<8x8xf32> to vector<8x8xbf16>
    %cst_23 = arith.constant dense<0.000000e+00> : vector<8x8xf32>
    %71 = tpu.matmul %70, %55, %cst_23 {dimension_numbers = #tpu.dot_dimension_numbers<[1], [0], [0], [1], [0, 0, 1, 1], [], []>} : vector<8x8xbf16>, vector<8x8xbf16>, vector<8x8xf32> -> vector<8x8xf32>
    %72 = vector.extract_strided_slice %14 {offsets = [0, 24], sizes = [8, 8], strides = [1, 1]} : vector<8x96xbf16> to vector<8x8xbf16>
    %73 = vector.extract_strided_slice %14 {offsets = [0, 56], sizes = [8, 8], strides = [1, 1]} : vector<8x96xbf16> to vector<8x8xbf16>
    %74 = vector.extract_strided_slice %14 {offsets = [0, 88], sizes = [8, 8], strides = [1, 1]} : vector<8x96xbf16> to vector<8x8xbf16>
    %cst_24 = arith.constant dense<0.000000e+00> : vector<8x8xf32>
    %75 = tpu.matmul %72, %73, %cst_24 {dimension_numbers = #tpu.dot_dimension_numbers<[1], [1], [0], [0], [0, 0, 1, 0], [], []>} : vector<8x8xbf16>, vector<8x8xbf16>, vector<8x8xf32> -> vector<8x8xf32>
    %cst_25 = arith.constant 0.353553385 : f32
    %76 = vector.broadcast %cst_25 : f32 to vector<8x8xf32>
    %77 = arith.mulf %75, %76 : vector<8x8xf32>
    %78 = vector.broadcast %1 : vector<1x8xf32> to vector<8x8xf32>
    %79 = arith.addf %77, %78 : vector<8x8xf32>
    %cst_26 = arith.constant dense<0xFF800000> : vector<8xf32>
    %80 = vector.multi_reduction <maximumf>, %79, %cst_26 [1] : vector<8x8xf32> to vector<8xf32>
    %81 = vector.shape_cast %80 : vector<8xf32> to vector<8x1xf32>
    %82 = vector.broadcast %81 : vector<8x1xf32> to vector<8x8xf32>
    %83 = arith.subf %79, %82 : vector<8x8xf32>
    %84 = math.exp %83 : vector<8x8xf32>
    %cst_27 = arith.constant dense<0.000000e+00> : vector<8xf32>
    %85 = vector.multi_reduction <add>, %84, %cst_27 [1] : vector<8x8xf32> to vector<8xf32>
    %86 = vector.shape_cast %85 : vector<8xf32> to vector<8x1xf32>
    %87 = vector.broadcast %86 : vector<8x1xf32> to vector<8x8xf32>
    %88 = arith.divf %84, %87 : vector<8x8xf32>
    %89 = arith.truncf %88 : vector<8x8xf32> to vector<8x8xbf16>
    %cst_28 = arith.constant dense<0.000000e+00> : vector<8x8xf32>
    %90 = tpu.matmul %89, %74, %cst_28 {dimension_numbers = #tpu.dot_dimension_numbers<[1], [0], [0], [1], [0, 0, 1, 1], [], []>} : vector<8x8xbf16>, vector<8x8xbf16>, vector<8x8xf32> -> vector<8x8xf32>
    %91 = tpu.concatenate %33, %52, %71, %90 in 1 : vector<8x8xf32>, vector<8x8xf32>, vector<8x8xf32>, vector<8x8xf32> -> vector<8x32xf32>
    %92 = arith.truncf %91 : vector<8x32xf32> to vector<8x32xbf16>
    %93 = arith.index_cast %c0_i32 : i32 to index
    %c0_29 = arith.constant 0 : index
    %c0_30 = arith.constant 0 : index
    %94 = vector.load %arg5[%93, %c0_29, %c0_30] : memref<2x32x32xbf16, #tpu.memory_space<vmem>>, vector<1x32x32xbf16>
    %95 = vector.shape_cast %94 : vector<1x32x32xbf16> to vector<32x32xbf16>
    %cst_31 = arith.constant dense<0.000000e+00> : vector<8x32xf32>
    %96 = tpu.matmul %92, %95, %cst_31 {dimension_numbers = #tpu.dot_dimension_numbers<[1], [0], [0], [1], [0, 0, 1, 1], [], []>} : vector<8x32xbf16>, vector<32x32xbf16>, vector<8x32xf32> -> vector<8x32xf32>
    %97 = arith.index_cast %c0_i32 : i32 to index
    %c0_32 = arith.constant 0 : index
    %c0_33 = arith.constant 0 : index
    %98 = vector.load %arg6[%97, %c0_32, %c0_33] : memref<2x1x32xf32, #tpu.memory_space<vmem>>, vector<1x1x32xf32>
    %99 = vector.shape_cast %98 : vector<1x1x32xf32> to vector<1x32xf32>
    %100 = vector.broadcast %99 : vector<1x32xf32> to vector<8x32xf32>
    %101 = arith.addf %96, %100 : vector<8x32xf32>
    %102 = arith.addf %3, %101 : vector<8x32xf32>
    %103 = arith.index_cast %c0_i32 : i32 to index
    %c0_34 = arith.constant 0 : index
    %c0_35 = arith.constant 0 : index
    %104 = vector.load %arg7[%103, %c0_34, %c0_35] : memref<2x1x32xf32, #tpu.memory_space<vmem>>, vector<1x1x32xf32>
    %105 = vector.shape_cast %104 : vector<1x1x32xf32> to vector<1x32xf32>
    %106 = arith.index_cast %c0_i32 : i32 to index
    %c0_36 = arith.constant 0 : index
    %c0_37 = arith.constant 0 : index
    %107 = vector.load %arg8[%106, %c0_36, %c0_37] : memref<2x1x32xf32, #tpu.memory_space<vmem>>, vector<1x1x32xf32>
    %108 = vector.shape_cast %107 : vector<1x1x32xf32> to vector<1x32xf32>
    %cst_38 = arith.constant dense<0.000000e+00> : vector<8xf32>
    %109 = vector.multi_reduction <add>, %102, %cst_38 [1] : vector<8x32xf32> to vector<8xf32>
    %110 = vector.shape_cast %109 : vector<8xf32> to vector<8x1xf32>
    %cst_39 = arith.constant 3.200000e+01 : f32
    %111 = vector.broadcast %cst_39 : f32 to vector<8x1xf32>
    %112 = arith.divf %110, %111 : vector<8x1xf32>
    %113 = vector.broadcast %112 : vector<8x1xf32> to vector<8x32xf32>
    %114 = arith.subf %102, %113 : vector<8x32xf32>
    %115 = arith.mulf %114, %114 : vector<8x32xf32>
    %cst_40 = arith.constant dense<0.000000e+00> : vector<8xf32>
    %116 = vector.multi_reduction <add>, %115, %cst_40 [1] : vector<8x32xf32> to vector<8xf32>
    %117 = vector.shape_cast %116 : vector<8xf32> to vector<8x1xf32>
    %cst_41 = arith.constant 3.200000e+01 : f32
    %118 = vector.broadcast %cst_41 : f32 to vector<8x1xf32>
    %119 = arith.divf %117, %118 : vector<8x1xf32>
    %120 = vector.broadcast %112 : vector<8x1xf32> to vector<8x32xf32>
    %121 = arith.subf %102, %120 : vector<8x32xf32>
    %cst_42 = arith.constant 9.99999974E-6 : f32
    %122 = vector.broadcast %cst_42 : f32 to vector<8x1xf32>
    %123 = arith.addf %119, %122 : vector<8x1xf32>
    %124 = math.rsqrt %123 : vector<8x1xf32>
    %125 = vector.broadcast %124 : vector<8x1xf32> to vector<8x32xf32>
    %126 = arith.mulf %121, %125 : vector<8x32xf32>
    %127 = vector.broadcast %105 : vector<1x32xf32> to vector<8x32xf32>
    %128 = arith.mulf %126, %127 : vector<8x32xf32>
    %129 = vector.broadcast %108 : vector<1x32xf32> to vector<8x32xf32>
    %130 = arith.addf %128, %129 : vector<8x32xf32>
    %131 = arith.truncf %130 : vector<8x32xf32> to vector<8x32xbf16>
    %132 = arith.index_cast %c0_i32 : i32 to index
    %c0_43 = arith.constant 0 : index
    %c0_44 = arith.constant 0 : index
    %133 = vector.load %arg9[%132, %c0_43, %c0_44] : memref<2x32x128xbf16, #tpu.memory_space<vmem>>, vector<1x32x128xbf16>
    %134 = vector.shape_cast %133 : vector<1x32x128xbf16> to vector<32x128xbf16>
    %cst_45 = arith.constant dense<0.000000e+00> : vector<8x128xf32>
    %135 = tpu.matmul %131, %134, %cst_45 {dimension_numbers = #tpu.dot_dimension_numbers<[1], [0], [0], [1], [0, 0, 1, 1], [], []>} : vector<8x32xbf16>, vector<32x128xbf16>, vector<8x128xf32> -> vector<8x128xf32>
    %136 = arith.index_cast %c0_i32 : i32 to index
    %c0_46 = arith.constant 0 : index
    %c0_47 = arith.constant 0 : index
    %137 = vector.load %arg10[%136, %c0_46, %c0_47] : memref<2x1x128xf32, #tpu.memory_space<vmem>>, vector<1x1x128xf32>
    %138 = vector.shape_cast %137 : vector<1x1x128xf32> to vector<1x128xf32>
    %139 = vector.broadcast %138 : vector<1x128xf32> to vector<8x128xf32>
    %140 = arith.addf %135, %139 : vector<8x128xf32>
    %141 = arith.mulf %140, %140 : vector<8x128xf32>
    %142 = arith.mulf %140, %141 : vector<8x128xf32>
    %cst_48 = arith.constant 4.471500e-02 : f32
    %143 = vector.broadcast %cst_48 : f32 to vector<8x128xf32>
    %144 = arith.mulf %143, %142 : vector<8x128xf32>
    %145 = arith.addf %140, %144 : vector<8x128xf32>
    %cst_49 = arith.constant 0.797884583 : f32
    %146 = vector.broadcast %cst_49 : f32 to vector<8x128xf32>
    %147 = arith.mulf %146, %145 : vector<8x128xf32>
    %148 = math.tanh %147 : vector<8x128xf32>
    %cst_50 = arith.constant 1.000000e+00 : f32
    %149 = vector.broadcast %cst_50 : f32 to vector<8x128xf32>
    %150 = arith.addf %149, %148 : vector<8x128xf32>
    %cst_51 = arith.constant 5.000000e-01 : f32
    %151 = vector.broadcast %cst_51 : f32 to vector<8x128xf32>
    %152 = arith.mulf %151, %150 : vector<8x128xf32>
    %153 = arith.mulf %140, %152 : vector<8x128xf32>
    %154 = arith.truncf %153 : vector<8x128xf32> to vector<8x128xbf16>
    %155 = arith.index_cast %c0_i32 : i32 to index
    %c0_52 = arith.constant 0 : index
    %c0_53 = arith.constant 0 : index
    %156 = vector.load %arg11[%155, %c0_52, %c0_53] : memref<2x128x32xbf16, #tpu.memory_space<vmem>>, vector<1x128x32xbf16>
    %157 = vector.shape_cast %156 : vector<1x128x32xbf16> to vector<128x32xbf16>
    %cst_54 = arith.constant dense<0.000000e+00> : vector<8x32xf32>
    %158 = tpu.matmul %154, %157, %cst_54 {dimension_numbers = #tpu.dot_dimension_numbers<[1], [0], [0], [1], [0, 0, 1, 1], [], []>} : vector<8x128xbf16>, vector<128x32xbf16>, vector<8x32xf32> -> vector<8x32xf32>
    %159 = arith.index_cast %c0_i32 : i32 to index
    %c0_55 = arith.constant 0 : index
    %c0_56 = arith.constant 0 : index
    %160 = vector.load %arg12[%159, %c0_55, %c0_56] : memref<2x1x32xf32, #tpu.memory_space<vmem>>, vector<1x1x32xf32>
    %161 = vector.shape_cast %160 : vector<1x1x32xf32> to vector<1x32xf32>
    %162 = vector.broadcast %161 : vector<1x32xf32> to vector<8x32xf32>
    %163 = arith.addf %158, %162 : vector<8x32xf32>
    %164 = arith.addf %130, %163 : vector<8x32xf32>
    %165 = arith.index_cast %c0_i32 : i32 to index
    %c0_57 = arith.constant 0 : index
    %c0_58 = arith.constant 0 : index
    %166 = vector.load %arg13[%165, %c0_57, %c0_58] : memref<2x1x32xf32, #tpu.memory_space<vmem>>, vector<1x1x32xf32>
    %167 = vector.shape_cast %166 : vector<1x1x32xf32> to vector<1x32xf32>
    %168 = arith.index_cast %c0_i32 : i32 to index
    %c0_59 = arith.constant 0 : index
    %c0_60 = arith.constant 0 : index
    %169 = vector.load %arg14[%168, %c0_59, %c0_60] : memref<2x1x32xf32, #tpu.memory_space<vmem>>, vector<1x1x32xf32>
    %170 = vector.shape_cast %169 : vector<1x1x32xf32> to vector<1x32xf32>
    %cst_61 = arith.constant dense<0.000000e+00> : vector<8xf32>
    %171 = vector.multi_reduction <add>, %164, %cst_61 [1] : vector<8x32xf32> to vector<8xf32>
    %172 = vector.shape_cast %171 : vector<8xf32> to vector<8x1xf32>
    %cst_62 = arith.constant 3.200000e+01 : f32
    %173 = vector.broadcast %cst_62 : f32 to vector<8x1xf32>
    %174 = arith.divf %172, %173 : vector<8x1xf32>
    %175 = vector.broadcast %174 : vector<8x1xf32> to vector<8x32xf32>
    %176 = arith.subf %164, %175 : vector<8x32xf32>
    %177 = arith.mulf %176, %176 : vector<8x32xf32>
    %cst_63 = arith.constant dense<0.000000e+00> : vector<8xf32>
    %178 = vector.multi_reduction <add>, %177, %cst_63 [1] : vector<8x32xf32> to vector<8xf32>
    %179 = vector.shape_cast %178 : vector<8xf32> to vector<8x1xf32>
    %cst_64 = arith.constant 3.200000e+01 : f32
    %180 = vector.broadcast %cst_64 : f32 to vector<8x1xf32>
    %181 = arith.divf %179, %180 : vector<8x1xf32>
    %182 = vector.broadcast %174 : vector<8x1xf32> to vector<8x32xf32>
    %183 = arith.subf %164, %182 : vector<8x32xf32>
    %cst_65 = arith.constant 9.99999974E-6 : f32
    %184 = vector.broadcast %cst_65 : f32 to vector<8x1xf32>
    %185 = arith.addf %181, %184 : vector<8x1xf32>
    %186 = math.rsqrt %185 : vector<8x1xf32>
    %187 = vector.broadcast %186 : vector<8x1xf32> to vector<8x32xf32>
    %188 = arith.mulf %183, %187 : vector<8x32xf32>
    %189 = vector.broadcast %167 : vector<1x32xf32> to vector<8x32xf32>
    %190 = arith.mulf %188, %189 : vector<8x32xf32>
    %191 = vector.broadcast %170 : vector<1x32xf32> to vector<8x32xf32>
    %192 = arith.addf %190, %191 : vector<8x32xf32>
    %c1_i32 = arith.constant 1 : i32
    %193 = arith.truncf %192 : vector<8x32xf32> to vector<8x32xbf16>
    %194 = arith.index_cast %c1_i32 : i32 to index
    %c0_66 = arith.constant 0 : index
    %c0_67 = arith.constant 0 : index
    %195 = vector.load %arg3[%194, %c0_66, %c0_67] : memref<2x32x96xbf16, #tpu.memory_space<vmem>>, vector<1x32x96xbf16>
    %196 = vector.shape_cast %195 : vector<1x32x96xbf16> to vector<32x96xbf16>
    %cst_68 = arith.constant dense<0.000000e+00> : vector<8x96xf32>
    %197 = tpu.matmul %193, %196, %cst_68 {dimension_numbers = #tpu.dot_dimension_numbers<[1], [0], [0], [1], [0, 0, 1, 1], [], []>} : vector<8x32xbf16>, vector<32x96xbf16>, vector<8x96xf32> -> vector<8x96xf32>
    %198 = arith.index_cast %c1_i32 : i32 to index
    %c0_69 = arith.constant 0 : index
    %c0_70 = arith.constant 0 : index
    %199 = vector.load %arg4[%198, %c0_69, %c0_70] : memref<2x1x96xf32, #tpu.memory_space<vmem>>, vector<1x1x96xf32>
    %200 = vector.shape_cast %199 : vector<1x1x96xf32> to vector<1x96xf32>
    %201 = vector.broadcast %200 : vector<1x96xf32> to vector<8x96xf32>
    %202 = arith.addf %197, %201 : vector<8x96xf32>
    %203 = arith.truncf %202 : vector<8x96xf32> to vector<8x96xbf16>
    %204 = vector.extract_strided_slice %203 {offsets = [0, 0], sizes = [8, 8], strides = [1, 1]} : vector<8x96xbf16> to vector<8x8xbf16>
    %205 = vector.extract_strided_slice %203 {offsets = [0, 32], sizes = [8, 8], strides = [1, 1]} : vector<8x96xbf16> to vector<8x8xbf16>
    %206 = vector.extract_strided_slice %203 {offsets = [0, 64], sizes = [8, 8], strides = [1, 1]} : vector<8x96xbf16> to vector<8x8xbf16>
    %cst_71 = arith.constant dense<0.000000e+00> : vector<8x8xf32>
    %207 = tpu.matmul %204, %205, %cst_71 {dimension_numbers = #tpu.dot_dimension_numbers<[1], [1], [0], [0], [0, 0, 1, 0], [], []>} : vector<8x8xbf16>, vector<8x8xbf16>, vector<8x8xf32> -> vector<8x8xf32>
    %cst_72 = arith.constant 0.353553385 : f32
    %208 = vector.broadcast %cst_72 : f32 to vector<8x8xf32>
    %209 = arith.mulf %207, %208 : vector<8x8xf32>
    %210 = vector.broadcast %1 : vector<1x8xf32> to vector<8x8xf32>
    %211 = arith.addf %209, %210 : vector<8x8xf32>
    %cst_73 = arith.constant dense<0xFF800000> : vector<8xf32>
    %212 = vector.multi_reduction <maximumf>, %211, %cst_73 [1] : vector<8x8xf32> to vector<8xf32>
    %213 = vector.shape_cast %212 : vector<8xf32> to vector<8x1xf32>
    %214 = vector.broadcast %213 : vector<8x1xf32> to vector<8x8xf32>
    %215 = arith.subf %211, %214 : vector<8x8xf32>
    %216 = math.exp %215 : vector<8x8xf32>
    %cst_74 = arith.constant dense<0.000000e+00> : vector<8xf32>
    %217 = vector.multi_reduction <add>, %216, %cst_74 [1] : vector<8x8xf32> to vector<8xf32>
    %218 = vector.shape_cast %217 : vector<8xf32> to vector<8x1xf32>
    %219 = vector.broadcast %218 : vector<8x1xf32> to vector<8x8xf32>
    %220 = arith.divf %216, %219 : vector<8x8xf32>
    %221 = arith.truncf %220 : vector<8x8xf32> to vector<8x8xbf16>
    %cst_75 = arith.constant dense<0.000000e+00> : vector<8x8xf32>
    %222 = tpu.matmul %221, %206, %cst_75 {dimension_numbers = #tpu.dot_dimension_numbers<[1], [0], [0], [1], [0, 0, 1, 1], [], []>} : vector<8x8xbf16>, vector<8x8xbf16>, vector<8x8xf32> -> vector<8x8xf32>
    %223 = vector.extract_strided_slice %203 {offsets = [0, 8], sizes = [8, 8], strides = [1, 1]} : vector<8x96xbf16> to vector<8x8xbf16>
    %224 = vector.extract_strided_slice %203 {offsets = [0, 40], sizes = [8, 8], strides = [1, 1]} : vector<8x96xbf16> to vector<8x8xbf16>
    %225 = vector.extract_strided_slice %203 {offsets = [0, 72], sizes = [8, 8], strides = [1, 1]} : vector<8x96xbf16> to vector<8x8xbf16>
    %cst_76 = arith.constant dense<0.000000e+00> : vector<8x8xf32>
    %226 = tpu.matmul %223, %224, %cst_76 {dimension_numbers = #tpu.dot_dimension_numbers<[1], [1], [0], [0], [0, 0, 1, 0], [], []>} : vector<8x8xbf16>, vector<8x8xbf16>, vector<8x8xf32> -> vector<8x8xf32>
    %cst_77 = arith.constant 0.353553385 : f32
    %227 = vector.broadcast %cst_77 : f32 to vector<8x8xf32>
    %228 = arith.mulf %226, %227 : vector<8x8xf32>
    %229 = vector.broadcast %1 : vector<1x8xf32> to vector<8x8xf32>
    %230 = arith.addf %228, %229 : vector<8x8xf32>
    %cst_78 = arith.constant dense<0xFF800000> : vector<8xf32>
    %231 = vector.multi_reduction <maximumf>, %230, %cst_78 [1] : vector<8x8xf32> to vector<8xf32>
    %232 = vector.shape_cast %231 : vector<8xf32> to vector<8x1xf32>
    %233 = vector.broadcast %232 : vector<8x1xf32> to vector<8x8xf32>
    %234 = arith.subf %230, %233 : vector<8x8xf32>
    %235 = math.exp %234 : vector<8x8xf32>
    %cst_79 = arith.constant dense<0.000000e+00> : vector<8xf32>
    %236 = vector.multi_reduction <add>, %235, %cst_79 [1] : vector<8x8xf32> to vector<8xf32>
    %237 = vector.shape_cast %236 : vector<8xf32> to vector<8x1xf32>
    %238 = vector.broadcast %237 : vector<8x1xf32> to vector<8x8xf32>
    %239 = arith.divf %235, %238 : vector<8x8xf32>
    %240 = arith.truncf %239 : vector<8x8xf32> to vector<8x8xbf16>
    %cst_80 = arith.constant dense<0.000000e+00> : vector<8x8xf32>
    %241 = tpu.matmul %240, %225, %cst_80 {dimension_numbers = #tpu.dot_dimension_numbers<[1], [0], [0], [1], [0, 0, 1, 1], [], []>} : vector<8x8xbf16>, vector<8x8xbf16>, vector<8x8xf32> -> vector<8x8xf32>
    %242 = vector.extract_strided_slice %203 {offsets = [0, 16], sizes = [8, 8], strides = [1, 1]} : vector<8x96xbf16> to vector<8x8xbf16>
    %243 = vector.extract_strided_slice %203 {offsets = [0, 48], sizes = [8, 8], strides = [1, 1]} : vector<8x96xbf16> to vector<8x8xbf16>
    %244 = vector.extract_strided_slice %203 {offsets = [0, 80], sizes = [8, 8], strides = [1, 1]} : vector<8x96xbf16> to vector<8x8xbf16>
    %cst_81 = arith.constant dense<0.000000e+00> : vector<8x8xf32>
    %245 = tpu.matmul %242, %243, %cst_81 {dimension_numbers = #tpu.dot_dimension_numbers<[1], [1], [0], [0], [0, 0, 1, 0], [], []>} : vector<8x8xbf16>, vector<8x8xbf16>, vector<8x8xf32> -> vector<8x8xf32>
    %cst_82 = arith.constant 0.353553385 : f32
    %246 = vector.broadcast %cst_82 : f32 to vector<8x8xf32>
    %247 = arith.mulf %245, %246 : vector<8x8xf32>
    %248 = vector.broadcast %1 : vector<1x8xf32> to vector<8x8xf32>
    %249 = arith.addf %247, %248 : vector<8x8xf32>
    %cst_83 = arith.constant dense<0xFF800000> : vector<8xf32>
    %250 = vector.multi_reduction <maximumf>, %249, %cst_83 [1] : vector<8x8xf32> to vector<8xf32>
    %251 = vector.shape_cast %250 : vector<8xf32> to vector<8x1xf32>
    %252 = vector.broadcast %251 : vector<8x1xf32> to vector<8x8xf32>
    %253 = arith.subf %249, %252 : vector<8x8xf32>
    %254 = math.exp %253 : vector<8x8xf32>
    %cst_84 = arith.constant dense<0.000000e+00> : vector<8xf32>
    %255 = vector.multi_reduction <add>, %254, %cst_84 [1] : vector<8x8xf32> to vector<8xf32>
    %256 = vector.shape_cast %255 : vector<8xf32> to vector<8x1xf32>
    %257 = vector.broadcast %256 : vector<8x1xf32> to vector<8x8xf32>
    %258 = arith.divf %254, %257 : vector<8x8xf32>
    %259 = arith.truncf %258 : vector<8x8xf32> to vector<8x8xbf16>
    %cst_85 = arith.constant dense<0.000000e+00> : vector<8x8xf32>
    %260 = tpu.matmul %259, %244, %cst_85 {dimension_numbers = #tpu.dot_dimension_numbers<[1], [0], [0], [1], [0, 0, 1, 1], [], []>} : vector<8x8xbf16>, vector<8x8xbf16>, vector<8x8xf32> -> vector<8x8xf32>
    %261 = vector.extract_strided_slice %203 {offsets = [0, 24], sizes = [8, 8], strides = [1, 1]} : vector<8x96xbf16> to vector<8x8xbf16>
    %262 = vector.extract_strided_slice %203 {offsets = [0, 56], sizes = [8, 8], strides = [1, 1]} : vector<8x96xbf16> to vector<8x8xbf16>
    %263 = vector.extract_strided_slice %203 {offsets = [0, 88], sizes = [8, 8], strides = [1, 1]} : vector<8x96xbf16> to vector<8x8xbf16>
    %cst_86 = arith.constant dense<0.000000e+00> : vector<8x8xf32>
    %264 = tpu.matmul %261, %262, %cst_86 {dimension_numbers = #tpu.dot_dimension_numbers<[1], [1], [0], [0], [0, 0, 1, 0], [], []>} : vector<8x8xbf16>, vector<8x8xbf16>, vector<8x8xf32> -> vector<8x8xf32>
    %cst_87 = arith.constant 0.353553385 : f32
    %265 = vector.broadcast %cst_87 : f32 to vector<8x8xf32>
    %266 = arith.mulf %264, %265 : vector<8x8xf32>
    %267 = vector.broadcast %1 : vector<1x8xf32> to vector<8x8xf32>
    %268 = arith.addf %266, %267 : vector<8x8xf32>
    %cst_88 = arith.constant dense<0xFF800000> : vector<8xf32>
    %269 = vector.multi_reduction <maximumf>, %268, %cst_88 [1] : vector<8x8xf32> to vector<8xf32>
    %270 = vector.shape_cast %269 : vector<8xf32> to vector<8x1xf32>
    %271 = vector.broadcast %270 : vector<8x1xf32> to vector<8x8xf32>
    %272 = arith.subf %268, %271 : vector<8x8xf32>
    %273 = math.exp %272 : vector<8x8xf32>
    %cst_89 = arith.constant dense<0.000000e+00> : vector<8xf32>
    %274 = vector.multi_reduction <add>, %273, %cst_89 [1] : vector<8x8xf32> to vector<8xf32>
    %275 = vector.shape_cast %274 : vector<8xf32> to vector<8x1xf32>
    %276 = vector.broadcast %275 : vector<8x1xf32> to vector<8x8xf32>
    %277 = arith.divf %273, %276 : vector<8x8xf32>
    %278 = arith.truncf %277 : vector<8x8xf32> to vector<8x8xbf16>
    %cst_90 = arith.constant dense<0.000000e+00> : vector<8x8xf32>
    %279 = tpu.matmul %278, %263, %cst_90 {dimension_numbers = #tpu.dot_dimension_numbers<[1], [0], [0], [1], [0, 0, 1, 1], [], []>} : vector<8x8xbf16>, vector<8x8xbf16>, vector<8x8xf32> -> vector<8x8xf32>
    %280 = tpu.concatenate %222, %241, %260, %279 in 1 : vector<8x8xf32>, vector<8x8xf32>, vector<8x8xf32>, vector<8x8xf32> -> vector<8x32xf32>
    %281 = arith.truncf %280 : vector<8x32xf32> to vector<8x32xbf16>
    %282 = arith.index_cast %c1_i32 : i32 to index
    %c0_91 = arith.constant 0 : index
    %c0_92 = arith.constant 0 : index
    %283 = vector.load %arg5[%282, %c0_91, %c0_92] : memref<2x32x32xbf16, #tpu.memory_space<vmem>>, vector<1x32x32xbf16>
    %284 = vector.shape_cast %283 : vector<1x32x32xbf16> to vector<32x32xbf16>
    %cst_93 = arith.constant dense<0.000000e+00> : vector<8x32xf32>
    %285 = tpu.matmul %281, %284, %cst_93 {dimension_numbers = #tpu.dot_dimension_numbers<[1], [0], [0], [1], [0, 0, 1, 1], [], []>} : vector<8x32xbf16>, vector<32x32xbf16>, vector<8x32xf32> -> vector<8x32xf32>
    %286 = arith.index_cast %c1_i32 : i32 to index
    %c0_94 = arith.constant 0 : index
    %c0_95 = arith.constant 0 : index
    %287 = vector.load %arg6[%286, %c0_94, %c0_95] : memref<2x1x32xf32, #tpu.memory_space<vmem>>, vector<1x1x32xf32>
    %288 = vector.shape_cast %287 : vector<1x1x32xf32> to vector<1x32xf32>
    %289 = vector.broadcast %288 : vector<1x32xf32> to vector<8x32xf32>
    %290 = arith.addf %285, %289 : vector<8x32xf32>
    %291 = arith.addf %192, %290 : vector<8x32xf32>
    %292 = arith.index_cast %c1_i32 : i32 to index
    %c0_96 = arith.constant 0 : index
    %c0_97 = arith.constant 0 : index
    %293 = vector.load %arg7[%292, %c0_96, %c0_97] : memref<2x1x32xf32, #tpu.memory_space<vmem>>, vector<1x1x32xf32>
    %294 = vector.shape_cast %293 : vector<1x1x32xf32> to vector<1x32xf32>
    %295 = arith.index_cast %c1_i32 : i32 to index
    %c0_98 = arith.constant 0 : index
    %c0_99 = arith.constant 0 : index
    %296 = vector.load %arg8[%295, %c0_98, %c0_99] : memref<2x1x32xf32, #tpu.memory_space<vmem>>, vector<1x1x32xf32>
    %297 = vector.shape_cast %296 : vector<1x1x32xf32> to vector<1x32xf32>
    %cst_100 = arith.constant dense<0.000000e+00> : vector<8xf32>
    %298 = vector.multi_reduction <add>, %291, %cst_100 [1] : vector<8x32xf32> to vector<8xf32>
    %299 = vector.shape_cast %298 : vector<8xf32> to vector<8x1xf32>
    %cst_101 = arith.constant 3.200000e+01 : f32
    %300 = vector.broadcast %cst_101 : f32 to vector<8x1xf32>
    %301 = arith.divf %299, %300 : vector<8x1xf32>
    %302 = vector.broadcast %301 : vector<8x1xf32> to vector<8x32xf32>
    %303 = arith.subf %291, %302 : vector<8x32xf32>
    %304 = arith.mulf %303, %303 : vector<8x32xf32>
    %cst_102 = arith.constant dense<0.000000e+00> : vector<8xf32>
    %305 = vector.multi_reduction <add>, %304, %cst_102 [1] : vector<8x32xf32> to vector<8xf32>
    %306 = vector.shape_cast %305 : vector<8xf32> to vector<8x1xf32>
    %cst_103 = arith.constant 3.200000e+01 : f32
    %307 = vector.broadcast %cst_103 : f32 to vector<8x1xf32>
    %308 = arith.divf %306, %307 : vector<8x1xf32>
    %309 = vector.broadcast %301 : vector<8x1xf32> to vector<8x32xf32>
    %310 = arith.subf %291, %309 : vector<8x32xf32>
    %cst_104 = arith.constant 9.99999974E-6 : f32
    %311 = vector.broadcast %cst_104 : f32 to vector<8x1xf32>
    %312 = arith.addf %308, %311 : vector<8x1xf32>
    %313 = math.rsqrt %312 : vector<8x1xf32>
    %314 = vector.broadcast %313 : vector<8x1xf32> to vector<8x32xf32>
    %315 = arith.mulf %310, %314 : vector<8x32xf32>
    %316 = vector.broadcast %294 : vector<1x32xf32> to vector<8x32xf32>
    %317 = arith.mulf %315, %316 : vector<8x32xf32>
    %318 = vector.broadcast %297 : vector<1x32xf32> to vector<8x32xf32>
    %319 = arith.addf %317, %318 : vector<8x32xf32>
    %320 = arith.truncf %319 : vector<8x32xf32> to vector<8x32xbf16>
    %321 = arith.index_cast %c1_i32 : i32 to index
    %c0_105 = arith.constant 0 : index
    %c0_106 = arith.constant 0 : index
    %322 = vector.load %arg9[%321, %c0_105, %c0_106] : memref<2x32x128xbf16, #tpu.memory_space<vmem>>, vector<1x32x128xbf16>
    %323 = vector.shape_cast %322 : vector<1x32x128xbf16> to vector<32x128xbf16>
    %cst_107 = arith.constant dense<0.000000e+00> : vector<8x128xf32>
    %324 = tpu.matmul %320, %323, %cst_107 {dimension_numbers = #tpu.dot_dimension_numbers<[1], [0], [0], [1], [0, 0, 1, 1], [], []>} : vector<8x32xbf16>, vector<32x128xbf16>, vector<8x128xf32> -> vector<8x128xf32>
    %325 = arith.index_cast %c1_i32 : i32 to index
    %c0_108 = arith.constant 0 : index
    %c0_109 = arith.constant 0 : index
    %326 = vector.load %arg10[%325, %c0_108, %c0_109] : memref<2x1x128xf32, #tpu.memory_space<vmem>>, vector<1x1x128xf32>
    %327 = vector.shape_cast %326 : vector<1x1x128xf32> to vector<1x128xf32>
    %328 = vector.broadcast %327 : vector<1x128xf32> to vector<8x128xf32>
    %329 = arith.addf %324, %328 : vector<8x128xf32>
    %330 = arith.mulf %329, %329 : vector<8x128xf32>
    %331 = arith.mulf %329, %330 : vector<8x128xf32>
    %cst_110 = arith.constant 4.471500e-02 : f32
    %332 = vector.broadcast %cst_110 : f32 to vector<8x128xf32>
    %333 = arith.mulf %332, %331 : vector<8x128xf32>
    %334 = arith.addf %329, %333 : vector<8x128xf32>
    %cst_111 = arith.constant 0.797884583 : f32
    %335 = vector.broadcast %cst_111 : f32 to vector<8x128xf32>
    %336 = arith.mulf %335, %334 : vector<8x128xf32>
    %337 = math.tanh %336 : vector<8x128xf32>
    %cst_112 = arith.constant 1.000000e+00 : f32
    %338 = vector.broadcast %cst_112 : f32 to vector<8x128xf32>
    %339 = arith.addf %338, %337 : vector<8x128xf32>
    %cst_113 = arith.constant 5.000000e-01 : f32
    %340 = vector.broadcast %cst_113 : f32 to vector<8x128xf32>
    %341 = arith.mulf %340, %339 : vector<8x128xf32>
    %342 = arith.mulf %329, %341 : vector<8x128xf32>
    %343 = arith.truncf %342 : vector<8x128xf32> to vector<8x128xbf16>
    %344 = arith.index_cast %c1_i32 : i32 to index
    %c0_114 = arith.constant 0 : index
    %c0_115 = arith.constant 0 : index
    %345 = vector.load %arg11[%344, %c0_114, %c0_115] : memref<2x128x32xbf16, #tpu.memory_space<vmem>>, vector<1x128x32xbf16>
    %346 = vector.shape_cast %345 : vector<1x128x32xbf16> to vector<128x32xbf16>
    %cst_116 = arith.constant dense<0.000000e+00> : vector<8x32xf32>
    %347 = tpu.matmul %343, %346, %cst_116 {dimension_numbers = #tpu.dot_dimension_numbers<[1], [0], [0], [1], [0, 0, 1, 1], [], []>} : vector<8x128xbf16>, vector<128x32xbf16>, vector<8x32xf32> -> vector<8x32xf32>
    %348 = arith.index_cast %c1_i32 : i32 to index
    %c0_117 = arith.constant 0 : index
    %c0_118 = arith.constant 0 : index
    %349 = vector.load %arg12[%348, %c0_117, %c0_118] : memref<2x1x32xf32, #tpu.memory_space<vmem>>, vector<1x1x32xf32>
    %350 = vector.shape_cast %349 : vector<1x1x32xf32> to vector<1x32xf32>
    %351 = vector.broadcast %350 : vector<1x32xf32> to vector<8x32xf32>
    %352 = arith.addf %347, %351 : vector<8x32xf32>
    %353 = arith.addf %319, %352 : vector<8x32xf32>
    %354 = arith.index_cast %c1_i32 : i32 to index
    %c0_119 = arith.constant 0 : index
    %c0_120 = arith.constant 0 : index
    %355 = vector.load %arg13[%354, %c0_119, %c0_120] : memref<2x1x32xf32, #tpu.memory_space<vmem>>, vector<1x1x32xf32>
    %356 = vector.shape_cast %355 : vector<1x1x32xf32> to vector<1x32xf32>
    %357 = arith.index_cast %c1_i32 : i32 to index
    %c0_121 = arith.constant 0 : index
    %c0_122 = arith.constant 0 : index
    %358 = vector.load %arg14[%357, %c0_121, %c0_122] : memref<2x1x32xf32, #tpu.memory_space<vmem>>, vector<1x1x32xf32>
    %359 = vector.shape_cast %358 : vector<1x1x32xf32> to vector<1x32xf32>
    %cst_123 = arith.constant dense<0.000000e+00> : vector<8xf32>
    %360 = vector.multi_reduction <add>, %353, %cst_123 [1] : vector<8x32xf32> to vector<8xf32>
    %361 = vector.shape_cast %360 : vector<8xf32> to vector<8x1xf32>
    %cst_124 = arith.constant 3.200000e+01 : f32
    %362 = vector.broadcast %cst_124 : f32 to vector<8x1xf32>
    %363 = arith.divf %361, %362 : vector<8x1xf32>
    %364 = vector.broadcast %363 : vector<8x1xf32> to vector<8x32xf32>
    %365 = arith.subf %353, %364 : vector<8x32xf32>
    %366 = arith.mulf %365, %365 : vector<8x32xf32>
    %cst_125 = arith.constant dense<0.000000e+00> : vector<8xf32>
    %367 = vector.multi_reduction <add>, %366, %cst_125 [1] : vector<8x32xf32> to vector<8xf32>
    %368 = vector.shape_cast %367 : vector<8xf32> to vector<8x1xf32>
    %cst_126 = arith.constant 3.200000e+01 : f32
    %369 = vector.broadcast %cst_126 : f32 to vector<8x1xf32>
    %370 = arith.divf %368, %369 : vector<8x1xf32>
    %371 = vector.broadcast %363 : vector<8x1xf32> to vector<8x32xf32>
    %372 = arith.subf %353, %371 : vector<8x32xf32>
    %cst_127 = arith.constant 9.99999974E-6 : f32
    %373 = vector.broadcast %cst_127 : f32 to vector<8x1xf32>
    %374 = arith.addf %370, %373 : vector<8x1xf32>
    %375 = math.rsqrt %374 : vector<8x1xf32>
    %376 = vector.broadcast %375 : vector<8x1xf32> to vector<8x32xf32>
    %377 = arith.mulf %372, %376 : vector<8x32xf32>
    %378 = vector.broadcast %356 : vector<1x32xf32> to vector<8x32xf32>
    %379 = arith.mulf %377, %378 : vector<8x32xf32>
    %380 = vector.broadcast %359 : vector<1x32xf32> to vector<8x32xf32>
    %381 = arith.addf %379, %380 : vector<8x32xf32>
    %c2_i32 = arith.constant 2 : i32
    %382 = arith.truncf %381 : vector<8x32xf32> to vector<8x32xbf16>
    %c0_128 = arith.constant 0 : index
    %c0_129 = arith.constant 0 : index
    %383 = vector.load %arg17[%c0_128, %c0_129] : memref<32x128xbf16, #tpu.memory_space<vmem>>, vector<32x128xbf16>
    %cst_130 = arith.constant dense<0.000000e+00> : vector<8x128xf32>
    %384 = tpu.matmul %382, %383, %cst_130 {dimension_numbers = #tpu.dot_dimension_numbers<[1], [0], [0], [1], [0, 0, 1, 1], [], []>} : vector<8x32xbf16>, vector<32x128xbf16>, vector<8x128xf32> -> vector<8x128xf32>
    %c0_131 = arith.constant 0 : index
    %c0_132 = arith.constant 0 : index
    %385 = vector.load %arg18[%c0_131, %c0_132] : memref<1x128xf32, #tpu.memory_space<vmem>>, vector<1x128xf32>
    %386 = vector.broadcast %385 : vector<1x128xf32> to vector<8x128xf32>
    %387 = arith.addf %384, %386 : vector<8x128xf32>
    %cst_133 = arith.constant dense<0xFF800000> : vector<8xf32>
    %388 = vector.multi_reduction <maximumf>, %387, %cst_133 [1] : vector<8x128xf32> to vector<8xf32>
    %389 = vector.shape_cast %388 : vector<8xf32> to vector<8x1xf32>
    %390 = vector.broadcast %389 : vector<8x1xf32> to vector<8x128xf32>
    %391 = arith.subf %387, %390 : vector<8x128xf32>
    %392 = math.exp %391 : vector<8x128xf32>
    %cst_134 = arith.constant dense<0.000000e+00> : vector<8xf32>
    %393 = vector.multi_reduction <add>, %392, %cst_134 [1] : vector<8x128xf32> to vector<8xf32>
    %394 = vector.shape_cast %393 : vector<8xf32> to vector<8x1xf32>
    %395 = math.log %394 : vector<8x1xf32>
    %396 = vector.broadcast %395 : vector<8x1xf32> to vector<8x128xf32>
    %397 = arith.subf %391, %396 : vector<8x128xf32>
    %c0_135 = arith.constant 0 : index
    %c0_136 = arith.constant 0 : index
    %c0_137 = arith.constant 0 : index
    %398 = vector.load %arg20[%c0_135, %c0_136, %c0_137] : memref<1x8x128xf32, #tpu.memory_space<vmem>>, vector<1x8x128xf32>
    %399 = vector.shape_cast %398 : vector<1x8x128xf32> to vector<8x128xf32>
    %400 = vector.shape_cast %397 : vector<8x128xf32> to vector<1x8x128xf32>
    tpu.vector_store %arg20[%c0_135, %c0_136, %c0_137], %400 {strides = array<i32>} : memref<1x8x128xf32, #tpu.memory_space<vmem>>, vector<1x8x128xf32>,
    %401 = vector.extract_strided_slice %382 {offsets = [0, 0], sizes = [1, 32], strides = [1, 1]} : vector<8x32xbf16> to vector<1x32xbf16>
    %c0_138 = arith.constant 0 : index
    %c0_139 = arith.constant 0 : index
    %402 = vector.load %arg15[%c0_138, %c0_139] : memref<32x128xbf16, #tpu.memory_space<vmem>>, vector<32x128xbf16>
    %cst_140 = arith.constant dense<0.000000e+00> : vector<1x128xf32>
    %403 = tpu.matmul %401, %402, %cst_140 {dimension_numbers = #tpu.dot_dimension_numbers<[1], [0], [0], [1], [0, 0, 1, 1], [], []>} : vector<1x32xbf16>, vector<32x128xbf16>, vector<1x128xf32> -> vector<1x128xf32>
    %c0_141 = arith.constant 0 : index
    %c0_142 = arith.constant 0 : index
    %404 = vector.load %arg16[%c0_141, %c0_142] : memref<1x128xf32, #tpu.memory_space<vmem>>, vector<1x128xf32>
    %405 = arith.addf %403, %404 : vector<1x128xf32>
    %cst_143 = arith.constant dense<0xFF800000> : vector<1xf32>
    %406 = vector.multi_reduction <maximumf>, %405, %cst_143 [1] : vector<1x128xf32> to vector<1xf32>
    %407 = vector.shape_cast %406 : vector<1xf32> to vector<1x1xf32>
    %408 = vector.broadcast %407 : vector<1x1xf32> to vector<1x128xf32>
    %409 = arith.subf %405, %408 : vector<1x128xf32>
    %410 = math.exp %409 : vector<1x128xf32>
    %cst_144 = arith.constant dense<0.000000e+00> : vector<1xf32>
    %411 = vector.multi_reduction <add>, %410, %cst_144 [1] : vector<1x128xf32> to vector<1xf32>
    %412 = vector.shape_cast %411 : vector<1xf32> to vector<1x1xf32>
    %413 = math.log %412 : vector<1x1xf32>
    %414 = vector.broadcast %413 : vector<1x1xf32> to vector<1x128xf32>
    %415 = arith.subf %409, %414 : vector<1x128xf32>
    %c0_145 = arith.constant 0 : index
    %c0_146 = arith.constant 0 : index
    %c0_147 = arith.constant 0 : index
    %416 = vector.load %arg19[%c0_145, %c0_146, %c0_147] : memref<1x1x128xf32, #tpu.memory_space<vmem>>, vector<1x1x128xf32>
    %417 = vector.shape_cast %416 : vector<1x1x128xf32> to vector<1x128xf32>
    %418 = vector.shape_cast %415 : vector<1x128xf32> to vector<1x1x128xf32>
    tpu.vector_store %arg19[%c0_145, %c0_146, %c0_147], %418 {strides = array<i32>} : memref<1x1x128xf32, #tpu.memory_space<vmem>>, vector<1x1x128xf32>,
    return
  }
  func.func @transform_0(%arg0: i32) -> (i32, i32, i32) {
    %c0_i32 = arith.constant 0 : i32
    %c0_i32_0 = arith.constant 0 : i32
    %c0_i32_1 = arith.constant 0 : i32
    return %arg0, %c0_i32, %c0_i32_0 : i32, i32, i32
  }
  func.func @transform_1(%arg0: i32) -> (i32, i32, i32) {
    %c0_i32 = arith.constant 0 : i32
    %c0_i32_0 = arith.constant 0 : i32
    %c0_i32_1 = arith.constant 0 : i32
    return %arg0, %c0_i32, %c0_i32_0 : i32, i32, i32
  }
  func.func @transform_2(%arg0: i32) -> (i32, i32, i32) {
    %c0_i32 = arith.constant 0 : i32
    %c0_i32_0 = arith.constant 0 : i32
    %c0_i32_1 = arith.constant 0 : i32
    %c0_i32_2 = arith.constant 0 : i32
    return %c0_i32, %c0_i32_0, %c0_i32_1 : i32, i32, i32
  }
  func.func @transform_3(%arg0: i32) -> (i32, i32, i32) {
    %c0_i32 = arith.constant 0 : i32
    %c0_i32_0 = arith.constant 0 : i32
    %c0_i32_1 = arith.constant 0 : i32
    %c0_i32_2 = arith.constant 0 : i32
    return %c0_i32, %c0_i32_0, %c0_i32_1 : i32, i32, i32
  }
  func.func @transform_4(%arg0: i32) -> (i32, i32, i32) {
    %c0_i32 = arith.constant 0 : i32
    %c0_i32_0 = arith.constant 0 : i32
    %c0_i32_1 = arith.constant 0 : i32
    %c0_i32_2 = arith.constant 0 : i32
    return %c0_i32, %c0_i32_0, %c0_i32_1 : i32, i32, i32
  }
  func.func @transform_5(%arg0: i32) -> (i32, i32, i32) {
    %c0_i32 = arith.constant 0 : i32
    %c0_i32_0 = arith.constant 0 : i32
    %c0_i32_1 = arith.constant 0 : i32
    %c0_i32_2 = arith.constant 0 : i32
    return %c0_i32, %c0_i32_0, %c0_i32_1 : i32, i32, i32
  }
  func.func @transform_6(%arg0: i32) -> (i32, i32, i32) {
    %c0_i32 = arith.constant 0 : i32
    %c0_i32_0 = arith.constant 0 : i32
    %c0_i32_1 = arith.constant 0 : i32
    %c0_i32_2 = arith.constant 0 : i32
    return %c0_i32, %c0_i32_0, %c0_i32_1 : i32, i32, i32
  }
  func.func @transform_7(%arg0: i32) -> (i32, i32, i32) {
    %c0_i32 = arith.constant 0 : i32
    %c0_i32_0 = arith.constant 0 : i32
    %c0_i32_1 = arith.constant 0 : i32
    %c0_i32_2 = arith.constant 0 : i32
    return %c0_i32, %c0_i32_0, %c0_i32_1 : i32, i32, i32
  }
  func.func @transform_8(%arg0: i32) -> (i32, i32, i32) {
    %c0_i32 = arith.constant 0 : i32
    %c0_i32_0 = arith.constant 0 : i32
    %c0_i32_1 = arith.constant 0 : i32
    %c0_i32_2 = arith.constant 0 : i32
    return %c0_i32, %c0_i32_0, %c0_i32_1 : i32, i32, i32
  }
  func.func @transform_9(%arg0: i32) -> (i32, i32, i32) {
    %c0_i32 = arith.constant 0 : i32
    %c0_i32_0 = arith.constant 0 : i32
    %c0_i32_1 = arith.constant 0 : i32
    %c0_i32_2 = arith.constant 0 : i32
    return %c0_i32, %c0_i32_0, %c0_i32_1 : i32, i32, i32
  }
  func.func @transform_10(%arg0: i32) -> (i32, i32, i32) {
    %c0_i32 = arith.constant 0 : i32
    %c0_i32_0 = arith.constant 0 : i32
    %c0_i32_1 = arith.constant 0 : i32
    %c0_i32_2 = arith.constant 0 : i32
    return %c0_i32, %c0_i32_0, %c0_i32_1 : i32, i32, i32
  }
  func.func @transform_11(%arg0: i32) -> (i32, i32, i32) {
    %c0_i32 = arith.constant 0 : i32
    %c0_i32_0 = arith.constant 0 : i32
    %c0_i32_1 = arith.constant 0 : i32
    %c0_i32_2 = arith.constant 0 : i32
    return %c0_i32, %c0_i32_0, %c0_i32_1 : i32, i32, i32
  }
  func.func @transform_12(%arg0: i32) -> (i32, i32, i32) {
    %c0_i32 = arith.constant 0 : i32
    %c0_i32_0 = arith.constant 0 : i32
    %c0_i32_1 = arith.constant 0 : i32
    %c0_i32_2 = arith.constant 0 : i32
    return %c0_i32, %c0_i32_0, %c0_i32_1 : i32, i32, i32
  }
  func.func @transform_13(%arg0: i32) -> (i32, i32, i32) {
    %c0_i32 = arith.constant 0 : i32
    %c0_i32_0 = arith.constant 0 : i32
    %c0_i32_1 = arith.constant 0 : i32
    %c0_i32_2 = arith.constant 0 : i32
    return %c0_i32, %c0_i32_0, %c0_i32_1 : i32, i32, i32
  }
  func.func @transform_14(%arg0: i32) -> (i32, i32) {
    %c0_i32 = arith.constant 0 : i32
    %c0_i32_0 = arith.constant 0 : i32
    %c0_i32_1 = arith.constant 0 : i32
    return %c0_i32, %c0_i32_0 : i32, i32
  }
  func.func @transform_15(%arg0: i32) -> (i32, i32) {
    %c0_i32 = arith.constant 0 : i32
    %c0_i32_0 = arith.constant 0 : i32
    %c0_i32_1 = arith.constant 0 : i32
    return %c0_i32, %c0_i32_0 : i32, i32
  }
  func.func @transform_16(%arg0: i32) -> (i32, i32) {
    %c0_i32 = arith.constant 0 : i32
    %c0_i32_0 = arith.constant 0 : i32
    %c0_i32_1 = arith.constant 0 : i32
    return %c0_i32, %c0_i32_0 : i32, i32
  }
  func.func @transform_17(%arg0: i32) -> (i32, i32) {
    %c0_i32 = arith.constant 0 : i32
    %c0_i32_0 = arith.constant 0 : i32
    %c0_i32_1 = arith.constant 0 : i32
    return %c0_i32, %c0_i32_0 : i32, i32
  }
  func.func @transform_18(%arg0: i32) -> (i32, i32, i32) {
    %c0_i32 = arith.constant 0 : i32
    %c0_i32_0 = arith.constant 0 : i32
    %c0_i32_1 = arith.constant 0 : i32
    return %arg0, %c0_i32, %c0_i32_0 : i32, i32, i32
  }
  func.func @transform_19(%arg0: i32) -> (i32, i32, i32) {
    %c0_i32 = arith.constant 0 : i32
    %c0_i32_0 = arith.constant 0 : i32
    %c0_i32_1 = arith.constant 0 : i32
    return %arg0, %c0_i32, %c0_i32_0 : i32, i32, i32
  }
}

</mosaic_0001>

<llo_original>
// kernel: bert_lm_forward.1
$region0: #{bert_lm_forward.1}
  #allocation0 [shape = 'u32[]', space=smem, size = 0x4, offset = 0x4, fixed_abs, tag = 'smem constant byte address 0x4 - core index']
  #allocation1 [shape = 'u32[144,128]{1,0:T(1,128)}', space=vmem, size = 0x12000, scoped, tag = 'internal scratch']
  %s0 = inlined_call_operand.vmem [shape: f32[2,8,32], index: 0, kind: input, shape index: {}]
  %s1 = inlined_call_operand.vmem [shape: f32[2,1,8], index: 1, kind: input, shape index: {}]
  %s2 = inlined_call_operand.vmem [shape: bf16[2,32,96], index: 2, kind: input, shape index: {}]
  %s3 = inlined_call_operand.vmem [shape: f32[2,1,96], index: 3, kind: input, shape index: {}]
  %s4 = inlined_call_operand.vmem [shape: bf16[2,32,32], index: 4, kind: input, shape index: {}]
  %s5 = inlined_call_operand.vmem [shape: f32[2,1,32], index: 5, kind: input, shape index: {}]
  %s6 = inlined_call_operand.vmem [shape: f32[2,1,32], index: 6, kind: input, shape index: {}]
  %s7 = inlined_call_operand.vmem [shape: f32[2,1,32], index: 7, kind: input, shape index: {}]
  %s8 = inlined_call_operand.vmem [shape: bf16[2,32,128], index: 8, kind: input, shape index: {}]
  %s9 = inlined_call_operand.vmem [shape: f32[2,1,128], index: 9, kind: input, shape index: {}]
  %s10 = inlined_call_operand.vmem [shape: bf16[2,128,32], index: 10, kind: input, shape index: {}]
  %s11 = inlined_call_operand.vmem [shape: f32[2,1,32], index: 11, kind: input, shape index: {}]
  %s12 = inlined_call_operand.vmem [shape: f32[2,1,32], index: 12, kind: input, shape index: {}]
  %s13 = inlined_call_operand.vmem [shape: f32[2,1,32], index: 13, kind: input, shape index: {}]
  %s14 = inlined_call_operand.vmem [shape: bf16[32,128], index: 14, kind: input, shape index: {}]
  %s15 = inlined_call_operand.vmem [shape: f32[1,128], index: 15, kind: input, shape index: {}]
  %s16 = inlined_call_operand.vmem [shape: bf16[32,128], index: 16, kind: input, shape index: {}]
  %s17 = inlined_call_operand.vmem [shape: f32[1,128], index: 17, kind: input, shape index: {}]
  %s18 = inlined_call_operand.hbm [shape: f32[2,1,128], index: 18, kind: output, shape index: {0}]
  %s19 = inlined_call_operand.hbm [shape: f32[2,8,128], index: 19, kind: output, shape index: {1}]
  %20 = xla_tuple %s18, %s19
  %s21 = sld [smem:[#allocation0]]
  $region113: #{bert_lm_forward.1} parent=0
    _
  %s23 = ssub.s32 1, %s21
  %s24 = scalar_select 0, %s23, %s21
  $region1: #{bert_lm_forward.1} parent=0
    #allocation2 [shape = 'u8[1024]{0}', space=vmem, size = 0x400, scoped, tag = 'output window, operand 0']
    #allocation3 [shape = 's32[2]{0}', space=sflag, size = 0x8, scoped, tag = 'scoped memory for bert_lm_forward.1']
    #allocation4 [shape = 'u8[8192]{0}', space=vmem, size = 0x2000, scoped, tag = 'output window, operand 1']
    #allocation5 [shape = 's32[2]{0}', space=sflag, size = 0x8, scoped, tag = 'scoped memory for bert_lm_forward.1']
    %25 = vsyncpa [#allocation3], 0
    %s26 = scalar_lea.sflag [#allocation3], 1
    %27 = vsyncpa %s26, 0
    %28 = vsyncpa [#allocation5], 0
    %s29 = scalar_lea.sflag [#allocation5], 1
    %30 = vsyncpa %s29, 0
    loop: start=0, step=1, limit=4
    $region2: #{bert_lm_forward.1} parent=1 // loop_pre_header
      _
    $region3: #{bert_lm_forward.1} parent=1 // loop_header
      %s32 = sphi 0, %s36
      %p33 = scmp.ge.s32.totalorder %s32, 4
      %s42 = sphi 0, %s44
      %s45 = sphi 0, %s42
      %s46 = sphi 0, %s45
      %s62 = sphi 0, %s46
      %s68 = sphi 0, %s70
      %s71 = sphi 0, %s68
      %s72 = sphi 0, %s71
      %s88 = sphi 0, %s72
      %s92 = sphi 0, %s92
      %s94 = sphi 0, %s92
      %s95 = sphi 0, %s94
      %s109 = sphi 0, %s95
      %s113 = sphi 0, %s113
      %s115 = sphi 0, %s113
      %s116 = sphi 0, %s115
      %s130 = sphi 0, %s116
      %s134 = sphi 0, %s134
      %s136 = sphi 0, %s134
      %s137 = sphi 0, %s136
      %s151 = sphi 0, %s137
      %s155 = sphi 0, %s155
      %s157 = sphi 0, %s155
      %s158 = sphi 0, %s157
      %s172 = sphi 0, %s158
      %s176 = sphi 0, %s176
      %s178 = sphi 0, %s176
      %s179 = sphi 0, %s178
      %s193 = sphi 0, %s179
      %s197 = sphi 0, %s197
      %s199 = sphi 0, %s197
      %s200 = sphi 0, %s199
      %s214 = sphi 0, %s200
      %s218 = sphi 0, %s218
      %s220 = sphi 0, %s218
      %s221 = sphi 0, %s220
      %s235 = sphi 0, %s221
      %s239 = sphi 0, %s239
      %s241 = sphi 0, %s239
      %s242 = sphi 0, %s241
      %s256 = sphi 0, %s242
      %s260 = sphi 0, %s260
      %s262 = sphi 0, %s260
      %s263 = sphi 0, %s262
      %s277 = sphi 0, %s263
      %s281 = sphi 0, %s281
      %s283 = sphi 0, %s281
      %s284 = sphi 0, %s283
      %s298 = sphi 0, %s284
      %s302 = sphi 0, %s302
      %s304 = sphi 0, %s302
      %s305 = sphi 0, %s304
      %s319 = sphi 0, %s305
      %s323 = sphi 0, %s323
      %s325 = sphi 0, %s323
      %s326 = sphi 0, %s325
      %s340 = sphi 0, %s326
      %s344 = sphi 0, %s344
      %s346 = sphi 0, %s344
      %s347 = sphi 0, %s346
      %s361 = sphi 0, %s347
      %s365 = sphi 0, %s365
      %s367 = sphi 0, %s365
      %s368 = sphi 0, %s367
      %s382 = sphi 0, %s368
      %s386 = sphi 0, %s386
      %s388 = sphi 0, %s386
      %s389 = sphi 0, %s388
      %s403 = sphi 0, %s389
      %s407 = sphi 0, %s407
      %s409 = sphi 0, %s407
      %s410 = sphi 0, %s409
      %s424 = sphi 0, %s410
      %s430 = sphi 0, %s432
      %s433 = sphi 0, %s430
      %s434 = sphi 0, %s433
      %s450 = sphi 0, %s434
      %s456 = sphi 0, %s458
      %s459 = sphi 0, %s456
      %s460 = sphi 0, %s459
      %s476 = sphi 0, %s460
    $region4: #{bert_lm_forward.1} parent=1 // loop_header_branch
      %35 = sbr.rel (%p33) target = $region8
    $region5: #{bert_lm_forward.1} parent=1 // loop_body
      %s37 = ssub.s32 %s32, 1
      %s38 = ssub.s32 %s32, 2
      %s39 = sadd.s32 %s32, 1
      %s40 = ssub.s32 %s32, %s39
      %p41 = scmp.eq.s32.totalorder %s40, 0
      %s43 = sadd.s32 %s42, 1
      %s44 = scalar_select %p41, %s42, %s43
      %p47 = pneg %p41
      %p48 = scmp.eq.s32.totalorder %s32, 1
      %p49 = por %p47, %p48
      %p50 = scmp.ne.s32.totalorder %s42, %s45
      %p51 = scmp.eq.s32.totalorder %s32, 0
      %p52 = por %p50, %p51
      %p53 = scmp.ne.s32.totalorder %s42, %s45
      %p54 = scmp.eq.s32.totalorder %s37, 1
      %p55 = por %p53, %p54
      %p56 = scmp.ne.s32.totalorder %s45, %s46
      %p57 = scmp.eq.s32.totalorder %s37, 0
      %p58 = por %p56, %p57
      %p59 = scmp.ne.s32.totalorder %s45, %s46
      %p60 = scmp.eq.s32.totalorder %s38, 1
      %p61 = por %p59, %p60
      %p63 = scmp.ne.s32.totalorder %s46, %s62
      %p64 = scmp.eq.s32.totalorder %s38, 0
      %p65 = por %p63, %p64
      %s66 = ssub.s32 %s32, %s39
      %p67 = scmp.eq.s32.totalorder %s66, 0
      %s69 = sadd.s32 %s68, 1
      %s70 = scalar_select %p67, %s68, %s69
      %p73 = pneg %p67
      %p74 = scmp.eq.s32.totalorder %s32, 1
      %p75 = por %p73, %p74
      %p76 = scmp.ne.s32.totalorder %s68, %s71
      %p77 = scmp.eq.s32.totalorder %s32, 0
      %p78 = por %p76, %p77
      %p79 = scmp.ne.s32.totalorder %s68, %s71
      %p80 = scmp.eq.s32.totalorder %s37, 1
      %p81 = por %p79, %p80
      %p82 = scmp.ne.s32.totalorder %s71, %s72
      %p83 = scmp.eq.s32.totalorder %s37, 0
      %p84 = por %p82, %p83
      %p85 = scmp.ne.s32.totalorder %s71, %s72
      %p86 = scmp.eq.s32.totalorder %s38, 1
      %p87 = por %p85, %p86
      %p89 = scmp.ne.s32.totalorder %s72, %s88
      %p90 = scmp.eq.s32.totalorder %s38, 0
      %p91 = por %p89, %p90
      %s93 = sadd.s32 %s92, 1
      %p96 = scmp.eq.s32.totalorder %s32, 1
      %p97 = scmp.ne.s32.totalorder %s92, %s94
      %p98 = scmp.eq.s32.totalorder %s32, 0
      %p99 = por %p97, %p98
      %p100 = scmp.ne.s32.totalorder %s92, %s94
      %p101 = scmp.eq.s32.totalorder %s37, 1
      %p102 = por %p100, %p101
      %p103 = scmp.ne.s32.totalorder %s94, %s95
      %p104 = scmp.eq.s32.totalorder %s37, 0
      %p105 = por %p103, %p104
      %p106 = scmp.ne.s32.totalorder %s94, %s95
      %p107 = scmp.eq.s32.totalorder %s38, 1
      %p108 = por %p106, %p107
      %p110 = scmp.ne.s32.totalorder %s95, %s109
      %p111 = scmp.eq.s32.totalorder %s38, 0
      %p112 = por %p110, %p111
      %s114 = sadd.s32 %s113, 1
      %p117 = scmp.eq.s32.totalorder %s32, 1
      %p118 = scmp.ne.s32.totalorder %s113, %s115
      %p119 = scmp.eq.s32.totalorder %s32, 0
      %p120 = por %p118, %p119
      %p121 = scmp.ne.s32.totalorder %s113, %s115
      %p122 = scmp.eq.s32.totalorder %s37, 1
      %p123 = por %p121, %p122
      %p124 = scmp.ne.s32.totalorder %s115, %s116
      %p125 = scmp.eq.s32.totalorder %s37, 0
      %p126 = por %p124, %p125
      %p127 = scmp.ne.s32.totalorder %s115, %s116
      %p128 = scmp.eq.s32.totalorder %s38, 1
      %p129 = por %p127, %p128
      %p131 = scmp.ne.s32.totalorder %s116, %s130
      %p132 = scmp.eq.s32.totalorder %s38, 0
      %p133 = por %p131, %p132
      %s135 = sadd.s32 %s134, 1
      %p138 = scmp.eq.s32.totalorder %s32, 1
      %p139 = scmp.ne.s32.totalorder %s134, %s136
      %p140 = scmp.eq.s32.totalorder %s32, 0
      %p141 = por %p139, %p140
      %p142 = scmp.ne.s32.totalorder %s134, %s136
      %p143 = scmp.eq.s32.totalorder %s37, 1
      %p144 = por %p142, %p143
      %p145 = scmp.ne.s32.totalorder %s136, %s137
      %p146 = scmp.eq.s32.totalorder %s37, 0
      %p147 = por %p145, %p146
      %p148 = scmp.ne.s32.totalorder %s136, %s137
      %p149 = scmp.eq.s32.totalorder %s38, 1
      %p150 = por %p148, %p149
      %p152 = scmp.ne.s32.totalorder %s137, %s151
      %p153 = scmp.eq.s32.totalorder %s38, 0
      %p154 = por %p152, %p153
      %s156 = sadd.s32 %s155, 1
      %p159 = scmp.eq.s32.totalorder %s32, 1
      %p160 = scmp.ne.s32.totalorder %s155, %s157
      %p161 = scmp.eq.s32.totalorder %s32, 0
      %p162 = por %p160, %p161
      %p163 = scmp.ne.s32.totalorder %s155, %s157
      %p164 = scmp.eq.s32.totalorder %s37, 1
      %p165 = por %p163, %p164
      %p166 = scmp.ne.s32.totalorder %s157, %s158
      %p167 = scmp.eq.s32.totalorder %s37, 0
      %p168 = por %p166, %p167
      %p169 = scmp.ne.s32.totalorder %s157, %s158
      %p170 = scmp.eq.s32.totalorder %s38, 1
      %p171 = por %p169, %p170
      %p173 = scmp.ne.s32.totalorder %s158, %s172
      %p174 = scmp.eq.s32.totalorder %s38, 0
      %p175 = por %p173, %p174
      %s177 = sadd.s32 %s176, 1
      %p180 = scmp.eq.s32.totalorder %s32, 1
      %p181 = scmp.ne.s32.totalorder %s176, %s178
      %p182 = scmp.eq.s32.totalorder %s32, 0
      %p183 = por %p181, %p182
      %p184 = scmp.ne.s32.totalorder %s176, %s178
      %p185 = scmp.eq.s32.totalorder %s37, 1
      %p186 = por %p184, %p185
      %p187 = scmp.ne.s32.totalorder %s178, %s179
      %p188 = scmp.eq.s32.totalorder %s37, 0
      %p189 = por %p187, %p188
      %p190 = scmp.ne.s32.totalorder %s178, %s179
      %p191 = scmp.eq.s32.totalorder %s38, 1
      %p192 = por %p190, %p191
      %p194 = scmp.ne.s32.totalorder %s179, %s193
      %p195 = scmp.eq.s32.totalorder %s38, 0
      %p196 = por %p194, %p195
      %s198 = sadd.s32 %s197, 1
      %p201 = scmp.eq.s32.totalorder %s32, 1
      %p202 = scmp.ne.s32.totalorder %s197, %s199
      %p203 = scmp.eq.s32.totalorder %s32, 0
      %p204 = por %p202, %p203
      %p205 = scmp.ne.s32.totalorder %s197, %s199
      %p206 = scmp.eq.s32.totalorder %s37, 1
      %p207 = por %p205, %p206
      %p208 = scmp.ne.s32.totalorder %s199, %s200
      %p209 = scmp.eq.s32.totalorder %s37, 0
      %p210 = por %p208, %p209
      %p211 = scmp.ne.s32.totalorder %s199, %s200
      %p212 = scmp.eq.s32.totalorder %s38, 1
      %p213 = por %p211, %p212
      %p215 = scmp.ne.s32.totalorder %s200, %s214
      %p216 = scmp.eq.s32.totalorder %s38, 0
      %p217 = por %p215, %p216
      %s219 = sadd.s32 %s218, 1
      %p222 = scmp.eq.s32.totalorder %s32, 1
      %p223 = scmp.ne.s32.totalorder %s218, %s220
      %p224 = scmp.eq.s32.totalorder %s32, 0
      %p225 = por %p223, %p224
      %p226 = scmp.ne.s32.totalorder %s218, %s220
      %p227 = scmp.eq.s32.totalorder %s37, 1
      %p228 = por %p226, %p227
      %p229 = scmp.ne.s32.totalorder %s220, %s221
      %p230 = scmp.eq.s32.totalorder %s37, 0
      %p231 = por %p229, %p230
      %p232 = scmp.ne.s32.totalorder %s220, %s221
      %p233 = scmp.eq.s32.totalorder %s38, 1
      %p234 = por %p232, %p233
      %p236 = scmp.ne.s32.totalorder %s221, %s235
      %p237 = scmp.eq.s32.totalorder %s38, 0
      %p238 = por %p236, %p237
      %s240 = sadd.s32 %s239, 1
      %p243 = scmp.eq.s32.totalorder %s32, 1
      %p244 = scmp.ne.s32.totalorder %s239, %s241
      %p245 = scmp.eq.s32.totalorder %s32, 0
      %p246 = por %p244, %p245
      %p247 = scmp.ne.s32.totalorder %s239, %s241
      %p248 = scmp.eq.s32.totalorder %s37, 1
      %p249 = por %p247, %p248
      %p250 = scmp.ne.s32.totalorder %s241, %s242
      %p251 = scmp.eq.s32.totalorder %s37, 0
      %p252 = por %p250, %p251
      %p253 = scmp.ne.s32.totalorder %s241, %s242
      %p254 = scmp.eq.s32.totalorder %s38, 1
      %p255 = por %p253, %p254
      %p257 = scmp.ne.s32.totalorder %s242, %s256
      %p258 = scmp.eq.s32.totalorder %s38, 0
      %p259 = por %p257, %p258
      %s261 = sadd.s32 %s260, 1
      %p264 = scmp.eq.s32.totalorder %s32, 1
      %p265 = scmp.ne.s32.totalorder %s260, %s262
      %p266 = scmp.eq.s32.totalorder %s32, 0
      %p267 = por %p265, %p266
      %p268 = scmp.ne.s32.totalorder %s260, %s262
      %p269 = scmp.eq.s32.totalorder %s37, 1
      %p270 = por %p268, %p269
      %p271 = scmp.ne.s32.totalorder %s262, %s263
      %p272 = scmp.eq.s32.totalorder %s37, 0
      %p273 = por %p271, %p272
      %p274 = scmp.ne.s32.totalorder %s262, %s263
      %p275 = scmp.eq.s32.totalorder %s38, 1
      %p276 = por %p274, %p275
      %p278 = scmp.ne.s32.totalorder %s263, %s277
      %p279 = scmp.eq.s32.totalorder %s38, 0
      %p280 = por %p278, %p279
      %s282 = sadd.s32 %s281, 1
      %p285 = scmp.eq.s32.totalorder %s32, 1
      %p286 = scmp.ne.s32.totalorder %s281, %s283
      %p287 = scmp.eq.s32.totalorder %s32, 0
      %p288 = por %p286, %p287
      %p289 = scmp.ne.s32.totalorder %s281, %s283
      %p290 = scmp.eq.s32.totalorder %s37, 1
      %p291 = por %p289, %p290
      %p292 = scmp.ne.s32.totalorder %s283, %s284
      %p293 = scmp.eq.s32.totalorder %s37, 0
      %p294 = por %p292, %p293
      %p295 = scmp.ne.s32.totalorder %s283, %s284
      %p296 = scmp.eq.s32.totalorder %s38, 1
      %p297 = por %p295, %p296
      %p299 = scmp.ne.s32.totalorder %s284, %s298
      %p300 = scmp.eq.s32.totalorder %s38, 0
      %p301 = por %p299, %p300
      %s303 = sadd.s32 %s302, 1
      %p306 = scmp.eq.s32.totalorder %s32, 1
      %p307 = scmp.ne.s32.totalorder %s302, %s304
      %p308 = scmp.eq.s32.totalorder %s32, 0
      %p309 = por %p307, %p308
      %p310 = scmp.ne.s32.totalorder %s302, %s304
      %p311 = scmp.eq.s32.totalorder %s37, 1
      %p312 = por %p310, %p311
      %p313 = scmp.ne.s32.totalorder %s304, %s305
      %p314 = scmp.eq.s32.totalorder %s37, 0
      %p315 = por %p313, %p314
      %p316 = scmp.ne.s32.totalorder %s304, %s305
      %p317 = scmp.eq.s32.totalorder %s38, 1
      %p318 = por %p316, %p317
      %p320 = scmp.ne.s32.totalorder %s305, %s319
      %p321 = scmp.eq.s32.totalorder %s38, 0
      %p322 = por %p320, %p321
      %s324 = sadd.s32 %s323, 1
      %p327 = scmp.eq.s32.totalorder %s32, 1
      %p328 = scmp.ne.s32.totalorder %s323, %s325
      %p329 = scmp.eq.s32.totalorder %s32, 0
      %p330 = por %p328, %p329
      %p331 = scmp.ne.s32.totalorder %s323, %s325
      %p332 = scmp.eq.s32.totalorder %s37, 1
      %p333 = por %p331, %p332
      %p334 = scmp.ne.s32.totalorder %s325, %s326
      %p335 = scmp.eq.s32.totalorder %s37, 0
      %p336 = por %p334, %p335
      %p337 = scmp.ne.s32.totalorder %s325, %s326
      %p338 = scmp.eq.s32.totalorder %s38, 1
      %p339 = por %p337, %p338
      %p341 = scmp.ne.s32.totalorder %s326, %s340
      %p342 = scmp.eq.s32.totalorder %s38, 0
      %p343 = por %p341, %p342
      %s345 = sadd.s32 %s344, 1
      %p348 = scmp.eq.s32.totalorder %s32, 1
      %p349 = scmp.ne.s32.totalorder %s344, %s346
      %p350 = scmp.eq.s32.totalorder %s32, 0
      %p351 = por %p349, %p350
      %p352 = scmp.ne.s32.totalorder %s344, %s346
      %p353 = scmp.eq.s32.totalorder %s37, 1
      %p354 = por %p352, %p353
      %p355 = scmp.ne.s32.totalorder %s346, %s347
      %p356 = scmp.eq.s32.totalorder %s37, 0
      %p357 = por %p355, %p356
      %p358 = scmp.ne.s32.totalorder %s346, %s347
      %p359 = scmp.eq.s32.totalorder %s38, 1
      %p360 = por %p358, %p359
      %p362 = scmp.ne.s32.totalorder %s347, %s361
      %p363 = scmp.eq.s32.totalorder %s38, 0
      %p364 = por %p362, %p363
      %s366 = sadd.s32 %s365, 1
      %p369 = scmp.eq.s32.totalorder %s32, 1
      %p370 = scmp.ne.s32.totalorder %s365, %s367
      %p371 = scmp.eq.s32.totalorder %s32, 0
      %p372 = por %p370, %p371
      %p373 = scmp.ne.s32.totalorder %s365, %s367
      %p374 = scmp.eq.s32.totalorder %s37, 1
      %p375 = por %p373, %p374
      %p376 = scmp.ne.s32.totalorder %s367, %s368
      %p377 = scmp.eq.s32.totalorder %s37, 0
      %p378 = por %p376, %p377
      %p379 = scmp.ne.s32.totalorder %s367, %s368
      %p380 = scmp.eq.s32.totalorder %s38, 1
      %p381 = por %p379, %p380
      %p383 = scmp.ne.s32.totalorder %s368, %s382
      %p384 = scmp.eq.s32.totalorder %s38, 0
      %p385 = por %p383, %p384
      %s387 = sadd.s32 %s386, 1
      %p390 = scmp.eq.s32.totalorder %s32, 1
      %p391 = scmp.ne.s32.totalorder %s386, %s388
      %p392 = scmp.eq.s32.totalorder %s32, 0
      %p393 = por %p391, %p392
      %p394 = scmp.ne.s32.totalorder %s386, %s388
      %p395 = scmp.eq.s32.totalorder %s37, 1
      %p396 = por %p394, %p395
      %p397 = scmp.ne.s32.totalorder %s388, %s389
      %p398 = scmp.eq.s32.totalorder %s37, 0
      %p399 = por %p397, %p398
      %p400 = scmp.ne.s32.totalorder %s388, %s389
      %p401 = scmp.eq.s32.totalorder %s38, 1
      %p402 = por %p400, %p401
      %p404 = scmp.ne.s32.totalorder %s389, %s403
      %p405 = scmp.eq.s32.totalorder %s38, 0
      %p406 = por %p404, %p405
      %s408 = sadd.s32 %s407, 1
      %p411 = scmp.eq.s32.totalorder %s32, 1
      %p412 = scmp.ne.s32.totalorder %s407, %s409
      %p413 = scmp.eq.s32.totalorder %s32, 0
      %p414 = por %p412, %p413
      %p415 = scmp.ne.s32.totalorder %s407, %s409
      %p416 = scmp.eq.s32.totalorder %s37, 1
      %p417 = por %p415, %p416
      %p418 = scmp.ne.s32.totalorder %s409, %s410
      %p419 = scmp.eq.s32.totalorder %s37, 0
      %p420 = por %p418, %p419
      %p421 = scmp.ne.s32.totalorder %s409, %s410
      %p422 = scmp.eq.s32.totalorder %s38, 1
      %p423 = por %p421, %p422
      %p425 = scmp.ne.s32.totalorder %s410, %s424
      %p426 = scmp.eq.s32.totalorder %s38, 0
      %p427 = por %p425, %p426
      %s428 = ssub.s32 %s32, %s39
      %p429 = scmp.eq.s32.totalorder %s428, 0
      %s431 = sadd.s32 %s430, 1
      %s432 = scalar_select %p429, %s430, %s431
      %p435 = pneg %p429
      %p436 = scmp.eq.s32.totalorder %s32, 1
      %p437 = por %p435, %p436
      %p438 = scmp.ne.s32.totalorder %s430, %s433
      %p439 = scmp.eq.s32.totalorder %s32, 0
      %p440 = por %p438, %p439
      %p441 = scmp.ne.s32.totalorder %s430, %s433
      %p442 = scmp.eq.s32.totalorder %s37, 1
      %p443 = por %p441, %p442
      %p444 = scmp.ne.s32.totalorder %s433, %s434
      %p445 = scmp.eq.s32.totalorder %s37, 0
      %p446 = por %p444, %p445
      %p447 = scmp.ne.s32.totalorder %s433, %s434
      %p448 = scmp.eq.s32.totalorder %s38, 1
      %p449 = por %p447, %p448
      %p451 = scmp.ne.s32.totalorder %s434, %s450
      %p452 = scmp.eq.s32.totalorder %s38, 0
      %p453 = por %p451, %p452
      %s454 = ssub.s32 %s32, %s39
      %p455 = scmp.eq.s32.totalorder %s454, 0
      %s457 = sadd.s32 %s456, 1
      %s458 = scalar_select %p455, %s456, %s457
      %p461 = pneg %p455
      %p462 = scmp.eq.s32.totalorder %s32, 1
      %p463 = por %p461, %p462
      %p464 = scmp.ne.s32.totalorder %s456, %s459
      %p465 = scmp.eq.s32.totalorder %s32, 0
      %p466 = por %p464, %p465
      %p467 = scmp.ne.s32.totalorder %s456, %s459
      %p468 = scmp.eq.s32.totalorder %s37, 1
      %p469 = por %p467, %p468
      %p470 = scmp.ne.s32.totalorder %s459, %s460
      %p471 = scmp.eq.s32.totalorder %s37, 0
      %p472 = por %p470, %p471
      %p473 = scmp.ne.s32.totalorder %s459, %s460
      %p474 = scmp.eq.s32.totalorder %s38, 1
      %p475 = por %p473, %p474
      %p477 = scmp.ne.s32.totalorder %s460, %s476
      %p478 = scmp.eq.s32.totalorder %s38, 0
      %p479 = por %p477, %p478
      %p480 = scmp.le.s32.totalorder 1, %s32
      %p481 = scmp.lt.s32.totalorder %s32, 3
      %p482 = pnand %p480, %p481
      %p483 = pneg %p482
      // Predicated region
      $region9: #{bert_lm_forward.1} parent=5 // pred_check
        _
      $region10: #{bert_lm_forward.1} parent=5 // pred_check_branch
        %485 = sbr.rel (%p482) target = $region12
      $region11: #{bert_lm_forward.1} parent=5 // pred_region
        %s486 = ssub.s32 %s32, 1
        // Predicated region
        $region13: #{bert_lm_forward.1} parent=11 // pred_check
          %p487 = pneg %p105
        $region14: #{bert_lm_forward.1} parent=11 // pred_check_branch
          %489 = sbr.rel (%p487) target = $region16
        $region15: #{bert_lm_forward.1} parent=11 // pred_region
          _
        $region16: #{bert_lm_forward.1} parent=11 // pred_fallthru
          _
        // Predicated region
        $region17: #{bert_lm_forward.1} parent=11 // pred_check
          %p490 = pneg %p126
        $region18: #{bert_lm_forward.1} parent=11 // pred_check_branch
          %492 = sbr.rel (%p490) target = $region20
        $region19: #{bert_lm_forward.1} parent=11 // pred_region
          _
        $region20: #{bert_lm_forward.1} parent=11 // pred_fallthru
          _
        // Predicated region
        $region21: #{bert_lm_forward.1} parent=11 // pred_check
          %p493 = pneg %p147
        $region22: #{bert_lm_forward.1} parent=11 // pred_check_branch
          %495 = sbr.rel (%p493) target = $region24
        $region23: #{bert_lm_forward.1} parent=11 // pred_region
          _
        $region24: #{bert_lm_forward.1} parent=11 // pred_fallthru
          _
        // Predicated region
        $region25: #{bert_lm_forward.1} parent=11 // pred_check
          %p496 = pneg %p168
        $region26: #{bert_lm_forward.1} parent=11 // pred_check_branch
          %498 = sbr.rel (%p496) target = $region28
        $region27: #{bert_lm_forward.1} parent=11 // pred_region
          _
        $region28: #{bert_lm_forward.1} parent=11 // pred_fallthru
          _
        // Predicated region
        $region29: #{bert_lm_forward.1} parent=11 // pred_check
          %p499 = pneg %p189
        $region30: #{bert_lm_forward.1} parent=11 // pred_check_branch
          %501 = sbr.rel (%p499) target = $region32
        $region31: #{bert_lm_forward.1} parent=11 // pred_region
          _
        $region32: #{bert_lm_forward.1} parent=11 // pred_fallthru
          _
        // Predicated region
        $region33: #{bert_lm_forward.1} parent=11 // pred_check
          %p502 = pneg %p210
        $region34: #{bert_lm_forward.1} parent=11 // pred_check_branch
          %504 = sbr.rel (%p502) target = $region36
        $region35: #{bert_lm_forward.1} parent=11 // pred_region
          _
        $region36: #{bert_lm_forward.1} parent=11 // pred_fallthru
          _
        // Predicated region
        $region37: #{bert_lm_forward.1} parent=11 // pred_check
          %p505 = pneg %p231
        $region38: #{bert_lm_forward.1} parent=11 // pred_check_branch
          %507 = sbr.rel (%p505) target = $region40
        $region39: #{bert_lm_forward.1} parent=11 // pred_region
          _
        $region40: #{bert_lm_forward.1} parent=11 // pred_fallthru
          _
        // Predicated region
        $region41: #{bert_lm_forward.1} parent=11 // pred_check
          %p508 = pneg %p252
        $region42: #{bert_lm_forward.1} parent=11 // pred_check_branch
          %510 = sbr.rel (%p508) target = $region44
        $region43: #{bert_lm_forward.1} parent=11 // pred_region
          _
        $region44: #{bert_lm_forward.1} parent=11 // pred_fallthru
          _
        // Predicated region
        $region45: #{bert_lm_forward.1} parent=11 // pred_check
          %p511 = pneg %p273
        $region46: #{bert_lm_forward.1} parent=11 // pred_check_branch
          %513 = sbr.rel (%p511) target = $region48
        $region47: #{bert_lm_forward.1} parent=11 // pred_region
          _
        $region48: #{bert_lm_forward.1} parent=11 // pred_fallthru
          _
        // Predicated region
        $region49: #{bert_lm_forward.1} parent=11 // pred_check
          %p514 = pneg %p294
        $region50: #{bert_lm_forward.1} parent=11 // pred_check_branch
          %516 = sbr.rel (%p514) target = $region52
        $region51: #{bert_lm_forward.1} parent=11 // pred_region
          _
        $region52: #{bert_lm_forward.1} parent=11 // pred_fallthru
          _
        // Predicated region
        $region53: #{bert_lm_forward.1} parent=11 // pred_check
          %p517 = pneg %p315
        $region54: #{bert_lm_forward.1} parent=11 // pred_check_branch
          %519 = sbr.rel (%p517) target = $region56
        $region55: #{bert_lm_forward.1} parent=11 // pred_region
          _
        $region56: #{bert_lm_forward.1} parent=11 // pred_fallthru
          _
        // Predicated region
        $region57: #{bert_lm_forward.1} parent=11 // pred_check
          %p520 = pneg %p336
        $region58: #{bert_lm_forward.1} parent=11 // pred_check_branch
          %522 = sbr.rel (%p520) target = $region60
        $region59: #{bert_lm_forward.1} parent=11 // pred_region
          _
        $region60: #{bert_lm_forward.1} parent=11 // pred_fallthru
          _
        // Predicated region
        $region61: #{bert_lm_forward.1} parent=11 // pred_check
          %p523 = pneg %p357
        $region62: #{bert_lm_forward.1} parent=11 // pred_check_branch
          %525 = sbr.rel (%p523) target = $region64
        $region63: #{bert_lm_forward.1} parent=11 // pred_region
          _
        $region64: #{bert_lm_forward.1} parent=11 // pred_fallthru
          _
        // Predicated region
        $region65: #{bert_lm_forward.1} parent=11 // pred_check
          %p526 = pneg %p378
        $region66: #{bert_lm_forward.1} parent=11 // pred_check_branch
          %528 = sbr.rel (%p526) target = $region68
        $region67: #{bert_lm_forward.1} parent=11 // pred_region
          _
        $region68: #{bert_lm_forward.1} parent=11 // pred_fallthru
          _
        // Predicated region
        $region69: #{bert_lm_forward.1} parent=11 // pred_check
          %p529 = pneg %p399
        $region70: #{bert_lm_forward.1} parent=11 // pred_check_branch
          %531 = sbr.rel (%p529) target = $region72
        $region71: #{bert_lm_forward.1} parent=11 // pred_region
          _
        $region72: #{bert_lm_forward.1} parent=11 // pred_fallthru
          _
        // Predicated region
        $region73: #{bert_lm_forward.1} parent=11 // pred_check
          %p532 = pneg %p420
        $region74: #{bert_lm_forward.1} parent=11 // pred_check_branch
          %534 = sbr.rel (%p532) target = $region76
        $region75: #{bert_lm_forward.1} parent=11 // pred_region
          _
        $region76: #{bert_lm_forward.1} parent=11 // pred_fallthru
          _
      $region12: #{bert_lm_forward.1} parent=5 // pred_fallthru
        _
      %p535 = scmp.lt.s32.totalorder %s32, 2
      // Predicated region
      $region77: #{bert_lm_forward.1} parent=5 // pred_check
        %p536 = pneg %p535
      $region78: #{bert_lm_forward.1} parent=5 // pred_check_branch
        %538 = sbr.rel (%p536) target = $region80
      $region79: #{bert_lm_forward.1} parent=5 // pred_region
        // Predicated region
        $region81: #{bert_lm_forward.1} parent=79 // pred_check
          %p539 = pneg %p52
        $region82: #{bert_lm_forward.1} parent=79 // pred_check_branch
          %541 = sbr.rel (%p539) target = $region84
        $region83: #{bert_lm_forward.1} parent=79 // pred_region
          %p542 = scmp.lt.s32.totalorder %s32, 1
          %s543 = scalar_select %p542, %s32, 1
          %s544 = smul.addr %s543, 8
          %s545 = scalar_lea.vmem %s0, %s544
        $region84: #{bert_lm_forward.1} parent=79 // pred_fallthru
          _
        // Predicated region
        $region85: #{bert_lm_forward.1} parent=79 // pred_check
          %p546 = pneg %p78
        $region86: #{bert_lm_forward.1} parent=79 // pred_check_branch
          %548 = sbr.rel (%p546) target = $region88
        $region87: #{bert_lm_forward.1} parent=79 // pred_region
          %p549 = scmp.lt.s32.totalorder %s32, 1
          %s550 = scalar_select %p549, %s32, 1
          %s551 = scalar_lea.vmem %s1, %s550
        $region88: #{bert_lm_forward.1} parent=79 // pred_fallthru
          _
      $region80: #{bert_lm_forward.1} parent=5 // pred_fallthru
        _
      %p552 = scmp.le.s32.totalorder 1, %s32
      %p553 = scmp.lt.s32.totalorder %s32, 3
      %p554 = pnand %p552, %p553
      %p555 = pneg %p554
      // Predicated region
      $region89: #{bert_lm_forward.1} parent=5 // pred_check
        _
      $region90: #{bert_lm_forward.1} parent=5 // pred_check_branch
        %557 = sbr.rel (%p554) target = $region92
      $region91: #{bert_lm_forward.1} parent=5 // pred_region
        %s558 = ssub.s32 %s32, 1
        %p559 = scmp.lt.s32.totalorder %s37, 1
        %s560 = scalar_select %p559, %s37, 1
        %s561 = smul.addr %s560, 8
        %s562 = scalar_lea.vmem %s0, %s561
        %p563 = pneg %p58
        %p564 = pneg %p55
        %p565 = scmp.lt.s32.totalorder %s37, 1
        %s566 = scalar_select %p565, %s37, 1
        %s567 = scalar_lea.vmem %s1, %s566
        %p568 = pneg %p84
        %p569 = pneg %p81
        %p570 = pneg %p105
        %p571 = pneg %p102
        %p572 = pneg %p126
        %p573 = pneg %p123
        %p574 = pneg %p147
        %p575 = pneg %p144
        %p576 = pneg %p168
        %p577 = pneg %p165
        %p578 = pneg %p189
        %p579 = pneg %p186
        %p580 = pneg %p210
        %p581 = pneg %p207
        %p582 = pneg %p231
        %p583 = pneg %p228
        %p584 = pneg %p252
        %p585 = pneg %p249
        %p586 = pneg %p273
        %p587 = pneg %p270
        %p588 = pneg %p294
        %p589 = pneg %p291
        %p590 = pneg %p315
        %p591 = pneg %p312
        %p592 = pneg %p336
        %p593 = pneg %p333
        %p594 = pneg %p357
        %p595 = pneg %p354
        %p596 = pneg %p378
        %p597 = pneg %p375
        %p598 = pneg %p399
        %p599 = pneg %p396
        %p600 = pneg %p420
        %p601 = pneg %p417
        %p602 = pneg %p446
        %p603 = pneg %p443
        %s604 = sand.u32 %s433, 1
        %s605 = scalar_lea.sflag [#allocation3], %s604
        %s606 = sand.u32 %s433, 1
        %s607 = scalar_lea.vmem [#allocation2], %s606
        %p608 = pneg %p472
        %p609 = pneg %p469
        %s610 = sand.u32 %s459, 1
        %s611 = scalar_lea.sflag [#allocation5], %s610
        %s612 = sand.u32 %s459, 1
        %s613 = smul.addr %s612, 8
        %s614 = scalar_lea.vmem [#allocation4], %s613
        %p615 = scmp.lt.s32.totalorder %s37, 1
        %s616 = scalar_select %p615, %s37, 1
        %s617 = smul.addr %s616, 8
        %s618 = scalar_lea.vmem %s0, %s617
        %p619 = scmp.lt.s32.totalorder %s37, 1
        %s620 = scalar_select %p619, %s37, 1
        %s621 = scalar_lea.vmem %s1, %s620
        %v623 = vld [vmem:[%s621] sm:$0x1]
        %v624 = vld [vmem:[%s618] sm:$0xff]
        %v625 = vpack.c.bf16 %v624, %v624
        %v626 = vld [vmem:[%s2] sm:$0xf]
        %v627 = vld [vmem:[%s2 + $0x4] sm:$0xf]
        %v628 = vld [vmem:[%s2 + $0x8] sm:$0xf]
        %v629 = vld [vmem:[%s2 + $0xc] sm:$0xf]
        %v630 = vld [vmem:[%s3] sm:$0x1]
        %v632 = vlaneseq
        %v633 = vshrl.u32 %v632, 7
        %v634 = vsub.s32 0, %v633
        %v635 = vrot.slane %v630, %v634
        %v641 = vunpack.c.l.b16 %v626
        %v642 = vunpack.c.l.b16 %v627
        %v643 = vunpack.c.l.b16 %v628
        %v644 = vunpack.c.l.b16 %v629
        %v645 = vpack.c.b16 %v642, %v641
        %v646 = vpack.c.b16 %v644, %v643
        %vm649 = vcmask 261120
        %v651 = vsel %vm649, %v625, 0
        %653 = vmatprep.subr.bf16.mxu0 0
        %654 = vmatpush1.bf16.msra.mxu0 0
        %655 = vmatprep.subr.bf16.mxu0 0
        %656 = vmatpush1.bf16.msra.mxu0 0
        %657 = vmatprep.subr.bf16.mxu0 0
        %658 = vmatpush1.bf16.msra.mxu0 0
        %659 = vmatprep.subr.bf16.mxu0 0
        %660 = vmatpush1.bf16.msra.mxu0 0
        %661 = vmatprep.subr.bf16.mxu0 0
        %662 = vmatpush1.bf16.msra.mxu0 0
        %663 = vmatprep.subr.bf16.mxu0 0
        %664 = vmatpush1.bf16.msra.mxu0 0
        %665 = vmatprep.subr.bf16.mxu0 0
        %666 = vmatpush1.bf16.msra.mxu0 %v646
        %667 = vmatprep.subr.bf16.mxu0 0
        %668 = vmatpush1.bf16.msra.mxu0 %v645
        %669 = vmatprep.subr.bf16.mxu0 0
        %670 = vmatpush2.bf16.msra.mxu0 0
        %671 = vmatprep.subr.bf16.mxu0 0
        %672 = vmatpush2.bf16.msra.mxu0 0
        %673 = vmatprep.subr.bf16.mxu0 0
        %674 = vmatpush2.bf16.msra.mxu0 0
        %675 = vmatprep.subr.bf16.mxu0 0
        %676 = vmatpush2.bf16.msra.mxu0 0
        %677 = vmatprep.subr.bf16.mxu0 0
        %678 = vmatpush2.bf16.msra.mxu0 0
        %679 = vmatprep.subr.bf16.mxu0 0
        %680 = vmatpush2.bf16.msra.mxu0 0
        %681 = vmatprep.subr.bf16.mxu0 0
        %682 = vmatpush2.bf16.msra.mxu0 0
        %683 = vmatprep.subr.bf16.mxu0 0
        %684 = vmatpush2.bf16.msra.mxu0 0
        %685 = vmatprep.mubr.bf16.mxu0 0
        %686 = vmatmul.mubr.bf16.gmra.mxu0 %v651
        %v687 = vpop.f32.mrf.mxu0
        %v688 = vadd.f32 %v635, %v687
        %v689 = vpop.f32.mrf.mxu0
        %v690 = vpop.f32.mrf.mxu0
        %v691 = vpop.f32.mrf.mxu0
        %692 = vdwg.mxu0
        %v693 = vpack.c.bf16 %v688, %v688
        %695 = vrot.lane.b32.xlu0 %v693, 96
        %v696 = vpop.permute.xlu0 %695
        %vm697 = vcmask 64512
        %v699 = vsel %vm697, %v693, 0
        %v702 = vsel %vm697, %v696, 0
        %704 = vmatprep.subr.bf16.mxu0 0
        %705 = vmatpush1.bf16.xpose.msra.mxu0 0
        %706 = vmatprep.subr.bf16.mxu0 0
        %707 = vmatpush1.bf16.xpose.msra.mxu0 0
        %708 = vmatprep.subr.bf16.mxu0 0
        %709 = vmatpush1.bf16.xpose.msra.mxu0 0
        %710 = vmatprep.subr.bf16.mxu0 0
        %711 = vmatpush1.bf16.xpose.msra.mxu0 0
        %712 = vmatprep.subr.bf16.mxu0 0
        %713 = vmatpush1.bf16.xpose.msra.mxu0 0
        %714 = vmatprep.subr.bf16.mxu0 0
        %715 = vmatpush1.bf16.xpose.msra.mxu0 0
        %716 = vmatprep.subr.bf16.mxu0 0
        %717 = vmatpush1.bf16.xpose.msra.mxu0 0
        %718 = vmatprep.subr.bf16.mxu0 0
        %719 = vmatpush1.bf16.xpose.msra.mxu0 %v702
        %720 = vmatprep.subr.bf16.mxu0 0
        %721 = vmatpush2.bf16.xpose.msra.mxu0 0
        %722 = vmatprep.subr.bf16.mxu0 0
        %723 = vmatpush2.bf16.xpose.msra.mxu0 0
        %724 = vmatprep.subr.bf16.mxu0 0
        %725 = vmatpush2.bf16.xpose.msra.mxu0 0
        %726 = vmatprep.subr.bf16.mxu0 0
        %727 = vmatpush2.bf16.xpose.msra.mxu0 0
        %728 = vmatprep.subr.bf16.mxu0 0
        %729 = vmatpush2.bf16.xpose.msra.mxu0 0
        %730 = vmatprep.subr.bf16.mxu0 0
        %731 = vmatpush2.bf16.xpose.msra.mxu0 0
        %732 = vmatprep.subr.bf16.mxu0 0
        %733 = vmatpush2.bf16.xpose.msra.mxu0 0
        %734 = vmatprep.subr.bf16.mxu0 0
        %735 = vmatpush2.bf16.xpose.msra.mxu0 0
        %736 = vmatprep.mubr.bf16.mxu0 0
        %737 = vmatmul.mubr.bf16.gmra.mxu0 %v699
        %v738 = vpop.f32.mrf.mxu0
        %v739 = vadd.f32 0.0, %v738
        %v740 = vpop.f32.mrf.mxu0
        %v741 = vpop.f32.mrf.mxu0
        %v742 = vpop.f32.mrf.mxu0
        %743 = vdwg.mxu0
        %v744 = vmul.f32 %v739, 0.35355338
        %v746 = vlaneseq
        %v747 = vshrl.u32 %v746, 7
        %v748 = vsub.s32 0, %v747
        %v749 = vrot.slane %v623, %v748
        %v751 = vadd.f32 %v744, %v749
        %v752 = vsel %vm697, %v751, -inf
        %753 = vmax.xlane.f32.xlu0 %v752
        %v754 = vpop.xlane.xlu0 %753
        %v755 = vsub.f32 %v751, %v754
        %v756 = vmul.f32 %v755, 1.442695
        %v757 = vpow.pop %v756
        %v758 = vsel %vm697, %v757, 0.0
        %759 = vadd.xlane.f32.xlu0 %v758
        %v760 = vpop.xlane.xlu0 %759
        %v761 = vrcp.pop %v760
        %v762 = vmul.f32 %v757, %v761
        %v763 = vpack.c.bf16 %v762, %v762
        %764 = vrot.lane.b32.xlu0 %v693, 64
        %v765 = vpop.permute.xlu0 %764
        %v767 = vsel %vm697, %v763, 0
        %vm769 = vcmask 1043456
        %v771 = vsel %vm769, %v765, 0
        %773 = vmatprep.subr.bf16.mxu0 0
        %774 = vmatpush1.bf16.msra.mxu0 0
        %775 = vmatprep.subr.bf16.mxu0 0
        %776 = vmatpush1.bf16.msra.mxu0 0
        %777 = vmatprep.subr.bf16.mxu0 0
        %778 = vmatpush1.bf16.msra.mxu0 0
        %779 = vmatprep.subr.bf16.mxu0 0
        %780 = vmatpush1.bf16.msra.mxu0 0
        %781 = vmatprep.subr.bf16.mxu0 0
        %782 = vmatpush1.bf16.msra.mxu0 0
        %783 = vmatprep.subr.bf16.mxu0 0
        %784 = vmatpush1.bf16.msra.mxu0 0
        %785 = vmatprep.subr.bf16.mxu0 0
        %786 = vmatpush1.bf16.msra.mxu0 0
        %787 = vmatprep.subr.bf16.mxu0 0
        %788 = vmatpush1.bf16.msra.mxu0 %v771
        %789 = vmatprep.subr.bf16.mxu0 0
        %790 = vmatpush2.bf16.msra.mxu0 0
        %791 = vmatprep.subr.bf16.mxu0 0
        %792 = vmatpush2.bf16.msra.mxu0 0
        %793 = vmatprep.subr.bf16.mxu0 0
        %794 = vmatpush2.bf16.msra.mxu0 0
        %795 = vmatprep.subr.bf16.mxu0 0
        %796 = vmatpush2.bf16.msra.mxu0 0
        %797 = vmatprep.subr.bf16.mxu0 0
        %798 = vmatpush2.bf16.msra.mxu0 0
        %799 = vmatprep.subr.bf16.mxu0 0
        %800 = vmatpush2.bf16.msra.mxu0 0
        %801 = vmatprep.subr.bf16.mxu0 0
        %802 = vmatpush2.bf16.msra.mxu0 0
        %803 = vmatprep.subr.bf16.mxu0 0
        %804 = vmatpush2.bf16.msra.mxu0 0
        %805 = vmatprep.mubr.bf16.mxu0 0
        %806 = vmatmul.mubr.bf16.gmra.mxu0 %v767
        %v807 = vpop.f32.mrf.mxu0
        %v808 = vadd.f32 0.0, %v807
        %v809 = vpop.f32.mrf.mxu0
        %v810 = vpop.f32.mrf.mxu0
        %v811 = vpop.f32.mrf.mxu0
        %812 = vdwg.mxu0
        %813 = vrot.lane.b32.xlu0 %v693, 120
        %v814 = vpop.permute.xlu0 %813
        %815 = vrot.lane.b32.xlu0 %v693, 88
        %v816 = vpop.permute.xlu0 %815
        %v818 = vsel %vm697, %v814, 0
        %v821 = vsel %vm697, %v816, 0
        %823 = vmatprep.subr.bf16.mxu0 0
        %824 = vmatpush1.bf16.xpose.msra.mxu0 0
        %825 = vmatprep.subr.bf16.mxu0 0
        %826 = vmatpush1.bf16.xpose.msra.mxu0 0
        %827 = vmatprep.subr.bf16.mxu0 0
        %828 = vmatpush1.bf16.xpose.msra.mxu0 0
        %829 = vmatprep.subr.bf16.mxu0 0
        %830 = vmatpush1.bf16.xpose.msra.mxu0 0
        %831 = vmatprep.subr.bf16.mxu0 0
        %832 = vmatpush1.bf16.xpose.msra.mxu0 0
        %833 = vmatprep.subr.bf16.mxu0 0
        %834 = vmatpush1.bf16.xpose.msra.mxu0 0
        %835 = vmatprep.subr.bf16.mxu0 0
        %836 = vmatpush1.bf16.xpose.msra.mxu0 0
        %837 = vmatprep.subr.bf16.mxu0 0
        %838 = vmatpush1.bf16.xpose.msra.mxu0 %v821
        %839 = vmatprep.subr.bf16.mxu0 0
        %840 = vmatpush2.bf16.xpose.msra.mxu0 0
        %841 = vmatprep.subr.bf16.mxu0 0
        %842 = vmatpush2.bf16.xpose.msra.mxu0 0
        %843 = vmatprep.subr.bf16.mxu0 0
        %844 = vmatpush2.bf16.xpose.msra.mxu0 0
        %845 = vmatprep.subr.bf16.mxu0 0
        %846 = vmatpush2.bf16.xpose.msra.mxu0 0
        %847 = vmatprep.subr.bf16.mxu0 0
        %848 = vmatpush2.bf16.xpose.msra.mxu0 0
        %849 = vmatprep.subr.bf16.mxu0 0
        %850 = vmatpush2.bf16.xpose.msra.mxu0 0
        %851 = vmatprep.subr.bf16.mxu0 0
        %852 = vmatpush2.bf16.xpose.msra.mxu0 0
        %853 = vmatprep.subr.bf16.mxu0 0
        %854 = vmatpush2.bf16.xpose.msra.mxu0 0
        %855 = vmatprep.mubr.bf16.mxu0 0
        %856 = vmatmul.mubr.bf16.gmra.mxu0 %v818
        %v857 = vpop.f32.mrf.mxu0
        %v858 = vadd.f32 0.0, %v857
        %v859 = vpop.f32.mrf.mxu0
        %v860 = vpop.f32.mrf.mxu0
        %v861 = vpop.f32.mrf.mxu0
        %862 = vdwg.mxu0
        %v863 = vmul.f32 %v858, 0.35355338
        %v864 = vadd.f32 %v863, %v749
        %v865 = vsel %vm697, %v864, -inf
        %866 = vmax.xlane.f32.xlu0 %v865
        %v867 = vpop.xlane.xlu0 %866
        %v868 = vsub.f32 %v864, %v867
        %v869 = vmul.f32 %v868, 1.442695
        %v870 = vpow.pop %v869
        %v871 = vsel %vm697, %v870, 0.0
        %872 = vadd.xlane.f32.xlu0 %v871
        %v873 = vpop.xlane.xlu0 %872
        %v874 = vrcp.pop %v873
        %v875 = vmul.f32 %v870, %v874
        %v876 = vpack.c.bf16 %v875, %v875
        %877 = vrot.lane.b32.xlu0 %v693, 56
        %v878 = vpop.permute.xlu0 %877
        %v880 = vsel %vm697, %v876, 0
        %v883 = vsel %vm769, %v878, 0
        %885 = vmatprep.subr.bf16.mxu0 0
        %886 = vmatpush1.bf16.msra.mxu0 0
        %887 = vmatprep.subr.bf16.mxu0 0
        %888 = vmatpush1.bf16.msra.mxu0 0
        %889 = vmatprep.subr.bf16.mxu0 0
        %890 = vmatpush1.bf16.msra.mxu0 0
        %891 = vmatprep.subr.bf16.mxu0 0
        %892 = vmatpush1.bf16.msra.mxu0 0
        %893 = vmatprep.subr.bf16.mxu0 0
        %894 = vmatpush1.bf16.msra.mxu0 0
        %895 = vmatprep.subr.bf16.mxu0 0
        %896 = vmatpush1.bf16.msra.mxu0 0
        %897 = vmatprep.subr.bf16.mxu0 0
        %898 = vmatpush1.bf16.msra.mxu0 0
        %899 = vmatprep.subr.bf16.mxu0 0
        %900 = vmatpush1.bf16.msra.mxu0 %v883
        %901 = vmatprep.subr.bf16.mxu0 0
        %902 = vmatpush2.bf16.msra.mxu0 0
        %903 = vmatprep.subr.bf16.mxu0 0
        %904 = vmatpush2.bf16.msra.mxu0 0
        %905 = vmatprep.subr.bf16.mxu0 0
        %906 = vmatpush2.bf16.msra.mxu0 0
        %907 = vmatprep.subr.bf16.mxu0 0
        %908 = vmatpush2.bf16.msra.mxu0 0
        %909 = vmatprep.subr.bf16.mxu0 0
        %910 = vmatpush2.bf16.msra.mxu0 0
        %911 = vmatprep.subr.bf16.mxu0 0
        %912 = vmatpush2.bf16.msra.mxu0 0
        %913 = vmatprep.subr.bf16.mxu0 0
        %914 = vmatpush2.bf16.msra.mxu0 0
        %915 = vmatprep.subr.bf16.mxu0 0
        %916 = vmatpush2.bf16.msra.mxu0 0
        %917 = vmatprep.mubr.bf16.mxu0 0
        %918 = vmatmul.mubr.bf16.gmra.mxu0 %v880
        %v919 = vpop.f32.mrf.mxu0
        %v920 = vadd.f32 0.0, %v919
        %v921 = vpop.f32.mrf.mxu0
        %v922 = vpop.f32.mrf.mxu0
        %v923 = vpop.f32.mrf.mxu0
        %924 = vdwg.mxu0
        %925 = vrot.lane.b32.xlu0 %v693, 112
        %v926 = vpop.permute.xlu0 %925
        %927 = vrot.lane.b32.xlu0 %v693, 80
        %v928 = vpop.permute.xlu0 %927
        %v930 = vsel %vm697, %v926, 0
        %v933 = vsel %vm697, %v928, 0
        %935 = vmatprep.subr.bf16.mxu0 0
        %936 = vmatpush1.bf16.xpose.msra.mxu0 0
        %937 = vmatprep.subr.bf16.mxu0 0
        %938 = vmatpush1.bf16.xpose.msra.mxu0 0
        %939 = vmatprep.subr.bf16.mxu0 0
        %940 = vmatpush1.bf16.xpose.msra.mxu0 0
        %941 = vmatprep.subr.bf16.mxu0 0
        %942 = vmatpush1.bf16.xpose.msra.mxu0 0
        %943 = vmatprep.subr.bf16.mxu0 0
        %944 = vmatpush1.bf16.xpose.msra.mxu0 0
        %945 = vmatprep.subr.bf16.mxu0 0
        %946 = vmatpush1.bf16.xpose.msra.mxu0 0
        %947 = vmatprep.subr.bf16.mxu0 0
        %948 = vmatpush1.bf16.xpose.msra.mxu0 0
        %949 = vmatprep.subr.bf16.mxu0 0
        %950 = vmatpush1.bf16.xpose.msra.mxu0 %v933
        %951 = vmatprep.subr.bf16.mxu0 0
        %952 = vmatpush2.bf16.xpose.msra.mxu0 0
        %953 = vmatprep.subr.bf16.mxu0 0
        %954 = vmatpush2.bf16.xpose.msra.mxu0 0
        %955 = vmatprep.subr.bf16.mxu0 0
        %956 = vmatpush2.bf16.xpose.msra.mxu0 0
        %957 = vmatprep.subr.bf16.mxu0 0
        %958 = vmatpush2.bf16.xpose.msra.mxu0 0
        %959 = vmatprep.subr.bf16.mxu0 0
        %960 = vmatpush2.bf16.xpose.msra.mxu0 0
        %961 = vmatprep.subr.bf16.mxu0 0
        %962 = vmatpush2.bf16.xpose.msra.mxu0 0
        %963 = vmatprep.subr.bf16.mxu0 0
        %964 = vmatpush2.bf16.xpose.msra.mxu0 0
        %965 = vmatprep.subr.bf16.mxu0 0
        %966 = vmatpush2.bf16.xpose.msra.mxu0 0
        %967 = vmatprep.mubr.bf16.mxu0 0
        %968 = vmatmul.mubr.bf16.gmra.mxu0 %v930
        %v969 = vpop.f32.mrf.mxu0
        %v970 = vadd.f32 0.0, %v969
        %v971 = vpop.f32.mrf.mxu0
        %v972 = vpop.f32.mrf.mxu0
        %v973 = vpop.f32.mrf.mxu0
        %974 = vdwg.mxu0
        %v975 = vmul.f32 %v970, 0.35355338
        %v976 = vadd.f32 %v975, %v749
        %v977 = vsel %vm697, %v976, -inf
        %978 = vmax.xlane.f32.xlu0 %v977
        %v979 = vpop.xlane.xlu0 %978
        %v980 = vsub.f32 %v976, %v979
        %v981 = vmul.f32 %v980, 1.442695
        %v982 = vpow.pop %v981
        %v983 = vsel %vm697, %v982, 0.0
        %984 = vadd.xlane.f32.xlu0 %v983
        %v985 = vpop.xlane.xlu0 %984
        %v986 = vrcp.pop %v985
        %v987 = vmul.f32 %v982, %v986
        %v988 = vpack.c.bf16 %v987, %v987
        %989 = vrot.lane.b32.xlu0 %v693, 48
        %v990 = vpop.permute.xlu0 %989
        %v992 = vsel %vm697, %v988, 0
        %v995 = vsel %vm769, %v990, 0
        %997 = vmatprep.subr.bf16.mxu0 0
        %998 = vmatpush1.bf16.msra.mxu0 0
        %999 = vmatprep.subr.bf16.mxu0 0
        %1000 = vmatpush1.bf16.msra.mxu0 0
        %1001 = vmatprep.subr.bf16.mxu0 0
        %1002 = vmatpush1.bf16.msra.mxu0 0
        %1003 = vmatprep.subr.bf16.mxu0 0
        %1004 = vmatpush1.bf16.msra.mxu0 0
        %1005 = vmatprep.subr.bf16.mxu0 0
        %1006 = vmatpush1.bf16.msra.mxu0 0
        %1007 = vmatprep.subr.bf16.mxu0 0
        %1008 = vmatpush1.bf16.msra.mxu0 0
        %1009 = vmatprep.subr.bf16.mxu0 0
        %1010 = vmatpush1.bf16.msra.mxu0 0
        %1011 = vmatprep.subr.bf16.mxu0 0
        %1012 = vmatpush1.bf16.msra.mxu0 %v995
        %1013 = vmatprep.subr.bf16.mxu0 0
        %1014 = vmatpush2.bf16.msra.mxu0 0
        %1015 = vmatprep.subr.bf16.mxu0 0
        %1016 = vmatpush2.bf16.msra.mxu0 0
        %1017 = vmatprep.subr.bf16.mxu0 0
        %1018 = vmatpush2.bf16.msra.mxu0 0
        %1019 = vmatprep.subr.bf16.mxu0 0
        %1020 = vmatpush2.bf16.msra.mxu0 0
        %1021 = vmatprep.subr.bf16.mxu0 0
        %1022 = vmatpush2.bf16.msra.mxu0 0
        %1023 = vmatprep.subr.bf16.mxu0 0
        %1024 = vmatpush2.bf16.msra.mxu0 0
        %1025 = vmatprep.subr.bf16.mxu0 0
        %1026 = vmatpush2.bf16.msra.mxu0 0
        %1027 = vmatprep.subr.bf16.mxu0 0
        %1028 = vmatpush2.bf16.msra.mxu0 0
        %1029 = vmatprep.mubr.bf16.mxu0 0
        %1030 = vmatmul.mubr.bf16.gmra.mxu0 %v992
        %v1031 = vpop.f32.mrf.mxu0
        %v1032 = vadd.f32 0.0, %v1031
        %v1033 = vpop.f32.mrf.mxu0
        %v1034 = vpop.f32.mrf.mxu0
        %v1035 = vpop.f32.mrf.mxu0
        %1036 = vdwg.mxu0
        %1037 = vrot.lane.b32.xlu0 %v693, 104
        %v1038 = vpop.permute.xlu0 %1037
        %1039 = vrot.lane.b32.xlu0 %v693, 72
        %v1040 = vpop.permute.xlu0 %1039
        %v1042 = vsel %vm697, %v1038, 0
        %v1045 = vsel %vm697, %v1040, 0
        %1047 = vmatprep.subr.bf16.mxu0 0
        %1048 = vmatpush1.bf16.xpose.msra.mxu0 0
        %1049 = vmatprep.subr.bf16.mxu0 0
        %1050 = vmatpush1.bf16.xpose.msra.mxu0 0
        %1051 = vmatprep.subr.bf16.mxu0 0
        %1052 = vmatpush1.bf16.xpose.msra.mxu0 0
        %1053 = vmatprep.subr.bf16.mxu0 0
        %1054 = vmatpush1.bf16.xpose.msra.mxu0 0
        %1055 = vmatprep.subr.bf16.mxu0 0
        %1056 = vmatpush1.bf16.xpose.msra.mxu0 0
        %1057 = vmatprep.subr.bf16.mxu0 0
        %1058 = vmatpush1.bf16.xpose.msra.mxu0 0
        %1059 = vmatprep.subr.bf16.mxu0 0
        %1060 = vmatpush1.bf16.xpose.msra.mxu0 0
        %1061 = vmatprep.subr.bf16.mxu0 0
        %1062 = vmatpush1.bf16.xpose.msra.mxu0 %v1045
        %1063 = vmatprep.subr.bf16.mxu0 0
        %1064 = vmatpush2.bf16.xpose.msra.mxu0 0
        %1065 = vmatprep.subr.bf16.mxu0 0
        %1066 = vmatpush2.bf16.xpose.msra.mxu0 0
        %1067 = vmatprep.subr.bf16.mxu0 0
        %1068 = vmatpush2.bf16.xpose.msra.mxu0 0
        %1069 = vmatprep.subr.bf16.mxu0 0
        %1070 = vmatpush2.bf16.xpose.msra.mxu0 0
        %1071 = vmatprep.subr.bf16.mxu0 0
        %1072 = vmatpush2.bf16.xpose.msra.mxu0 0
        %1073 = vmatprep.subr.bf16.mxu0 0
        %1074 = vmatpush2.bf16.xpose.msra.mxu0 0
        %1075 = vmatprep.subr.bf16.mxu0 0
        %1076 = vmatpush2.bf16.xpose.msra.mxu0 0
        %1077 = vmatprep.subr.bf16.mxu0 0
        %1078 = vmatpush2.bf16.xpose.msra.mxu0 0
        %1079 = vmatprep.mubr.bf16.mxu0 0
        %1080 = vmatmul.mubr.bf16.gmra.mxu0 %v1042
        %v1081 = vpop.f32.mrf.mxu0
        %v1082 = vadd.f32 0.0, %v1081
        %v1083 = vpop.f32.mrf.mxu0
        %v1084 = vpop.f32.mrf.mxu0
        %v1085 = vpop.f32.mrf.mxu0
        %1086 = vdwg.mxu0
        %v1087 = vmul.f32 %v1082, 0.35355338
        %v1088 = vadd.f32 %v1087, %v749
        %v1089 = vsel %vm697, %v1088, -inf
        %1090 = vmax.xlane.f32.xlu0 %v1089
        %v1091 = vpop.xlane.xlu0 %1090
        %v1092 = vsub.f32 %v1088, %v1091
        %v1093 = vmul.f32 %v1092, 1.442695
        %v1094 = vpow.pop %v1093
        %v1095 = vsel %vm697, %v1094, 0.0
        %1096 = vadd.xlane.f32.xlu0 %v1095
        %v1097 = vpop.xlane.xlu0 %1096
        %v1098 = vrcp.pop %v1097
        %v1099 = vmul.f32 %v1094, %v1098
        %v1100 = vpack.c.bf16 %v1099, %v1099
        %1101 = vrot.lane.b32.xlu0 %v693, 40
        %v1102 = vpop.permute.xlu0 %1101
        %v1104 = vsel %vm697, %v1100, 0
        %v1107 = vsel %vm769, %v1102, 0
        %1109 = vmatprep.subr.bf16.mxu0 0
        %1110 = vmatpush1.bf16.msra.mxu0 0
        %1111 = vmatprep.subr.bf16.mxu0 0
        %1112 = vmatpush1.bf16.msra.mxu0 0
        %1113 = vmatprep.subr.bf16.mxu0 0
        %1114 = vmatpush1.bf16.msra.mxu0 0
        %1115 = vmatprep.subr.bf16.mxu0 0
        %1116 = vmatpush1.bf16.msra.mxu0 0
        %1117 = vmatprep.subr.bf16.mxu0 0
        %1118 = vmatpush1.bf16.msra.mxu0 0
        %1119 = vmatprep.subr.bf16.mxu0 0
        %1120 = vmatpush1.bf16.msra.mxu0 0
        %1121 = vmatprep.subr.bf16.mxu0 0
        %1122 = vmatpush1.bf16.msra.mxu0 0
        %1123 = vmatprep.subr.bf16.mxu0 0
        %1124 = vmatpush1.bf16.msra.mxu0 %v1107
        %1125 = vmatprep.subr.bf16.mxu0 0
        %1126 = vmatpush2.bf16.msra.mxu0 0
        %1127 = vmatprep.subr.bf16.mxu0 0
        %1128 = vmatpush2.bf16.msra.mxu0 0
        %1129 = vmatprep.subr.bf16.mxu0 0
        %1130 = vmatpush2.bf16.msra.mxu0 0
        %1131 = vmatprep.subr.bf16.mxu0 0
        %1132 = vmatpush2.bf16.msra.mxu0 0
        %1133 = vmatprep.subr.bf16.mxu0 0
        %1134 = vmatpush2.bf16.msra.mxu0 0
        %1135 = vmatprep.subr.bf16.mxu0 0
        %1136 = vmatpush2.bf16.msra.mxu0 0
        %1137 = vmatprep.subr.bf16.mxu0 0
        %1138 = vmatpush2.bf16.msra.mxu0 0
        %1139 = vmatprep.subr.bf16.mxu0 0
        %1140 = vmatpush2.bf16.msra.mxu0 0
        %1141 = vmatprep.mubr.bf16.mxu0 0
        %1142 = vmatmul.mubr.bf16.gmra.mxu0 %v1104
        %v1143 = vpop.f32.mrf.mxu0
        %v1144 = vadd.f32 0.0, %v1143
        %v1145 = vpop.f32.mrf.mxu0
        %v1146 = vpop.f32.mrf.mxu0
        %v1147 = vpop.f32.mrf.mxu0
        %1148 = vdwg.mxu0
        %1150 = vrot.lane.b32.xlu0 %v920, 8
        %v1151 = vpop.permute.xlu0 %1150
        %1154 = vrot.lane.b32.xlu0 %v1032, 16
        %v1155 = vpop.permute.xlu0 %1154
        %1158 = vrot.lane.b32.xlu0 %v1144, 24
        %v1159 = vpop.permute.xlu0 %1158
        %v1161 = vsel %vm697, %v808, %v1151
        %vm1162 = vcmask 130048
        %v1163 = vsel %vm1162, %v1161, %v1155
        %vm1164 = vcmask 195584
        %v1165 = vsel %vm1164, %v1163, %v1159
        %v1166 = vpack.c.bf16 %v1165, %v1165
        %v1167 = vld [vmem:[%s4] sm:$0xf]
        %v1168 = vld [vmem:[%s4 + $0x4] sm:$0xf]
        %v1169 = vld [vmem:[%s4 + $0x8] sm:$0xf]
        %v1170 = vld [vmem:[%s4 + $0xc] sm:$0xf]
        %v1171 = vld [vmem:[%s5] sm:$0x1]
        %v1173 = vlaneseq
        %v1174 = vshrl.u32 %v1173, 7
        %v1175 = vsub.s32 0, %v1174
        %v1176 = vrot.slane %v1171, %v1175
        %v1182 = vunpack.c.l.b16 %v1167
        %v1183 = vunpack.c.l.b16 %v1168
        %v1184 = vunpack.c.l.b16 %v1169
        %v1185 = vunpack.c.l.b16 %v1170
        %v1186 = vpack.c.b16 %v1183, %v1182
        %v1187 = vpack.c.b16 %v1185, %v1184
        %v1191 = vsel %vm649, %v1166, 0
        %1193 = vmatprep.subr.bf16.mxu0 0
        %1194 = vmatpush1.bf16.msra.mxu0 0
        %1195 = vmatprep.subr.bf16.mxu0 0
        %1196 = vmatpush1.bf16.msra.mxu0 0
        %1197 = vmatprep.subr.bf16.mxu0 0
        %1198 = vmatpush1.bf16.msra.mxu0 0
        %1199 = vmatprep.subr.bf16.mxu0 0
        %1200 = vmatpush1.bf16.msra.mxu0 0
        %1201 = vmatprep.subr.bf16.mxu0 0
        %1202 = vmatpush1.bf16.msra.mxu0 0
        %1203 = vmatprep.subr.bf16.mxu0 0
        %1204 = vmatpush1.bf16.msra.mxu0 0
        %1205 = vmatprep.subr.bf16.mxu0 0
        %1206 = vmatpush1.bf16.msra.mxu0 %v1187
        %1207 = vmatprep.subr.bf16.mxu0 0
        %1208 = vmatpush1.bf16.msra.mxu0 %v1186
        %1209 = vmatprep.subr.bf16.mxu0 0
        %1210 = vmatpush2.bf16.msra.mxu0 0
        %1211 = vmatprep.subr.bf16.mxu0 0
        %1212 = vmatpush2.bf16.msra.mxu0 0
        %1213 = vmatprep.subr.bf16.mxu0 0
        %1214 = vmatpush2.bf16.msra.mxu0 0
        %1215 = vmatprep.subr.bf16.mxu0 0
        %1216 = vmatpush2.bf16.msra.mxu0 0
        %1217 = vmatprep.subr.bf16.mxu0 0
        %1218 = vmatpush2.bf16.msra.mxu0 0
        %1219 = vmatprep.subr.bf16.mxu0 0
        %1220 = vmatpush2.bf16.msra.mxu0 0
        %1221 = vmatprep.subr.bf16.mxu0 0
        %1222 = vmatpush2.bf16.msra.mxu0 0
        %1223 = vmatprep.subr.bf16.mxu0 0
        %1224 = vmatpush2.bf16.msra.mxu0 0
        %1225 = vmatprep.mubr.bf16.mxu0 0
        %1226 = vmatmul.mubr.bf16.gmra.mxu0 %v1191
        %v1227 = vpop.f32.mrf.mxu0
        %v1228 = vadd.f32 %v1176, %v1227
        %v1229 = vpop.f32.mrf.mxu0
        %v1230 = vpop.f32.mrf.mxu0
        %v1231 = vpop.f32.mrf.mxu0
        %1232 = vdwg.mxu0
        %v1233 = vadd.f32 %v624, %v1228
        %v1234 = vld [vmem:[%s6] sm:$0x1]
        %v1235 = vld [vmem:[%s7] sm:$0x1]
        %v1236 = vsel %vm649, %v1233, 0.0
        %1237 = vadd.xlane.f32.xlu0 %v1236
        %v1238 = vpop.xlane.xlu0 %1237
        %v1239 = vrcp.pop 32.0
        %v1240 = vmul.f32 %v1238, %v1239
        %v1241 = vsub.f32 %v1233, %v1240
        %v1242 = vmul.f32 %v1241, %v1241
        %v1243 = vsel %vm649, %v1242, 0.0
        %1244 = vadd.xlane.f32.xlu0 %v1243
        %v1245 = vpop.xlane.xlu0 %1244
        %v1246 = vmul.f32 %v1245, %v1239
        %v1247 = vadd.f32 %v1246, 1e-05
        %v1248 = vrsqrt.pop %v1247
        %v1249 = vmul.f32 %v1241, %v1248
        %v1251 = vlaneseq
        %v1252 = vshrl.u32 %v1251, 7
        %v1253 = vsub.s32 0, %v1252
        %v1254 = vrot.slane %v1234, %v1253
        %v1256 = vmul.f32 %v1249, %v1254
        %v1258 = vlaneseq
        %v1259 = vshrl.u32 %v1258, 7
        %v1260 = vsub.s32 0, %v1259
        %v1261 = vrot.slane %v1235, %v1260
        %v1263 = vadd.f32 %v1256, %v1261
        %v1264 = vpack.c.bf16 %v1263, %v1263
        %v1265 = vld [vmem:[%s8] sm:$0xf]
        %v1266 = vld [vmem:[%s8 + $0x4] sm:$0xf]
        %v1267 = vld [vmem:[%s8 + $0x8] sm:$0xf]
        %v1268 = vld [vmem:[%s8 + $0xc] sm:$0xf]
        %v1269 = vld [vmem:[%s9] sm:$0x1]
        %v1271 = vlaneseq
        %v1272 = vshrl.u32 %v1271, 7
        %v1273 = vsub.s32 0, %v1272
        %v1274 = vrot.slane %v1269, %v1273
        %v1280 = vunpack.c.l.b16 %v1265
        %v1281 = vunpack.c.l.b16 %v1266
        %v1282 = vunpack.c.l.b16 %v1267
        %v1283 = vunpack.c.l.b16 %v1268
        %v1284 = vpack.c.b16 %v1281, %v1280
        %v1285 = vpack.c.b16 %v1283, %v1282
        %v1289 = vsel %vm649, %v1264, 0
        %1291 = vmatprep.subr.bf16.mxu0 0
        %1292 = vmatpush1.bf16.msra.mxu0 0
        %1293 = vmatprep.subr.bf16.mxu0 0
        %1294 = vmatpush1.bf16.msra.mxu0 0
        %1295 = vmatprep.subr.bf16.mxu0 0
        %1296 = vmatpush1.bf16.msra.mxu0 0
        %1297 = vmatprep.subr.bf16.mxu0 0
        %1298 = vmatpush1.bf16.msra.mxu0 0
        %1299 = vmatprep.subr.bf16.mxu0 0
        %1300 = vmatpush1.bf16.msra.mxu0 0
        %1301 = vmatprep.subr.bf16.mxu0 0
        %1302 = vmatpush1.bf16.msra.mxu0 0
        %1303 = vmatprep.subr.bf16.mxu0 0
        %1304 = vmatpush1.bf16.msra.mxu0 %v1285
        %1305 = vmatprep.subr.bf16.mxu0 0
        %1306 = vmatpush1.bf16.msra.mxu0 %v1284
        %1307 = vmatprep.subr.bf16.mxu0 0
        %1308 = vmatpush2.bf16.msra.mxu0 0
        %1309 = vmatprep.subr.bf16.mxu0 0
        %1310 = vmatpush2.bf16.msra.mxu0 0
        %1311 = vmatprep.subr.bf16.mxu0 0
        %1312 = vmatpush2.bf16.msra.mxu0 0
        %1313 = vmatprep.subr.bf16.mxu0 0
        %1314 = vmatpush2.bf16.msra.mxu0 0
        %1315 = vmatprep.subr.bf16.mxu0 0
        %1316 = vmatpush2.bf16.msra.mxu0 0
        %1317 = vmatprep.subr.bf16.mxu0 0
        %1318 = vmatpush2.bf16.msra.mxu0 0
        %1319 = vmatprep.subr.bf16.mxu0 0
        %1320 = vmatpush2.bf16.msra.mxu0 0
        %1321 = vmatprep.subr.bf16.mxu0 0
        %1322 = vmatpush2.bf16.msra.mxu0 0
        %1323 = vmatprep.mubr.bf16.mxu0 0
        %1324 = vmatmul.mubr.bf16.gmra.mxu0 %v1289
        %v1325 = vpop.f32.mrf.mxu0
        %v1326 = vadd.f32 %v1274, %v1325
        %v1327 = vpop.f32.mrf.mxu0
        %v1328 = vpop.f32.mrf.mxu0
        %v1329 = vpop.f32.mrf.mxu0
        %1330 = vdwg.mxu0
        %v1331 = vmul.f32 %v1326, %v1326
        %v1332 = vmul.f32 %v1326, %v1331
        %v1333 = vmul.f32 %v1332, 0.044715
        %v1334 = vadd.f32 %v1326, %v1333
        %v1335 = vmul.f32 %v1334, 0.7978846
        %v1336 = vtanh.pop %v1335
        %v1337 = vadd.f32 %v1336, 1.0
        %v1338 = vmul.f32 %v1337, 0.5
        %v1339 = vmul.f32 %v1326, %v1338
        %v1340 = vpack.c.bf16 %v1339, %v1339
        %v1341 = vld [vmem:[%s10] sm:$0xf]
        %v1342 = vld [vmem:[%s10 + $0x4] sm:$0xf]
        %v1343 = vld [vmem:[%s10 + $0x8] sm:$0xf]
        %v1344 = vld [vmem:[%s10 + $0xc] sm:$0xf]
        %v1345 = vld [vmem:[%s10 + $0x10] sm:$0xf]
        %v1346 = vld [vmem:[%s10 + $0x14] sm:$0xf]
        %v1347 = vld [vmem:[%s10 + $0x18] sm:$0xf]
        %v1348 = vld [vmem:[%s10 + $0x1c] sm:$0xf]
        %v1349 = vld [vmem:[%s10 + $0x20] sm:$0xf]
        %v1350 = vld [vmem:[%s10 + $0x24] sm:$0xf]
        %v1351 = vld [vmem:[%s10 + $0x28] sm:$0xf]
        %v1352 = vld [vmem:[%s10 + $0x2c] sm:$0xf]
        %v1353 = vld [vmem:[%s10 + $0x30] sm:$0xf]
        %v1354 = vld [vmem:[%s10 + $0x34] sm:$0xf]
        %v1355 = vld [vmem:[%s10 + $0x38] sm:$0xf]
        %v1356 = vld [vmem:[%s10 + $0x3c] sm:$0xf]
        %v1357 = vld [vmem:[%s11] sm:$0x1]
        %v1359 = vlaneseq
        %v1360 = vshrl.u32 %v1359, 7
        %v1361 = vsub.s32 0, %v1360
        %v1362 = vrot.slane %v1357, %v1361
        %v1380 = vunpack.c.l.b16 %v1341
        %v1381 = vunpack.c.l.b16 %v1342
        %v1382 = vunpack.c.l.b16 %v1343
        %v1383 = vunpack.c.l.b16 %v1344
        %v1384 = vunpack.c.l.b16 %v1345
        %v1385 = vunpack.c.l.b16 %v1346
        %v1386 = vunpack.c.l.b16 %v1347
        %v1387 = vunpack.c.l.b16 %v1348
        %v1388 = vunpack.c.l.b16 %v1349
        %v1389 = vunpack.c.l.b16 %v1350
        %v1390 = vunpack.c.l.b16 %v1351
        %v1391 = vunpack.c.l.b16 %v1352
        %v1392 = vunpack.c.l.b16 %v1353
        %v1393 = vunpack.c.l.b16 %v1354
        %v1394 = vunpack.c.l.b16 %v1355
        %v1395 = vunpack.c.l.b16 %v1356
        %v1396 = vpack.c.b16 %v1381, %v1380
        %v1397 = vpack.c.b16 %v1383, %v1382
        %v1398 = vpack.c.b16 %v1385, %v1384
        %v1399 = vpack.c.b16 %v1387, %v1386
        %v1400 = vpack.c.b16 %v1389, %v1388
        %v1401 = vpack.c.b16 %v1391, %v1390
        %v1402 = vpack.c.b16 %v1393, %v1392
        %v1403 = vpack.c.b16 %v1395, %v1394
        %1412 = vmatprep.subr.bf16.mxu0 0
        %1413 = vmatpush1.bf16.msra.mxu0 %v1403
        %1414 = vmatprep.subr.bf16.mxu0 0
        %1415 = vmatpush1.bf16.msra.mxu0 %v1402
        %1416 = vmatprep.subr.bf16.mxu0 0
        %1417 = vmatpush1.bf16.msra.mxu0 %v1401
        %1418 = vmatprep.subr.bf16.mxu0 0
        %1419 = vmatpush1.bf16.msra.mxu0 %v1400
        %1420 = vmatprep.subr.bf16.mxu0 0
        %1421 = vmatpush1.bf16.msra.mxu0 %v1399
        %1422 = vmatprep.subr.bf16.mxu0 0
        %1423 = vmatpush1.bf16.msra.mxu0 %v1398
        %1424 = vmatprep.subr.bf16.mxu0 0
        %1425 = vmatpush1.bf16.msra.mxu0 %v1397
        %1426 = vmatprep.subr.bf16.mxu0 0
        %1427 = vmatpush1.bf16.msra.mxu0 %v1396
        %1428 = vmatprep.subr.bf16.mxu0 0
        %1429 = vmatpush2.bf16.msra.mxu0 0
        %1430 = vmatprep.subr.bf16.mxu0 0
        %1431 = vmatpush2.bf16.msra.mxu0 0
        %1432 = vmatprep.subr.bf16.mxu0 0
        %1433 = vmatpush2.bf16.msra.mxu0 0
        %1434 = vmatprep.subr.bf16.mxu0 0
        %1435 = vmatpush2.bf16.msra.mxu0 0
        %1436 = vmatprep.subr.bf16.mxu0 0
        %1437 = vmatpush2.bf16.msra.mxu0 0
        %1438 = vmatprep.subr.bf16.mxu0 0
        %1439 = vmatpush2.bf16.msra.mxu0 0
        %1440 = vmatprep.subr.bf16.mxu0 0
        %1441 = vmatpush2.bf16.msra.mxu0 0
        %1442 = vmatprep.subr.bf16.mxu0 0
        %1443 = vmatpush2.bf16.msra.mxu0 0
        %1444 = vmatprep.mubr.bf16.mxu0 0
        %1445 = vmatmul.mubr.bf16.gmra.mxu0 %v1340
        %v1446 = vpop.f32.mrf.mxu0
        %v1447 = vadd.f32 %v1362, %v1446
        %v1448 = vpop.f32.mrf.mxu0
        %v1449 = vpop.f32.mrf.mxu0
        %v1450 = vpop.f32.mrf.mxu0
        %1451 = vdwg.mxu0
        %v1452 = vadd.f32 %v1263, %v1447
        %v1453 = vld [vmem:[%s12] sm:$0x1]
        %v1454 = vld [vmem:[%s13] sm:$0x1]
        %v1455 = vsel %vm649, %v1452, 0.0
        %1456 = vadd.xlane.f32.xlu0 %v1455
        %v1457 = vpop.xlane.xlu0 %1456
        %v1458 = vmul.f32 %v1457, %v1239
        %v1459 = vsub.f32 %v1452, %v1458
        %v1460 = vmul.f32 %v1459, %v1459
        %v1461 = vsel %vm649, %v1460, 0.0
        %1462 = vadd.xlane.f32.xlu0 %v1461
        %v1463 = vpop.xlane.xlu0 %1462
        %v1464 = vmul.f32 %v1463, %v1239
        %v1465 = vadd.f32 %v1464, 1e-05
        %v1466 = vrsqrt.pop %v1465
        %v1467 = vmul.f32 %v1459, %v1466
        %v1469 = vlaneseq
        %v1470 = vshrl.u32 %v1469, 7
        %v1471 = vsub.s32 0, %v1470
        %v1472 = vrot.slane %v1453, %v1471
        %v1474 = vmul.f32 %v1467, %v1472
        %v1476 = vlaneseq
        %v1477 = vshrl.u32 %v1476, 7
        %v1478 = vsub.s32 0, %v1477
        %v1479 = vrot.slane %v1454, %v1478
        %v1481 = vadd.f32 %v1474, %v1479
        %v1482 = vpack.c.bf16 %v1481, %v1481
        %s1483 = scalar_lea.vmem %s2, 16
        %v1484 = vld [vmem:[%s1483] sm:$0xf]
        %v1485 = vld [vmem:[%s1483 + $0x4] sm:$0xf]
        %v1486 = vld [vmem:[%s1483 + $0x8] sm:$0xf]
        %v1487 = vld [vmem:[%s1483 + $0xc] sm:$0xf]
        %s1488 = scalar_lea.vmem %s3, 1
        %v1489 = vld [vmem:[%s1488] sm:$0x1]
        %v1491 = vlaneseq
        %v1492 = vshrl.u32 %v1491, 7
        %v1493 = vsub.s32 0, %v1492
        %v1494 = vrot.slane %v1489, %v1493
        %v1500 = vunpack.c.l.b16 %v1484
        %v1501 = vunpack.c.l.b16 %v1485
        %v1502 = vunpack.c.l.b16 %v1486
        %v1503 = vunpack.c.l.b16 %v1487
        %v1504 = vpack.c.b16 %v1501, %v1500
        %v1505 = vpack.c.b16 %v1503, %v1502
        %v1509 = vsel %vm649, %v1482, 0
        %1511 = vmatprep.subr.bf16.mxu0 0
        %1512 = vmatpush1.bf16.msra.mxu0 0
        %1513 = vmatprep.subr.bf16.mxu0 0
        %1514 = vmatpush1.bf16.msra.mxu0 0
        %1515 = vmatprep.subr.bf16.mxu0 0
        %1516 = vmatpush1.bf16.msra.mxu0 0
        %1517 = vmatprep.subr.bf16.mxu0 0
        %1518 = vmatpush1.bf16.msra.mxu0 0
        %1519 = vmatprep.subr.bf16.mxu0 0
        %1520 = vmatpush1.bf16.msra.mxu0 0
        %1521 = vmatprep.subr.bf16.mxu0 0
        %1522 = vmatpush1.bf16.msra.mxu0 0
        %1523 = vmatprep.subr.bf16.mxu0 0
        %1524 = vmatpush1.bf16.msra.mxu0 %v1505
        %1525 = vmatprep.subr.bf16.mxu0 0
        %1526 = vmatpush1.bf16.msra.mxu0 %v1504
        %1527 = vmatprep.subr.bf16.mxu0 0
        %1528 = vmatpush2.bf16.msra.mxu0 0
        %1529 = vmatprep.subr.bf16.mxu0 0
        %1530 = vmatpush2.bf16.msra.mxu0 0
        %1531 = vmatprep.subr.bf16.mxu0 0
        %1532 = vmatpush2.bf16.msra.mxu0 0
        %1533 = vmatprep.subr.bf16.mxu0 0
        %1534 = vmatpush2.bf16.msra.mxu0 0
        %1535 = vmatprep.subr.bf16.mxu0 0
        %1536 = vmatpush2.bf16.msra.mxu0 0
        %1537 = vmatprep.subr.bf16.mxu0 0
        %1538 = vmatpush2.bf16.msra.mxu0 0
        %1539 = vmatprep.subr.bf16.mxu0 0
        %1540 = vmatpush2.bf16.msra.mxu0 0
        %1541 = vmatprep.subr.bf16.mxu0 0
        %1542 = vmatpush2.bf16.msra.mxu0 0
        %1543 = vmatprep.mubr.bf16.mxu0 0
        %1544 = vmatmul.mubr.bf16.gmra.mxu0 %v1509
        %v1545 = vpop.f32.mrf.mxu0
        %v1546 = vadd.f32 %v1494, %v1545
        %v1547 = vpop.f32.mrf.mxu0
        %v1548 = vpop.f32.mrf.mxu0
        %v1549 = vpop.f32.mrf.mxu0
        %1550 = vdwg.mxu0
        %v1551 = vpack.c.bf16 %v1546, %v1546
        %1553 = vrot.lane.b32.xlu0 %v1551, 96
        %v1554 = vpop.permute.xlu0 %1553
        %v1556 = vsel %vm697, %v1551, 0
        %v1559 = vsel %vm697, %v1554, 0
        %1561 = vmatprep.subr.bf16.mxu0 0
        %1562 = vmatpush1.bf16.xpose.msra.mxu0 0
        %1563 = vmatprep.subr.bf16.mxu0 0
        %1564 = vmatpush1.bf16.xpose.msra.mxu0 0
        %1565 = vmatprep.subr.bf16.mxu0 0
        %1566 = vmatpush1.bf16.xpose.msra.mxu0 0
        %1567 = vmatprep.subr.bf16.mxu0 0
        %1568 = vmatpush1.bf16.xpose.msra.mxu0 0
        %1569 = vmatprep.subr.bf16.mxu0 0
        %1570 = vmatpush1.bf16.xpose.msra.mxu0 0
        %1571 = vmatprep.subr.bf16.mxu0 0
        %1572 = vmatpush1.bf16.xpose.msra.mxu0 0
        %1573 = vmatprep.subr.bf16.mxu0 0
        %1574 = vmatpush1.bf16.xpose.msra.mxu0 0
        %1575 = vmatprep.subr.bf16.mxu0 0
        %1576 = vmatpush1.bf16.xpose.msra.mxu0 %v1559
        %1577 = vmatprep.subr.bf16.mxu0 0
        %1578 = vmatpush2.bf16.xpose.msra.mxu0 0
        %1579 = vmatprep.subr.bf16.mxu0 0
        %1580 = vmatpush2.bf16.xpose.msra.mxu0 0
        %1581 = vmatprep.subr.bf16.mxu0 0
        %1582 = vmatpush2.bf16.xpose.msra.mxu0 0
        %1583 = vmatprep.subr.bf16.mxu0 0
        %1584 = vmatpush2.bf16.xpose.msra.mxu0 0
        %1585 = vmatprep.subr.bf16.mxu0 0
        %1586 = vmatpush2.bf16.xpose.msra.mxu0 0
        %1587 = vmatprep.subr.bf16.mxu0 0
        %1588 = vmatpush2.bf16.xpose.msra.mxu0 0
        %1589 = vmatprep.subr.bf16.mxu0 0
        %1590 = vmatpush2.bf16.xpose.msra.mxu0 0
        %1591 = vmatprep.subr.bf16.mxu0 0
        %1592 = vmatpush2.bf16.xpose.msra.mxu0 0
        %1593 = vmatprep.mubr.bf16.mxu0 0
        %1594 = vmatmul.mubr.bf16.gmra.mxu0 %v1556
        %v1595 = vpop.f32.mrf.mxu0
        %v1596 = vadd.f32 0.0, %v1595
        %v1597 = vpop.f32.mrf.mxu0
        %v1598 = vpop.f32.mrf.mxu0
        %v1599 = vpop.f32.mrf.mxu0
        %1600 = vdwg.mxu0
        %v1601 = vmul.f32 %v1596, 0.35355338
        %v1602 = vadd.f32 %v1601, %v749
        %v1603 = vsel %vm697, %v1602, -inf
        %1604 = vmax.xlane.f32.xlu0 %v1603
        %v1605 = vpop.xlane.xlu0 %1604
        %v1606 = vsub.f32 %v1602, %v1605
        %v1607 = vmul.f32 %v1606, 1.442695
        %v1608 = vpow.pop %v1607
        %v1609 = vsel %vm697, %v1608, 0.0
        %1610 = vadd.xlane.f32.xlu0 %v1609
        %v1611 = vpop.xlane.xlu0 %1610
        %v1612 = vrcp.pop %v1611
        %v1613 = vmul.f32 %v1608, %v1612
        %v1614 = vpack.c.bf16 %v1613, %v1613
        %1615 = vrot.lane.b32.xlu0 %v1551, 64
        %v1616 = vpop.permute.xlu0 %1615
        %v1618 = vsel %vm697, %v1614, 0
        %v1621 = vsel %vm769, %v1616, 0
        %1623 = vmatprep.subr.bf16.mxu0 0
        %1624 = vmatpush1.bf16.msra.mxu0 0
        %1625 = vmatprep.subr.bf16.mxu0 0
        %1626 = vmatpush1.bf16.msra.mxu0 0
        %1627 = vmatprep.subr.bf16.mxu0 0
        %1628 = vmatpush1.bf16.msra.mxu0 0
        %1629 = vmatprep.subr.bf16.mxu0 0
        %1630 = vmatpush1.bf16.msra.mxu0 0
        %1631 = vmatprep.subr.bf16.mxu0 0
        %1632 = vmatpush1.bf16.msra.mxu0 0
        %1633 = vmatprep.subr.bf16.mxu0 0
        %1634 = vmatpush1.bf16.msra.mxu0 0
        %1635 = vmatprep.subr.bf16.mxu0 0
        %1636 = vmatpush1.bf16.msra.mxu0 0
        %1637 = vmatprep.subr.bf16.mxu0 0
        %1638 = vmatpush1.bf16.msra.mxu0 %v1621
        %1639 = vmatprep.subr.bf16.mxu0 0
        %1640 = vmatpush2.bf16.msra.mxu0 0
        %1641 = vmatprep.subr.bf16.mxu0 0
        %1642 = vmatpush2.bf16.msra.mxu0 0
        %1643 = vmatprep.subr.bf16.mxu0 0
        %1644 = vmatpush2.bf16.msra.mxu0 0
        %1645 = vmatprep.subr.bf16.mxu0 0
        %1646 = vmatpush2.bf16.msra.mxu0 0
        %1647 = vmatprep.subr.bf16.mxu0 0
        %1648 = vmatpush2.bf16.msra.mxu0 0
        %1649 = vmatprep.subr.bf16.mxu0 0
        %1650 = vmatpush2.bf16.msra.mxu0 0
        %1651 = vmatprep.subr.bf16.mxu0 0
        %1652 = vmatpush2.bf16.msra.mxu0 0
        %1653 = vmatprep.subr.bf16.mxu0 0
        %1654 = vmatpush2.bf16.msra.mxu0 0
        %1655 = vmatprep.mubr.bf16.mxu0 0
        %1656 = vmatmul.mubr.bf16.gmra.mxu0 %v1618
        %v1657 = vpop.f32.mrf.mxu0
        %v1658 = vadd.f32 0.0, %v1657
        %v1659 = vpop.f32.mrf.mxu0
        %v1660 = vpop.f32.mrf.mxu0
        %v1661 = vpop.f32.mrf.mxu0
        %1662 = vdwg.mxu0
        %1663 = vrot.lane.b32.xlu0 %v1551, 120
        %v1664 = vpop.permute.xlu0 %1663
        %1665 = vrot.lane.b32.xlu0 %v1551, 88
        %v1666 = vpop.permute.xlu0 %1665
        %v1668 = vsel %vm697, %v1664, 0
        %v1671 = vsel %vm697, %v1666, 0
        %1673 = vmatprep.subr.bf16.mxu0 0
        %1674 = vmatpush1.bf16.xpose.msra.mxu0 0
        %1675 = vmatprep.subr.bf16.mxu0 0
        %1676 = vmatpush1.bf16.xpose.msra.mxu0 0
        %1677 = vmatprep.subr.bf16.mxu0 0
        %1678 = vmatpush1.bf16.xpose.msra.mxu0 0
        %1679 = vmatprep.subr.bf16.mxu0 0
        %1680 = vmatpush1.bf16.xpose.msra.mxu0 0
        %1681 = vmatprep.subr.bf16.mxu0 0
        %1682 = vmatpush1.bf16.xpose.msra.mxu0 0
        %1683 = vmatprep.subr.bf16.mxu0 0
        %1684 = vmatpush1.bf16.xpose.msra.mxu0 0
        %1685 = vmatprep.subr.bf16.mxu0 0
        %1686 = vmatpush1.bf16.xpose.msra.mxu0 0
        %1687 = vmatprep.subr.bf16.mxu0 0
        %1688 = vmatpush1.bf16.xpose.msra.mxu0 %v1671
        %1689 = vmatprep.subr.bf16.mxu0 0
        %1690 = vmatpush2.bf16.xpose.msra.mxu0 0
        %1691 = vmatprep.subr.bf16.mxu0 0
        %1692 = vmatpush2.bf16.xpose.msra.mxu0 0
        %1693 = vmatprep.subr.bf16.mxu0 0
        %1694 = vmatpush2.bf16.xpose.msra.mxu0 0
        %1695 = vmatprep.subr.bf16.mxu0 0
        %1696 = vmatpush2.bf16.xpose.msra.mxu0 0
        %1697 = vmatprep.subr.bf16.mxu0 0
        %1698 = vmatpush2.bf16.xpose.msra.mxu0 0
        %1699 = vmatprep.subr.bf16.mxu0 0
        %1700 = vmatpush2.bf16.xpose.msra.mxu0 0
        %1701 = vmatprep.subr.bf16.mxu0 0
        %1702 = vmatpush2.bf16.xpose.msra.mxu0 0
        %1703 = vmatprep.subr.bf16.mxu0 0
        %1704 = vmatpush2.bf16.xpose.msra.mxu0 0
        %1705 = vmatprep.mubr.bf16.mxu0 0
        %1706 = vmatmul.mubr.bf16.gmra.mxu0 %v1668
        %v1707 = vpop.f32.mrf.mxu0
        %v1708 = vadd.f32 0.0, %v1707
        %v1709 = vpop.f32.mrf.mxu0
        %v1710 = vpop.f32.mrf.mxu0
        %v1711 = vpop.f32.mrf.mxu0
        %1712 = vdwg.mxu0
        %v1713 = vmul.f32 %v1708, 0.35355338
        %v1714 = vadd.f32 %v1713, %v749
        %v1715 = vsel %vm697, %v1714, -inf
        %1716 = vmax.xlane.f32.xlu0 %v1715
        %v1717 = vpop.xlane.xlu0 %1716
        %v1718 = vsub.f32 %v1714, %v1717
        %v1719 = vmul.f32 %v1718, 1.442695
        %v1720 = vpow.pop %v1719
        %v1721 = vsel %vm697, %v1720, 0.0
        %1722 = vadd.xlane.f32.xlu0 %v1721
        %v1723 = vpop.xlane.xlu0 %1722
        %v1724 = vrcp.pop %v1723
        %v1725 = vmul.f32 %v1720, %v1724
        %v1726 = vpack.c.bf16 %v1725, %v1725
        %1727 = vrot.lane.b32.xlu0 %v1551, 56
        %v1728 = vpop.permute.xlu0 %1727
        %v1730 = vsel %vm697, %v1726, 0
        %v1733 = vsel %vm769, %v1728, 0
        %1735 = vmatprep.subr.bf16.mxu0 0
        %1736 = vmatpush1.bf16.msra.mxu0 0
        %1737 = vmatprep.subr.bf16.mxu0 0
        %1738 = vmatpush1.bf16.msra.mxu0 0
        %1739 = vmatprep.subr.bf16.mxu0 0
        %1740 = vmatpush1.bf16.msra.mxu0 0
        %1741 = vmatprep.subr.bf16.mxu0 0
        %1742 = vmatpush1.bf16.msra.mxu0 0
        %1743 = vmatprep.subr.bf16.mxu0 0
        %1744 = vmatpush1.bf16.msra.mxu0 0
        %1745 = vmatprep.subr.bf16.mxu0 0
        %1746 = vmatpush1.bf16.msra.mxu0 0
        %1747 = vmatprep.subr.bf16.mxu0 0
        %1748 = vmatpush1.bf16.msra.mxu0 0
        %1749 = vmatprep.subr.bf16.mxu0 0
        %1750 = vmatpush1.bf16.msra.mxu0 %v1733
        %1751 = vmatprep.subr.bf16.mxu0 0
        %1752 = vmatpush2.bf16.msra.mxu0 0
        %1753 = vmatprep.subr.bf16.mxu0 0
        %1754 = vmatpush2.bf16.msra.mxu0 0
        %1755 = vmatprep.subr.bf16.mxu0 0
        %1756 = vmatpush2.bf16.msra.mxu0 0
        %1757 = vmatprep.subr.bf16.mxu0 0
        %1758 = vmatpush2.bf16.msra.mxu0 0
        %1759 = vmatprep.subr.bf16.mxu0 0
        %1760 = vmatpush2.bf16.msra.mxu0 0
        %1761 = vmatprep.subr.bf16.mxu0 0
        %1762 = vmatpush2.bf16.msra.mxu0 0
        %1763 = vmatprep.subr.bf16.mxu0 0
        %1764 = vmatpush2.bf16.msra.mxu0 0
        %1765 = vmatprep.subr.bf16.mxu0 0
        %1766 = vmatpush2.bf16.msra.mxu0 0
        %1767 = vmatprep.mubr.bf16.mxu0 0
        %1768 = vmatmul.mubr.bf16.gmra.mxu0 %v1730
        %v1769 = vpop.f32.mrf.mxu0
        %v1770 = vadd.f32 0.0, %v1769
        %v1771 = vpop.f32.mrf.mxu0
        %v1772 = vpop.f32.mrf.mxu0
        %v1773 = vpop.f32.mrf.mxu0
        %1774 = vdwg.mxu0
        %1775 = vrot.lane.b32.xlu0 %v1551, 112
        %v1776 = vpop.permute.xlu0 %1775
        %1777 = vrot.lane.b32.xlu0 %v1551, 80
        %v1778 = vpop.permute.xlu0 %1777
        %v1780 = vsel %vm697, %v1776, 0
        %v1783 = vsel %vm697, %v1778, 0
        %1785 = vmatprep.subr.bf16.mxu0 0
        %1786 = vmatpush1.bf16.xpose.msra.mxu0 0
        %1787 = vmatprep.subr.bf16.mxu0 0
        %1788 = vmatpush1.bf16.xpose.msra.mxu0 0
        %1789 = vmatprep.subr.bf16.mxu0 0
        %1790 = vmatpush1.bf16.xpose.msra.mxu0 0
        %1791 = vmatprep.subr.bf16.mxu0 0
        %1792 = vmatpush1.bf16.xpose.msra.mxu0 0
        %1793 = vmatprep.subr.bf16.mxu0 0
        %1794 = vmatpush1.bf16.xpose.msra.mxu0 0
        %1795 = vmatprep.subr.bf16.mxu0 0
        %1796 = vmatpush1.bf16.xpose.msra.mxu0 0
        %1797 = vmatprep.subr.bf16.mxu0 0
        %1798 = vmatpush1.bf16.xpose.msra.mxu0 0
        %1799 = vmatprep.subr.bf16.mxu0 0
        %1800 = vmatpush1.bf16.xpose.msra.mxu0 %v1783
        %1801 = vmatprep.subr.bf16.mxu0 0
        %1802 = vmatpush2.bf16.xpose.msra.mxu0 0
        %1803 = vmatprep.subr.bf16.mxu0 0
        %1804 = vmatpush2.bf16.xpose.msra.mxu0 0
        %1805 = vmatprep.subr.bf16.mxu0 0
        %1806 = vmatpush2.bf16.xpose.msra.mxu0 0
        %1807 = vmatprep.subr.bf16.mxu0 0
        %1808 = vmatpush2.bf16.xpose.msra.mxu0 0
        %1809 = vmatprep.subr.bf16.mxu0 0
        %1810 = vmatpush2.bf16.xpose.msra.mxu0 0
        %1811 = vmatprep.subr.bf16.mxu0 0
        %1812 = vmatpush2.bf16.xpose.msra.mxu0 0
        %1813 = vmatprep.subr.bf16.mxu0 0
        %1814 = vmatpush2.bf16.xpose.msra.mxu0 0
        %1815 = vmatprep.subr.bf16.mxu0 0
        %1816 = vmatpush2.bf16.xpose.msra.mxu0 0
        %1817 = vmatprep.mubr.bf16.mxu0 0
        %1818 = vmatmul.mubr.bf16.gmra.mxu0 %v1780
        %v1819 = vpop.f32.mrf.mxu0
        %v1820 = vadd.f32 0.0, %v1819
        %v1821 = vpop.f32.mrf.mxu0
        %v1822 = vpop.f32.mrf.mxu0
        %v1823 = vpop.f32.mrf.mxu0
        %1824 = vdwg.mxu0
        %v1825 = vmul.f32 %v1820, 0.35355338
        %v1826 = vadd.f32 %v1825, %v749
        %v1827 = vsel %vm697, %v1826, -inf
        %1828 = vmax.xlane.f32.xlu0 %v1827
        %v1829 = vpop.xlane.xlu0 %1828
        %v1830 = vsub.f32 %v1826, %v1829
        %v1831 = vmul.f32 %v1830, 1.442695
        %v1832 = vpow.pop %v1831
        %v1833 = vsel %vm697, %v1832, 0.0
        %1834 = vadd.xlane.f32.xlu0 %v1833
        %v1835 = vpop.xlane.xlu0 %1834
        %v1836 = vrcp.pop %v1835
        %v1837 = vmul.f32 %v1832, %v1836
        %v1838 = vpack.c.bf16 %v1837, %v1837
        %1839 = vrot.lane.b32.xlu0 %v1551, 48
        %v1840 = vpop.permute.xlu0 %1839
        %v1842 = vsel %vm697, %v1838, 0
        %v1845 = vsel %vm769, %v1840, 0
        %1847 = vmatprep.subr.bf16.mxu0 0
        %1848 = vmatpush1.bf16.msra.mxu0 0
        %1849 = vmatprep.subr.bf16.mxu0 0
        %1850 = vmatpush1.bf16.msra.mxu0 0
        %1851 = vmatprep.subr.bf16.mxu0 0
        %1852 = vmatpush1.bf16.msra.mxu0 0
        %1853 = vmatprep.subr.bf16.mxu0 0
        %1854 = vmatpush1.bf16.msra.mxu0 0
        %1855 = vmatprep.subr.bf16.mxu0 0
        %1856 = vmatpush1.bf16.msra.mxu0 0
        %1857 = vmatprep.subr.bf16.mxu0 0
        %1858 = vmatpush1.bf16.msra.mxu0 0
        %1859 = vmatprep.subr.bf16.mxu0 0
        %1860 = vmatpush1.bf16.msra.mxu0 0
        %1861 = vmatprep.subr.bf16.mxu0 0
        %1862 = vmatpush1.bf16.msra.mxu0 %v1845
        %1863 = vmatprep.subr.bf16.mxu0 0
        %1864 = vmatpush2.bf16.msra.mxu0 0
        %1865 = vmatprep.subr.bf16.mxu0 0
        %1866 = vmatpush2.bf16.msra.mxu0 0
        %1867 = vmatprep.subr.bf16.mxu0 0
        %1868 = vmatpush2.bf16.msra.mxu0 0
        %1869 = vmatprep.subr.bf16.mxu0 0
        %1870 = vmatpush2.bf16.msra.mxu0 0
        %1871 = vmatprep.subr.bf16.mxu0 0
        %1872 = vmatpush2.bf16.msra.mxu0 0
        %1873 = vmatprep.subr.bf16.mxu0 0
        %1874 = vmatpush2.bf16.msra.mxu0 0
        %1875 = vmatprep.subr.bf16.mxu0 0
        %1876 = vmatpush2.bf16.msra.mxu0 0
        %1877 = vmatprep.subr.bf16.mxu0 0
        %1878 = vmatpush2.bf16.msra.mxu0 0
        %1879 = vmatprep.mubr.bf16.mxu0 0
        %1880 = vmatmul.mubr.bf16.gmra.mxu0 %v1842
        %v1881 = vpop.f32.mrf.mxu0
        %v1882 = vadd.f32 0.0, %v1881
        %v1883 = vpop.f32.mrf.mxu0
        %v1884 = vpop.f32.mrf.mxu0
        %v1885 = vpop.f32.mrf.mxu0
        %1886 = vdwg.mxu0
        %1887 = vrot.lane.b32.xlu0 %v1551, 104
        %v1888 = vpop.permute.xlu0 %1887
        %1889 = vrot.lane.b32.xlu0 %v1551, 72
        %v1890 = vpop.permute.xlu0 %1889
        %v1892 = vsel %vm697, %v1888, 0
        %v1895 = vsel %vm697, %v1890, 0
        %1897 = vmatprep.subr.bf16.mxu0 0
        %1898 = vmatpush1.bf16.xpose.msra.mxu0 0
        %1899 = vmatprep.subr.bf16.mxu0 0
        %1900 = vmatpush1.bf16.xpose.msra.mxu0 0
        %1901 = vmatprep.subr.bf16.mxu0 0
        %1902 = vmatpush1.bf16.xpose.msra.mxu0 0
        %1903 = vmatprep.subr.bf16.mxu0 0
        %1904 = vmatpush1.bf16.xpose.msra.mxu0 0
        %1905 = vmatprep.subr.bf16.mxu0 0
        %1906 = vmatpush1.bf16.xpose.msra.mxu0 0
        %1907 = vmatprep.subr.bf16.mxu0 0
        %1908 = vmatpush1.bf16.xpose.msra.mxu0 0
        %1909 = vmatprep.subr.bf16.mxu0 0
        %1910 = vmatpush1.bf16.xpose.msra.mxu0 0
        %1911 = vmatprep.subr.bf16.mxu0 0
        %1912 = vmatpush1.bf16.xpose.msra.mxu0 %v1895
        %1913 = vmatprep.subr.bf16.mxu0 0
        %1914 = vmatpush2.bf16.xpose.msra.mxu0 0
        %1915 = vmatprep.subr.bf16.mxu0 0
        %1916 = vmatpush2.bf16.xpose.msra.mxu0 0
        %1917 = vmatprep.subr.bf16.mxu0 0
        %1918 = vmatpush2.bf16.xpose.msra.mxu0 0
        %1919 = vmatprep.subr.bf16.mxu0 0
        %1920 = vmatpush2.bf16.xpose.msra.mxu0 0
        %1921 = vmatprep.subr.bf16.mxu0 0
        %1922 = vmatpush2.bf16.xpose.msra.mxu0 0
        %1923 = vmatprep.subr.bf16.mxu0 0
        %1924 = vmatpush2.bf16.xpose.msra.mxu0 0
        %1925 = vmatprep.subr.bf16.mxu0 0
        %1926 = vmatpush2.bf16.xpose.msra.mxu0 0
        %1927 = vmatprep.subr.bf16.mxu0 0
        %1928 = vmatpush2.bf16.xpose.msra.mxu0 0
        %1929 = vmatprep.mubr.bf16.mxu0 0
        %1930 = vmatmul.mubr.bf16.gmra.mxu0 %v1892
        %v1931 = vpop.f32.mrf.mxu0
        %v1932 = vadd.f32 0.0, %v1931
        %v1933 = vpop.f32.mrf.mxu0
        %v1934 = vpop.f32.mrf.mxu0
        %v1935 = vpop.f32.mrf.mxu0
        %1936 = vdwg.mxu0
        %v1937 = vmul.f32 %v1932, 0.35355338
        %v1938 = vadd.f32 %v1937, %v749
        %v1939 = vsel %vm697, %v1938, -inf
        %1940 = vmax.xlane.f32.xlu0 %v1939
        %v1941 = vpop.xlane.xlu0 %1940
        %v1942 = vsub.f32 %v1938, %v1941
        %v1943 = vmul.f32 %v1942, 1.442695
        %v1944 = vpow.pop %v1943
        %v1945 = vsel %vm697, %v1944, 0.0
        %1946 = vadd.xlane.f32.xlu0 %v1945
        %v1947 = vpop.xlane.xlu0 %1946
        %v1948 = vrcp.pop %v1947
        %v1949 = vmul.f32 %v1944, %v1948
        %v1950 = vpack.c.bf16 %v1949, %v1949
        %1951 = vrot.lane.b32.xlu0 %v1551, 40
        %v1952 = vpop.permute.xlu0 %1951
        %v1954 = vsel %vm697, %v1950, 0
        %v1957 = vsel %vm769, %v1952, 0
        %1959 = vmatprep.subr.bf16.mxu0 0
        %1960 = vmatpush1.bf16.msra.mxu0 0
        %1961 = vmatprep.subr.bf16.mxu0 0
        %1962 = vmatpush1.bf16.msra.mxu0 0
        %1963 = vmatprep.subr.bf16.mxu0 0
        %1964 = vmatpush1.bf16.msra.mxu0 0
        %1965 = vmatprep.subr.bf16.mxu0 0
        %1966 = vmatpush1.bf16.msra.mxu0 0
        %1967 = vmatprep.subr.bf16.mxu0 0
        %1968 = vmatpush1.bf16.msra.mxu0 0
        %1969 = vmatprep.subr.bf16.mxu0 0
        %1970 = vmatpush1.bf16.msra.mxu0 0
        %1971 = vmatprep.subr.bf16.mxu0 0
        %1972 = vmatpush1.bf16.msra.mxu0 0
        %1973 = vmatprep.subr.bf16.mxu0 0
        %1974 = vmatpush1.bf16.msra.mxu0 %v1957
        %1975 = vmatprep.subr.bf16.mxu0 0
        %1976 = vmatpush2.bf16.msra.mxu0 0
        %1977 = vmatprep.subr.bf16.mxu0 0
        %1978 = vmatpush2.bf16.msra.mxu0 0
        %1979 = vmatprep.subr.bf16.mxu0 0
        %1980 = vmatpush2.bf16.msra.mxu0 0
        %1981 = vmatprep.subr.bf16.mxu0 0
        %1982 = vmatpush2.bf16.msra.mxu0 0
        %1983 = vmatprep.subr.bf16.mxu0 0
        %1984 = vmatpush2.bf16.msra.mxu0 0
        %1985 = vmatprep.subr.bf16.mxu0 0
        %1986 = vmatpush2.bf16.msra.mxu0 0
        %1987 = vmatprep.subr.bf16.mxu0 0
        %1988 = vmatpush2.bf16.msra.mxu0 0
        %1989 = vmatprep.subr.bf16.mxu0 0
        %1990 = vmatpush2.bf16.msra.mxu0 0
        %1991 = vmatprep.mubr.bf16.mxu0 0
        %1992 = vmatmul.mubr.bf16.gmra.mxu0 %v1954
        %v1993 = vpop.f32.mrf.mxu0
        %v1994 = vadd.f32 0.0, %v1993
        %v1995 = vpop.f32.mrf.mxu0
        %v1996 = vpop.f32.mrf.mxu0
        %v1997 = vpop.f32.mrf.mxu0
        %1998 = vdwg.mxu0
        %2000 = vrot.lane.b32.xlu0 %v1770, 8
        %v2001 = vpop.permute.xlu0 %2000
        %2004 = vrot.lane.b32.xlu0 %v1882, 16
        %v2005 = vpop.permute.xlu0 %2004
        %2008 = vrot.lane.b32.xlu0 %v1994, 24
        %v2009 = vpop.permute.xlu0 %2008
        %v2011 = vsel %vm697, %v1658, %v2001
        %v2012 = vsel %vm1162, %v2011, %v2005
        %v2013 = vsel %vm1164, %v2012, %v2009
        %v2014 = vpack.c.bf16 %v2013, %v2013
        %s2015 = scalar_lea.vmem %s4, 16
        %v2016 = vld [vmem:[%s2015] sm:$0xf]
        %v2017 = vld [vmem:[%s2015 + $0x4] sm:$0xf]
        %v2018 = vld [vmem:[%s2015 + $0x8] sm:$0xf]
        %v2019 = vld [vmem:[%s2015 + $0xc] sm:$0xf]
        %s2020 = scalar_lea.vmem %s5, 1
        %v2021 = vld [vmem:[%s2020] sm:$0x1]
        %v2023 = vlaneseq
        %v2024 = vshrl.u32 %v2023, 7
        %v2025 = vsub.s32 0, %v2024
        %v2026 = vrot.slane %v2021, %v2025
        %v2032 = vunpack.c.l.b16 %v2016
        %v2033 = vunpack.c.l.b16 %v2017
        %v2034 = vunpack.c.l.b16 %v2018
        %v2035 = vunpack.c.l.b16 %v2019
        %v2036 = vpack.c.b16 %v2033, %v2032
        %v2037 = vpack.c.b16 %v2035, %v2034
        %v2041 = vsel %vm649, %v2014, 0
        %2043 = vmatprep.subr.bf16.mxu0 0
        %2044 = vmatpush1.bf16.msra.mxu0 0
        %2045 = vmatprep.subr.bf16.mxu0 0
        %2046 = vmatpush1.bf16.msra.mxu0 0
        %2047 = vmatprep.subr.bf16.mxu0 0
        %2048 = vmatpush1.bf16.msra.mxu0 0
        %2049 = vmatprep.subr.bf16.mxu0 0
        %2050 = vmatpush1.bf16.msra.mxu0 0
        %2051 = vmatprep.subr.bf16.mxu0 0
        %2052 = vmatpush1.bf16.msra.mxu0 0
        %2053 = vmatprep.subr.bf16.mxu0 0
        %2054 = vmatpush1.bf16.msra.mxu0 0
        %2055 = vmatprep.subr.bf16.mxu0 0
        %2056 = vmatpush1.bf16.msra.mxu0 %v2037
        %2057 = vmatprep.subr.bf16.mxu0 0
        %2058 = vmatpush1.bf16.msra.mxu0 %v2036
        %2059 = vmatprep.subr.bf16.mxu0 0
        %2060 = vmatpush2.bf16.msra.mxu0 0
        %2061 = vmatprep.subr.bf16.mxu0 0
        %2062 = vmatpush2.bf16.msra.mxu0 0
        %2063 = vmatprep.subr.bf16.mxu0 0
        %2064 = vmatpush2.bf16.msra.mxu0 0
        %2065 = vmatprep.subr.bf16.mxu0 0
        %2066 = vmatpush2.bf16.msra.mxu0 0
        %2067 = vmatprep.subr.bf16.mxu0 0
        %2068 = vmatpush2.bf16.msra.mxu0 0
        %2069 = vmatprep.subr.bf16.mxu0 0
        %2070 = vmatpush2.bf16.msra.mxu0 0
        %2071 = vmatprep.subr.bf16.mxu0 0
        %2072 = vmatpush2.bf16.msra.mxu0 0
        %2073 = vmatprep.subr.bf16.mxu0 0
        %2074 = vmatpush2.bf16.msra.mxu0 0
        %2075 = vmatprep.mubr.bf16.mxu0 0
        %2076 = vmatmul.mubr.bf16.gmra.mxu0 %v2041
        %v2077 = vpop.f32.mrf.mxu0
        %v2078 = vadd.f32 %v2026, %v2077
        %v2079 = vpop.f32.mrf.mxu0
        %v2080 = vpop.f32.mrf.mxu0
        %v2081 = vpop.f32.mrf.mxu0
        %2082 = vdwg.mxu0
        %v2083 = vadd.f32 %v1481, %v2078
        %s2084 = scalar_lea.vmem %s6, 1
        %v2085 = vld [vmem:[%s2084] sm:$0x1]
        %s2086 = scalar_lea.vmem %s7, 1
        %v2087 = vld [vmem:[%s2086] sm:$0x1]
        %v2088 = vsel %vm649, %v2083, 0.0
        %2089 = vadd.xlane.f32.xlu0 %v2088
        %v2090 = vpop.xlane.xlu0 %2089
        %v2091 = vmul.f32 %v2090, %v1239
        %v2092 = vsub.f32 %v2083, %v2091
        %v2093 = vmul.f32 %v2092, %v2092
        %v2094 = vsel %vm649, %v2093, 0.0
        %2095 = vadd.xlane.f32.xlu0 %v2094
        %v2096 = vpop.xlane.xlu0 %2095
        %v2097 = vmul.f32 %v2096, %v1239
        %v2098 = vadd.f32 %v2097, 1e-05
        %v2099 = vrsqrt.pop %v2098
        %v2100 = vmul.f32 %v2092, %v2099
        %v2102 = vlaneseq
        %v2103 = vshrl.u32 %v2102, 7
        %v2104 = vsub.s32 0, %v2103
        %v2105 = vrot.slane %v2085, %v2104
        %v2107 = vmul.f32 %v2100, %v2105
        %v2109 = vlaneseq
        %v2110 = vshrl.u32 %v2109, 7
        %v2111 = vsub.s32 0, %v2110
        %v2112 = vrot.slane %v2087, %v2111
        %v2114 = vadd.f32 %v2107, %v2112
        %v2115 = vpack.c.bf16 %v2114, %v2114
        %s2116 = scalar_lea.vmem %s8, 16
        %v2117 = vld [vmem:[%s2116] sm:$0xf]
        %v2118 = vld [vmem:[%s2116 + $0x4] sm:$0xf]
        %v2119 = vld [vmem:[%s2116 + $0x8] sm:$0xf]
        %v2120 = vld [vmem:[%s2116 + $0xc] sm:$0xf]
        %s2121 = scalar_lea.vmem %s9, 1
        %v2122 = vld [vmem:[%s2121] sm:$0x1]
        %v2124 = vlaneseq
        %v2125 = vshrl.u32 %v2124, 7
        %v2126 = vsub.s32 0, %v2125
        %v2127 = vrot.slane %v2122, %v2126
        %v2133 = vunpack.c.l.b16 %v2117
        %v2134 = vunpack.c.l.b16 %v2118
        %v2135 = vunpack.c.l.b16 %v2119
        %v2136 = vunpack.c.l.b16 %v2120
        %v2137 = vpack.c.b16 %v2134, %v2133
        %v2138 = vpack.c.b16 %v2136, %v2135
        %v2142 = vsel %vm649, %v2115, 0
        %2144 = vmatprep.subr.bf16.mxu0 0
        %2145 = vmatpush1.bf16.msra.mxu0 0
        %2146 = vmatprep.subr.bf16.mxu0 0
        %2147 = vmatpush1.bf16.msra.mxu0 0
        %2148 = vmatprep.subr.bf16.mxu0 0
        %2149 = vmatpush1.bf16.msra.mxu0 0
        %2150 = vmatprep.subr.bf16.mxu0 0
        %2151 = vmatpush1.bf16.msra.mxu0 0
        %2152 = vmatprep.subr.bf16.mxu0 0
        %2153 = vmatpush1.bf16.msra.mxu0 0
        %2154 = vmatprep.subr.bf16.mxu0 0
        %2155 = vmatpush1.bf16.msra.mxu0 0
        %2156 = vmatprep.subr.bf16.mxu0 0
        %2157 = vmatpush1.bf16.msra.mxu0 %v2138
        %2158 = vmatprep.subr.bf16.mxu0 0
        %2159 = vmatpush1.bf16.msra.mxu0 %v2137
        %2160 = vmatprep.subr.bf16.mxu0 0
        %2161 = vmatpush2.bf16.msra.mxu0 0
        %2162 = vmatprep.subr.bf16.mxu0 0
        %2163 = vmatpush2.bf16.msra.mxu0 0
        %2164 = vmatprep.subr.bf16.mxu0 0
        %2165 = vmatpush2.bf16.msra.mxu0 0
        %2166 = vmatprep.subr.bf16.mxu0 0
        %2167 = vmatpush2.bf16.msra.mxu0 0
        %2168 = vmatprep.subr.bf16.mxu0 0
        %2169 = vmatpush2.bf16.msra.mxu0 0
        %2170 = vmatprep.subr.bf16.mxu0 0
        %2171 = vmatpush2.bf16.msra.mxu0 0
        %2172 = vmatprep.subr.bf16.mxu0 0
        %2173 = vmatpush2.bf16.msra.mxu0 0
        %2174 = vmatprep.subr.bf16.mxu0 0
        %2175 = vmatpush2.bf16.msra.mxu0 0
        %2176 = vmatprep.mubr.bf16.mxu0 0
        %2177 = vmatmul.mubr.bf16.gmra.mxu0 %v2142
        %v2178 = vpop.f32.mrf.mxu0
        %v2179 = vadd.f32 %v2127, %v2178
        %v2180 = vpop.f32.mrf.mxu0
        %v2181 = vpop.f32.mrf.mxu0
        %v2182 = vpop.f32.mrf.mxu0
        %2183 = vdwg.mxu0
        %v2184 = vmul.f32 %v2179, %v2179
        %v2185 = vmul.f32 %v2179, %v2184
        %v2186 = vmul.f32 %v2185, 0.044715
        %v2187 = vadd.f32 %v2179, %v2186
        %v2188 = vmul.f32 %v2187, 0.7978846
        %v2189 = vtanh.pop %v2188
        %v2190 = vadd.f32 %v2189, 1.0
        %v2191 = vmul.f32 %v2190, 0.5
        %v2192 = vmul.f32 %v2179, %v2191
        %v2193 = vpack.c.bf16 %v2192, %v2192
        %s2194 = scalar_lea.vmem %s10, 64
        %v2195 = vld [vmem:[%s2194] sm:$0xf]
        %v2196 = vld [vmem:[%s2194 + $0x4] sm:$0xf]
        %v2197 = vld [vmem:[%s2194 + $0x8] sm:$0xf]
        %v2198 = vld [vmem:[%s2194 + $0xc] sm:$0xf]
        %v2199 = vld [vmem:[%s2194 + $0x10] sm:$0xf]
        %v2200 = vld [vmem:[%s2194 + $0x14] sm:$0xf]
        %v2201 = vld [vmem:[%s2194 + $0x18] sm:$0xf]
        %v2202 = vld [vmem:[%s2194 + $0x1c] sm:$0xf]
        %v2203 = vld [vmem:[%s2194 + $0x20] sm:$0xf]
        %v2204 = vld [vmem:[%s2194 + $0x24] sm:$0xf]
        %v2205 = vld [vmem:[%s2194 + $0x28] sm:$0xf]
        %v2206 = vld [vmem:[%s2194 + $0x2c] sm:$0xf]
        %v2207 = vld [vmem:[%s2194 + $0x30] sm:$0xf]
        %v2208 = vld [vmem:[%s2194 + $0x34] sm:$0xf]
        %v2209 = vld [vmem:[%s2194 + $0x38] sm:$0xf]
        %v2210 = vld [vmem:[%s2194 + $0x3c] sm:$0xf]
        %s2211 = scalar_lea.vmem %s11, 1
        %v2212 = vld [vmem:[%s2211] sm:$0x1]
        %v2214 = vlaneseq
        %v2215 = vshrl.u32 %v2214, 7
        %v2216 = vsub.s32 0, %v2215
        %v2217 = vrot.slane %v2212, %v2216
        %v2235 = vunpack.c.l.b16 %v2195
        %v2236 = vunpack.c.l.b16 %v2196
        %v2237 = vunpack.c.l.b16 %v2197
        %v2238 = vunpack.c.l.b16 %v2198
        %v2239 = vunpack.c.l.b16 %v2199
        %v2240 = vunpack.c.l.b16 %v2200
        %v2241 = vunpack.c.l.b16 %v2201
        %v2242 = vunpack.c.l.b16 %v2202
        %v2243 = vunpack.c.l.b16 %v2203
        %v2244 = vunpack.c.l.b16 %v2204
        %v2245 = vunpack.c.l.b16 %v2205
        %v2246 = vunpack.c.l.b16 %v2206
        %v2247 = vunpack.c.l.b16 %v2207
        %v2248 = vunpack.c.l.b16 %v2208
        %v2249 = vunpack.c.l.b16 %v2209
        %v2250 = vunpack.c.l.b16 %v2210
        %v2251 = vpack.c.b16 %v2236, %v2235
        %v2252 = vpack.c.b16 %v2238, %v2237
        %v2253 = vpack.c.b16 %v2240, %v2239
        %v2254 = vpack.c.b16 %v2242, %v2241
        %v2255 = vpack.c.b16 %v2244, %v2243
        %v2256 = vpack.c.b16 %v2246, %v2245
        %v2257 = vpack.c.b16 %v2248, %v2247
        %v2258 = vpack.c.b16 %v2250, %v2249
        %2267 = vmatprep.subr.bf16.mxu0 0
        %2268 = vmatpush1.bf16.msra.mxu0 %v2258
        %2269 = vmatprep.subr.bf16.mxu0 0
        %2270 = vmatpush1.bf16.msra.mxu0 %v2257
        %2271 = vmatprep.subr.bf16.mxu0 0
        %2272 = vmatpush1.bf16.msra.mxu0 %v2256
        %2273 = vmatprep.subr.bf16.mxu0 0
        %2274 = vmatpush1.bf16.msra.mxu0 %v2255
        %2275 = vmatprep.subr.bf16.mxu0 0
        %2276 = vmatpush1.bf16.msra.mxu0 %v2254
        %2277 = vmatprep.subr.bf16.mxu0 0
        %2278 = vmatpush1.bf16.msra.mxu0 %v2253
        %2279 = vmatprep.subr.bf16.mxu0 0
        %2280 = vmatpush1.bf16.msra.mxu0 %v2252
        %2281 = vmatprep.subr.bf16.mxu0 0
        %2282 = vmatpush1.bf16.msra.mxu0 %v2251
        %2283 = vmatprep.subr.bf16.mxu0 0
        %2284 = vmatpush2.bf16.msra.mxu0 0
        %2285 = vmatprep.subr.bf16.mxu0 0
        %2286 = vmatpush2.bf16.msra.mxu0 0
        %2287 = vmatprep.subr.bf16.mxu0 0
        %2288 = vmatpush2.bf16.msra.mxu0 0
        %2289 = vmatprep.subr.bf16.mxu0 0
        %2290 = vmatpush2.bf16.msra.mxu0 0
        %2291 = vmatprep.subr.bf16.mxu0 0
        %2292 = vmatpush2.bf16.msra.mxu0 0
        %2293 = vmatprep.subr.bf16.mxu0 0
        %2294 = vmatpush2.bf16.msra.mxu0 0
        %2295 = vmatprep.subr.bf16.mxu0 0
        %2296 = vmatpush2.bf16.msra.mxu0 0
        %2297 = vmatprep.subr.bf16.mxu0 0
        %2298 = vmatpush2.bf16.msra.mxu0 0
        %2299 = vmatprep.mubr.bf16.mxu0 0
        %2300 = vmatmul.mubr.bf16.gmra.mxu0 %v2193
        %v2301 = vpop.f32.mrf.mxu0
        %v2302 = vadd.f32 %v2217, %v2301
        %v2303 = vpop.f32.mrf.mxu0
        %v2304 = vpop.f32.mrf.mxu0
        %v2305 = vpop.f32.mrf.mxu0
        %2306 = vdwg.mxu0
        %v2307 = vadd.f32 %v2114, %v2302
        %s2308 = scalar_lea.vmem %s12, 1
        %v2309 = vld [vmem:[%s2308] sm:$0x1]
        %s2310 = scalar_lea.vmem %s13, 1
        %v2311 = vld [vmem:[%s2310] sm:$0x1]
        %v2312 = vsel %vm649, %v2307, 0.0
        %2313 = vadd.xlane.f32.xlu0 %v2312
        %v2314 = vpop.xlane.xlu0 %2313
        %v2315 = vmul.f32 %v2314, %v1239
        %v2316 = vsub.f32 %v2307, %v2315
        %v2317 = vmul.f32 %v2316, %v2316
        %v2318 = vsel %vm649, %v2317, 0.0
        %2319 = vadd.xlane.f32.xlu0 %v2318
        %v2320 = vpop.xlane.xlu0 %2319
        %v2321 = vmul.f32 %v2320, %v1239
        %v2322 = vadd.f32 %v2321, 1e-05
        %v2323 = vrsqrt.pop %v2322
        %v2324 = vmul.f32 %v2316, %v2323
        %v2326 = vlaneseq
        %v2327 = vshrl.u32 %v2326, 7
        %v2328 = vsub.s32 0, %v2327
        %v2329 = vrot.slane %v2309, %v2328
        %v2331 = vmul.f32 %v2324, %v2329
        %v2333 = vlaneseq
        %v2334 = vshrl.u32 %v2333, 7
        %v2335 = vsub.s32 0, %v2334
        %v2336 = vrot.slane %v2311, %v2335
        %v2338 = vadd.f32 %v2331, %v2336
        %v2339 = vpack.c.bf16 %v2338, %v2338
        %v2340 = vld [vmem:[%s16] sm:$0xf]
        %v2341 = vld [vmem:[%s16 + $0x4] sm:$0xf]
        %v2342 = vld [vmem:[%s16 + $0x8] sm:$0xf]
        %v2343 = vld [vmem:[%s16 + $0xc] sm:$0xf]
        %v2344 = vld [vmem:[%s17] sm:$0x1]
        %v2346 = vlaneseq
        %v2347 = vshrl.u32 %v2346, 7
        %v2348 = vsub.s32 0, %v2347
        %v2349 = vrot.slane %v2344, %v2348
        %v2355 = vunpack.c.l.b16 %v2340
        %v2356 = vunpack.c.l.b16 %v2341
        %v2357 = vunpack.c.l.b16 %v2342
        %v2358 = vunpack.c.l.b16 %v2343
        %v2359 = vpack.c.b16 %v2356, %v2355
        %v2360 = vpack.c.b16 %v2358, %v2357
        %v2364 = vsel %vm649, %v2339, 0
        %2366 = vmatprep.subr.bf16.mxu0 0
        %2367 = vmatpush1.bf16.msra.mxu0 0
        %2368 = vmatprep.subr.bf16.mxu0 0
        %2369 = vmatpush1.bf16.msra.mxu0 0
        %2370 = vmatprep.subr.bf16.mxu0 0
        %2371 = vmatpush1.bf16.msra.mxu0 0
        %2372 = vmatprep.subr.bf16.mxu0 0
        %2373 = vmatpush1.bf16.msra.mxu0 0
        %2374 = vmatprep.subr.bf16.mxu0 0
        %2375 = vmatpush1.bf16.msra.mxu0 0
        %2376 = vmatprep.subr.bf16.mxu0 0
        %2377 = vmatpush1.bf16.msra.mxu0 0
        %2378 = vmatprep.subr.bf16.mxu0 0
        %2379 = vmatpush1.bf16.msra.mxu0 %v2360
        %2380 = vmatprep.subr.bf16.mxu0 0
        %2381 = vmatpush1.bf16.msra.mxu0 %v2359
        %2382 = vmatprep.subr.bf16.mxu0 0
        %2383 = vmatpush2.bf16.msra.mxu0 0
        %2384 = vmatprep.subr.bf16.mxu0 0
        %2385 = vmatpush2.bf16.msra.mxu0 0
        %2386 = vmatprep.subr.bf16.mxu0 0
        %2387 = vmatpush2.bf16.msra.mxu0 0
        %2388 = vmatprep.subr.bf16.mxu0 0
        %2389 = vmatpush2.bf16.msra.mxu0 0
        %2390 = vmatprep.subr.bf16.mxu0 0
        %2391 = vmatpush2.bf16.msra.mxu0 0
        %2392 = vmatprep.subr.bf16.mxu0 0
        %2393 = vmatpush2.bf16.msra.mxu0 0
        %2394 = vmatprep.subr.bf16.mxu0 0
        %2395 = vmatpush2.bf16.msra.mxu0 0
        %2396 = vmatprep.subr.bf16.mxu0 0
        %2397 = vmatpush2.bf16.msra.mxu0 0
        %2398 = vmatprep.mubr.bf16.mxu0 0
        %2399 = vmatmul.mubr.bf16.gmra.mxu0 %v2364
        %v2400 = vpop.f32.mrf.mxu0
        %v2401 = vadd.f32 %v2349, %v2400
        %v2402 = vpop.f32.mrf.mxu0
        %v2403 = vpop.f32.mrf.mxu0
        %v2404 = vpop.f32.mrf.mxu0
        %2405 = vdwg.mxu0
        %2406 = vmax.xlane.f32.xlu0 %v2401
        %v2407 = vpop.xlane.xlu0 %2406
        %v2408 = vsub.f32 %v2401, %v2407
        %v2409 = vmul.f32 %v2408, 1.442695
        %v2410 = vpow.pop %v2409
        %2411 = vadd.xlane.f32.xlu0 %v2410
        %v2412 = vpop.xlane.xlu0 %2411
        %v2413 = vlog2.pop %v2412
        %v2414 = vmul.f32 %v2413, 0.6931472
        %v2415 = vsub.f32 %v2408, %v2414
        %2416 = vst [vmem:[%s614] sm:$0xff] %v2415
        %v2417 = vld [vmem:[%s14] sm:$0xf]
        %v2418 = vld [vmem:[%s14 + $0x4] sm:$0xf]
        %v2419 = vld [vmem:[%s14 + $0x8] sm:$0xf]
        %v2420 = vld [vmem:[%s14 + $0xc] sm:$0xf]
        %v2421 = vld [vmem:[%s15] sm:$0x1]
        %v2426 = vunpack.c.l.b16 %v2417
        %v2427 = vunpack.c.l.b16 %v2418
        %v2428 = vunpack.c.l.b16 %v2419
        %v2429 = vunpack.c.l.b16 %v2420
        %v2430 = vpack.c.b16 %v2427, %v2426
        %v2431 = vpack.c.b16 %v2429, %v2428
        %2434 = vmatprep.subr.bf16.mxu0 0
        %2435 = vmatpush1.bf16.msra.mxu0 0
        %2436 = vmatprep.subr.bf16.mxu0 0
        %2437 = vmatpush1.bf16.msra.mxu0 0
        %2438 = vmatprep.subr.bf16.mxu0 0
        %2439 = vmatpush1.bf16.msra.mxu0 0
        %2440 = vmatprep.subr.bf16.mxu0 0
        %2441 = vmatpush1.bf16.msra.mxu0 0
        %2442 = vmatprep.subr.bf16.mxu0 0
        %2443 = vmatpush1.bf16.msra.mxu0 0
        %2444 = vmatprep.subr.bf16.mxu0 0
        %2445 = vmatpush1.bf16.msra.mxu0 0
        %2446 = vmatprep.subr.bf16.mxu0 0
        %2447 = vmatpush1.bf16.msra.mxu0 %v2431
        %2448 = vmatprep.subr.bf16.mxu0 0
        %2449 = vmatpush1.bf16.msra.mxu0 %v2430
        %2450 = vmatprep.subr.bf16.mxu0 0
        %2451 = vmatpush2.bf16.msra.mxu0 0
        %2452 = vmatprep.subr.bf16.mxu0 0
        %2453 = vmatpush2.bf16.msra.mxu0 0
        %2454 = vmatprep.subr.bf16.mxu0 0
        %2455 = vmatpush2.bf16.msra.mxu0 0
        %2456 = vmatprep.subr.bf16.mxu0 0
        %2457 = vmatpush2.bf16.msra.mxu0 0
        %2458 = vmatprep.subr.bf16.mxu0 0
        %2459 = vmatpush2.bf16.msra.mxu0 0
        %2460 = vmatprep.subr.bf16.mxu0 0
        %2461 = vmatpush2.bf16.msra.mxu0 0
        %2462 = vmatprep.subr.bf16.mxu0 0
        %2463 = vmatpush2.bf16.msra.mxu0 0
        %2464 = vmatprep.subr.bf16.mxu0 0
        %2465 = vmatpush2.bf16.msra.mxu0 0
        %2466 = vmatprep.mubr.bf16.mxu0 0
        %2467 = vmatmul.mubr.bf16.gmra.mxu0 %v2364
        %v2468 = vpop.f32.mrf.mxu0
        %v2469 = vadd.f32 %v2421, %v2468
        %v2470 = vpop.f32.mrf.mxu0
        %v2471 = vpop.f32.mrf.mxu0
        %v2472 = vpop.f32.mrf.mxu0
        %2473 = vdwg.mxu0
        %vm2474 = vcmask 1040384
        %v2475 = vsel %vm2474, %v2469, -inf
        %2476 = vmax.xlane.f32.xlu0 %v2475
        %v2477 = vpop.xlane.xlu0 %2476
        %v2478 = vsub.f32 %v2469, %v2477
        %v2479 = vmul.f32 %v2478, 1.442695
        %v2480 = vpow.pop %v2479
        %v2481 = vsel %vm2474, %v2480, 0.0
        %2482 = vadd.xlane.f32.xlu0 %v2481
        %v2483 = vpop.xlane.xlu0 %2482
        %v2484 = vlog2.pop %v2483
        %v2485 = vmul.f32 %v2484, 0.6931472
        %v2486 = vsub.f32 %v2478, %v2485
        %2487 = vst [vmem:[%s607] sm:$0x1] %v2486
        %s2488 = sand.u32 %s433, 1
        %s2489 = scalar_lea.sflag [#allocation3], %s2488
        %s2490 = sand.u32 %s433, 1
        %s2491 = scalar_lea.vmem [#allocation2], %s2490
        %s2492 = sand.u32 %s459, 1
        %s2493 = scalar_lea.sflag [#allocation5], %s2492
        %s2494 = sand.u32 %s459, 1
        %s2495 = smul.addr %s2494, 8
        %s2496 = scalar_lea.vmem [#allocation4], %s2495
        // Predicated region
        $region93: #{bert_lm_forward.1} parent=91 // pred_check
          %p2497 = pneg %p443
        $region94: #{bert_lm_forward.1} parent=91 // pred_check_branch
          %2499 = sbr.rel (%p2497) target = $region96
        $region95: #{bert_lm_forward.1} parent=91 // pred_region
          %s2501 = ssub.s32 16, 16
          %2502 = vsyncadd %s2489, %s2501
          %s2503 = smul.addr %s37, 16
          %s2504 = scalar_lea.hbm %s18, %s2503
          %s2506 = sshll.u32 %s2491, 4
          %s2507 = int_to_ptr.vmem [resolvable:$true] %s2506
          %2509 = dma.vmem_to_hbm [thread:$0]  %s2507, 16, %s2504, %s2489
        $region96: #{bert_lm_forward.1} parent=91 // pred_fallthru
          _
        // Predicated region
        $region97: #{bert_lm_forward.1} parent=91 // pred_check
          %p2510 = pneg %p469
        $region98: #{bert_lm_forward.1} parent=91 // pred_check_branch
          %2512 = sbr.rel (%p2510) target = $region100
        $region99: #{bert_lm_forward.1} parent=91 // pred_region
          %s2514 = ssub.s32 128, 128
          %2515 = vsyncadd %s2493, %s2514
          %s2516 = smul.addr %s37, 128
          %s2517 = scalar_lea.hbm %s19, %s2516
          %s2519 = sshll.u32 %s2496, 4
          %s2520 = int_to_ptr.vmem [resolvable:$true] %s2519
          %2522 = dma.vmem_to_hbm [thread:$0]  %s2520, 128, %s2517, %s2493
        $region100: #{bert_lm_forward.1} parent=91 // pred_fallthru
          _
      $region92: #{bert_lm_forward.1} parent=5 // pred_fallthru
        _
      %p2523 = scmp.le.s32.totalorder 2, %s32
      // Predicated region
      $region101: #{bert_lm_forward.1} parent=5 // pred_check
        %p2524 = pneg %p2523
      $region102: #{bert_lm_forward.1} parent=5 // pred_check_branch
        %2526 = sbr.rel (%p2524) target = $region104
      $region103: #{bert_lm_forward.1} parent=5 // pred_region
        %s2527 = ssub.s32 %s32, 2
        // Predicated region
        $region105: #{bert_lm_forward.1} parent=103 // pred_check
          %p2528 = pneg %p449
        $region106: #{bert_lm_forward.1} parent=103 // pred_check_branch
          %2530 = sbr.rel (%p2528) target = $region108
        $region107: #{bert_lm_forward.1} parent=103 // pred_region
          %s2531 = sand.u32 %s434, 1
          %s2532 = scalar_lea.sflag [#allocation3], %s2531
          %s2533 = sand.u32 %s434, 1
          %s2534 = scalar_lea.vmem [#allocation2], %s2533
          %2535 = dma.done %s2532, 16
        $region108: #{bert_lm_forward.1} parent=103 // pred_fallthru
          _
        // Predicated region
        $region109: #{bert_lm_forward.1} parent=103 // pred_check
          %p2536 = pneg %p475
        $region110: #{bert_lm_forward.1} parent=103 // pred_check_branch
          %2538 = sbr.rel (%p2536) target = $region112
        $region111: #{bert_lm_forward.1} parent=103 // pred_region
          %s2539 = sand.u32 %s460, 1
          %s2540 = scalar_lea.sflag [#allocation5], %s2539
          %s2541 = sand.u32 %s460, 1
          %s2542 = smul.addr %s2541, 8
          %s2543 = scalar_lea.vmem [#allocation4], %s2542
          %2544 = dma.done %s2540, 128
        $region112: #{bert_lm_forward.1} parent=103 // pred_fallthru
          _
      $region104: #{bert_lm_forward.1} parent=5 // pred_fallthru
        _
    $region6: #{bert_lm_forward.1} parent=1 // loop_footer
      %s36 = sadd.s32 1, %s32
    $region7: #{bert_lm_forward.1} parent=1 // loop_footer_branch
      %31 = sbr.rel target = $region3
    $region8: #{bert_lm_forward.1} parent=1 // loop_exit
      _
    %2545 = vsyncpa [#allocation3], 1
    %s2546 = scalar_lea.sflag [#allocation3], 1
    %2547 = vsyncpa %s2546, 1
    %2548 = vsyncpa [#allocation5], 1
    %s2549 = scalar_lea.sflag [#allocation5], 1
    %2550 = vsyncpa %s2549, 1

</llo_original>
